<compile_context>
chip_gen: v7x
topology: tpu7x:2x2x1
jax: 0.10.0
libtpu: 0.0.40
codegen_flags: <defaults>
</compile_context>

<pallas_src>
import math
import functools

import jax
import jax.numpy as jnp
from jax.experimental import pallas as pl
from jax.experimental.pallas import tpu as pltpu

INV_SQRT2 = 0.7071067811865476


def _round_up(x, m):
    return (x + m - 1) // m * m


def _cdiv(a, b):
    return (a + b - 1) // b


# ----------------------------------------------------------------------------
# Pallas kernels
# ----------------------------------------------------------------------------
def _conv_taps_kernel(*refs, n_phase, taps, tm, cout):
    """Direct convolution: one (tm, Cin) @ (Cin, Cout) matmul per tap, accumulated.

    refs = (*phase_refs, w_ref, b_ref, o_ref)
      phase_refs[p] : (L, Cin)   flattened zero-padded input rows (polyphase p)
      w_ref         : (n_taps, Cin, Cout) bf16 per-tap weight matrices
      b_ref         : (1, Cout)  f32 bias
      o_ref         : (tm, Cout) f32 "wide" output rows for this grid step
    """
    phase_refs = refs[:n_phase]
    w_ref, b_ref, o_ref = refs[n_phase], refs[n_phase + 1], refs[n_phase + 2]
    base = pl.multiple_of(pl.program_id(1) * tm, 8)
    acc = jnp.zeros((tm, cout), jnp.float32)
    for t, (p_idx, off) in enumerate(taps):
        rows = phase_refs[p_idx][pl.ds(base + off, tm), :]
        acc = acc + jnp.dot(rows.astype(jnp.bfloat16), w_ref[t],
                            preferred_element_type=jnp.float32)
    o_ref[...] = (acc + b_ref[...]).astype(o_ref.dtype)


def _narrow_kernel(h_ref, o_ref, *, wp, wo, th):
    """Crop wide conv rows (ho*wp + wo) into the (th, Wo, C) output tile."""
    hb = pl.program_id(1) * th
    for i in range(th):
        o_ref[i] = h_ref[pl.ds((hb + i) * wp, wo), :]


def _narrow_add_kernel(h_ref, s_ref, o_ref, *, wp, wo, th, scale):
    """Crop wide conv rows and fuse the residual combine: out = h + scale*shortcut."""
    hb = pl.program_id(1) * th
    for i in range(th):
        h_rows = h_ref[pl.ds((hb + i) * wp, wo), :]
        s_rows = s_ref[pl.ds((hb + i) * wo, wo), :]
        o_ref[i] = h_rows + s_rows * scale


def _gn_swish_kernel(x_ref, g_ref, b_ref, cmap_ref, gmap_ref, o_ref, *,
                     inv_count, eps):
    """Fused GroupNorm(+affine)+Swish for one batch element, NHWC layout.

    x_ref: (HW, C).  Group reductions / broadcasts use one-hot matmuls
    cmap (C,G) / gmap (G,C) so channels stay on the lane dimension.
    """
    x = x_ref[...].astype(jnp.float32)                               # (HW, C)
    ch_sum = jnp.sum(x, axis=0, keepdims=True)                       # (1, C)
    mean_g = jnp.dot(ch_sum, cmap_ref[...],
                     preferred_element_type=jnp.float32) * inv_count  # (1, G)
    mean_c = jnp.dot(mean_g, gmap_ref[...],
                     preferred_element_type=jnp.float32)             # (1, C)
    d = x - mean_c
    sq_sum = jnp.sum(d * d, axis=0, keepdims=True)                   # (1, C)
    var_g = jnp.dot(sq_sum, cmap_ref[...],
                    preferred_element_type=jnp.float32) * inv_count  # (1, G)
    rstd_c = jnp.dot(jax.lax.rsqrt(var_g + eps), gmap_ref[...],
                     preferred_element_type=jnp.float32)             # (1, C)
    y = d * rstd_c * g_ref[...] + b_ref[...]
    o_ref[...] = (y * jax.nn.sigmoid(y)).astype(o_ref.dtype)         # Swish


# ----------------------------------------------------------------------------
# Pallas wrappers
# ----------------------------------------------------------------------------
def _conv_wide(x, wt, b, *, kh, kw, stride, pad):
    """Direct conv producing a 'wide' flat output (row index = ho*Wp + wo).

    x  : (N, H, W, Cin) f32 NHWC
    wt : (kh*kw, Cin, Cout) bf16 per-tap weights (tap order: di-major, dj-minor)
    b  : (Cout,) f32
    Returns (wide (N, n_m*tm, Cout) f32, (Ho, Wo, Wp)).
    """
    N, H, W, Cin = x.shape
    n_taps, _, Cout = wt.shape
    (pt, pb), (pleft, pr) = pad
    Hp, Wp = H + pt + pb, W + pleft + pr
    Ho = (Hp - kh) // stride + 1
    Wo = (Wp - kw) // stride + 1

    m_wide = Ho * Wp
    tm = min(512, _round_up(m_wide, 8))
    n_m = _cdiv(m_wide, tm)
    max_off = (kh - 1) * Wp + (kw - 1)
    L = n_m * tm + max_off // stride          # rows needed per polyphase

    xp = jnp.pad(x, ((0, 0), (pt, pb), (pleft, pr), (0, 0)))
    flat = xp.reshape(N, Hp * Wp, Cin)
    rows_needed = stride * L
    if rows_needed > flat.shape[1]:
        flat = jnp.pad(flat, ((0, 0), (0, rows_needed - flat.shape[1]), (0, 0)))
    phases = [flat[:, p::stride, :][:, :L, :] for p in range(stride)]

    taps = []
    for di in range(kh):
        for dj in range(kw):
            off = di * Wp + dj
            taps.append((off % stride, off // stride))
    taps = tuple(taps)

    in_specs = [pl.BlockSpec((None, L, Cin), lambda n, m: (n, 0, 0))
                for _ in range(stride)]
    in_specs.append(pl.BlockSpec((n_taps, Cin, Cout), lambda n, m: (0, 0, 0)))
    in_specs.append(pl.BlockSpec((1, Cout), lambda n, m: (0, 0)))

    wide = pl.pallas_call(
        functools.partial(_conv_taps_kernel, n_phase=stride, taps=taps,
                          tm=tm, cout=Cout),
        out_shape=jax.ShapeDtypeStruct((N, n_m * tm, Cout), jnp.float32),
        grid_spec=pltpu.PrefetchScalarGridSpec(
            num_scalar_prefetch=0,
            grid=(N, n_m),
            in_specs=in_specs,
            out_specs=pl.BlockSpec((None, tm, Cout), lambda n, m: (n, m, 0)),
        ),
        compiler_params=pltpu.CompilerParams(
            dimension_semantics=("parallel", "arbitrary")),
    )(*phases, wt, b.reshape(1, Cout))
    return wide, (Ho, Wo, Wp)


def _narrow(wide, Ho, Wo, Wp):
    """Crop the wide conv output back to NHWC (N, Ho, Wo, C)."""
    N, R, C = wide.shape
    th = 8 if Ho % 8 == 0 else Ho
    return pl.pallas_call(
        functools.partial(_narrow_kernel, wp=Wp, wo=Wo, th=th),
        out_shape=jax.ShapeDtypeStruct((N, Ho, Wo, C), jnp.float32),
        grid_spec=pltpu.PrefetchScalarGridSpec(
            num_scalar_prefetch=0,
            grid=(N, Ho // th),
            in_specs=[pl.BlockSpec((None, R, C), lambda n, m: (n, 0, 0))],
            out_specs=pl.BlockSpec((None, th, Wo, C), lambda n, m: (n, m, 0, 0)),
        ),
        compiler_params=pltpu.CompilerParams(
            dimension_semantics=("parallel", "arbitrary")),
    )(wide)


def _narrow_add(wide, sc_flat, Ho, Wo, Wp, scale):
    """Crop wide conv output and fuse the residual add with the shortcut."""
    N, R, C = wide.shape
    Rs = sc_flat.shape[1]
    th = 8 if Ho % 8 == 0 else Ho
    return pl.pallas_call(
        functools.partial(_narrow_add_kernel, wp=Wp, wo=Wo, th=th, scale=scale),
        out_shape=jax.ShapeDtypeStruct((N, Ho, Wo, C), jnp.float32),
        grid_spec=pltpu.PrefetchScalarGridSpec(
            num_scalar_prefetch=0,
            grid=(N, Ho // th),
            in_specs=[pl.BlockSpec((None, R, C), lambda n, m: (n, 0, 0)),
                      pl.BlockSpec((None, Rs, C), lambda n, m: (n, 0, 0))],
            out_specs=pl.BlockSpec((None, th, Wo, C), lambda n, m: (n, m, 0, 0)),
        ),
        compiler_params=pltpu.CompilerParams(
            dimension_semantics=("parallel", "arbitrary")),
    )(wide, sc_flat)


def conv2d(x, p, *, k, stride, pad):
    wide, (Ho, Wo, Wp) = _conv_wide(x, p['wt'], p['b'],
                                    kh=k, kw=k, stride=stride, pad=pad)
    return _narrow(wide, Ho, Wo, Wp)


def groupnorm_swish(x, p, n_groups, eps=1e-5):
    """GroupNorm(n_groups, C) + Swish, fused.  x is NHWC."""
    N, H, W, C = x.shape
    G = n_groups
    cpg = C // G
    HW = H * W
    xr = x.reshape(N, HW, C)
    cmap = (jnp.arange(C)[:, None] // cpg ==
            jnp.arange(G)[None, :]).astype(jnp.float32)      # (C, G) one-hot
    gmap = cmap.T                                            # (G, C)
    gamma = p['gamma'].reshape(1, C)
    beta = p['beta'].reshape(1, C)
    out = pl.pallas_call(
        functools.partial(_gn_swish_kernel, inv_count=1.0 / (HW * cpg), eps=eps),
        out_shape=jax.ShapeDtypeStruct((N, HW, C), jnp.float32),
        grid_spec=pltpu.PrefetchScalarGridSpec(
            num_scalar_prefetch=0,
            grid=(N,),
            in_specs=[pl.BlockSpec((None, HW, C), lambda n: (n, 0, 0)),
                      pl.BlockSpec((1, C), lambda n: (0, 0)),
                      pl.BlockSpec((1, C), lambda n: (0, 0)),
                      pl.BlockSpec((C, G), lambda n: (0, 0)),
                      pl.BlockSpec((G, C), lambda n: (0, 0))],
            out_specs=pl.BlockSpec((None, HW, C), lambda n: (n, 0, 0)),
        ),
        compiler_params=pltpu.CompilerParams(
            dimension_semantics=("parallel",)),
    )(xr, gamma, beta, cmap, gmap)
    return out.reshape(N, H, W, C)


def conv_transpose2d_s2(x, p):
    """ConvTranspose2d(C, C, 4, stride=2, padding=1) via 4-phase sub-pixel convs."""
    N, H, W, _ = x.shape
    outs = []
    for wt, pad in zip(p['wts'], p['pads']):
        wide, (Ho, Wo, Wp) = _conv_wide(x, wt, p['b'], kh=2, kw=2,
                                        stride=1, pad=pad)
        outs.append(_narrow(wide, Ho, Wo, Wp))               # (N, H, W, Cout)
    Cout = outs[0].shape[-1]
    ph = jnp.stack(outs, axis=0).reshape(2, 2, N, H, W, Cout)
    return ph.transpose(2, 3, 0, 4, 1, 5).reshape(N, 2 * H, 2 * W, Cout)


# ----------------------------------------------------------------------------
# Parameter initialization (deterministic, PyTorch-default-style uniform init)
# ----------------------------------------------------------------------------
def _conv_init(key, cin, cout, k):
    k1, k2 = jax.random.split(key)
    bound = 1.0 / math.sqrt(cin * k * k)
    w = jax.random.uniform(k1, (cout, cin, k, k), jnp.float32, -bound, bound)
    b = jax.random.uniform(k2, (cout,), jnp.float32, -bound, bound)
    # per-tap (di-major, dj-minor) bf16 matrices, prepared once at init
    wt = jnp.transpose(w, (2, 3, 1, 0)).reshape(k * k, cin, cout)
    return {'wt': wt.astype(jnp.bfloat16), 'b': b}


def _convT_init(key, cin, cout):
    k1, k2 = jax.random.split(key)
    bound = 1.0 / math.sqrt(cout * 16)
    w = jax.random.uniform(k1, (cin, cout, 4, 4), jnp.float32, -bound, bound)
    b = jax.random.uniform(k2, (cout,), jnp.float32, -bound, bound)
    # sub-pixel decomposition: output parity (a,b) <- 2x2 conv with kernel taps
    # ky/kx order per parity (derived from oy = 2*iy - 1 + ky).
    kmap = {0: (3, 1), 1: (2, 0)}
    wts, pads = [], []
    for a in (0, 1):
        for bb in (0, 1):
            taps = [w[:, :, kmap[a][dy], kmap[bb][dx]]
                    for dy in (0, 1) for dx in (0, 1)]
            wts.append(jnp.stack(taps, axis=0).astype(jnp.bfloat16))  # (4,Cin,Cout)
            pads.append(((1, 0) if a == 0 else (0, 1),
                         (1, 0) if bb == 0 else (0, 1)))
    return {'wts': wts, 'pads': pads, 'b': b}


def _gn_init(c):
    return {'gamma': jnp.ones((c,), jnp.float32),
            'beta': jnp.zeros((c,), jnp.float32)}


def _resblock_init(key, cin, cout):
    k1, k2, k3 = jax.random.split(key, 3)
    p = {'norm1': _gn_init(cin),
         'conv1': _conv_init(k1, cin, cout, 3),
         'norm2': _gn_init(cout),
         'conv2': _conv_init(k2, cout, cout, 3)}
    if cin != cout:
        p['shortcut'] = _conv_init(k3, cin, cout, 1)
    return p


def init_unet(key, image_channels=4, n_channels=64, ch_mults=(1, 2, 2, 2),
              is_attn=(False, False, False, False), n_blocks=(2, 2, 2, 8)):
    """Mirrors Unet.__init__ module-construction order exactly."""
    del is_attn  # attention blocks are commented out in the reference module
    keys = iter(jax.random.split(key, 512))
    n_res = len(ch_mults)
    params = {'image_proj': _conv_init(next(keys), image_channels, n_channels, 3)}

    down = []
    out_c = in_c = n_channels
    down.append(('downsample', _conv_init(next(keys), in_c, in_c, 3)))
    for i in range(n_res):
        out_c = in_c * ch_mults[i]
        for _ in range(n_blocks[i]):
            down.append(('res', _resblock_init(next(keys), in_c, out_c)))
            in_c = out_c
        if i < n_res - 1:
            down.append(('downsample', _conv_init(next(keys), in_c, in_c, 3)))
    params['down'] = down

    up = []
    in_c = out_c
    for i in reversed(range(n_res)):
        out_c = in_c
        for _ in range(n_blocks[i]):
            up.append(('res', _resblock_init(next(keys), in_c + out_c, out_c)))
        out_c = in_c // ch_mults[i]
        up.append(('res', _resblock_init(next(keys), in_c + out_c, out_c)))
        in_c = out_c
        up.append(('upsample', _convT_init(next(keys), in_c, in_c)))
    params['up'] = up

    params['norm'] = _gn_init(n_channels)       # GroupNorm(8, n_channels)
    params['final'] = _conv_init(next(keys), in_c, image_channels, 3)
    return params


# ----------------------------------------------------------------------------
# Forward pass
# ----------------------------------------------------------------------------
def residual_block(x, p, n_groups=32):
    N, H, W, Cin = x.shape
    h = groupnorm_swish(x, p['norm1'], n_groups)
    h = conv2d(h, p['conv1'], k=3, stride=1, pad=((1, 1), (1, 1)))
    h = groupnorm_swish(h, p['norm2'], n_groups)
    # dropout: identity (eval mode)
    wide, (Ho, Wo, Wp) = _conv_wide(h, p['conv2']['wt'], p['conv2']['b'],
                                    kh=3, kw=3, stride=1, pad=((1, 1), (1, 1)))
    if 'shortcut' in p:
        sc_wide, _ = _conv_wide(x, p['shortcut']['wt'], p['shortcut']['b'],
                                kh=1, kw=1, stride=1, pad=((0, 0), (0, 0)))
        sc_flat = sc_wide                    # 1x1 conv: wide row == ho*W + wo
    else:
        sc_flat = x.reshape(N, H * W, Cin)
    # out = h + shortcut(x) / sqrt(2), fused into the narrowing kernel
    return _narrow_add(wide, sc_flat, Ho, Wo, Wp, INV_SQRT2)


def unet_forward(params, x_nchw):
    x = jnp.transpose(x_nchw, (0, 2, 3, 1)).astype(jnp.float32)   # NHWC
    x = conv2d(x, params['image_proj'], k=3, stride=1, pad=((1, 1), (1, 1)))
    h = [x]
    for kind, p in params['down']:
        if kind == 'downsample':
            x = conv2d(x, p, k=3, stride=2, pad=((1, 1), (1, 1)))
        else:
            x = residual_block(x, p)
        h.append(x)
    for kind, p in params['up']:
        if kind == 'upsample':
            x = conv_transpose2d_s2(x, p)
        else:
            s = h.pop()
            x = jnp.concatenate([x, s], axis=-1)   # cat along channels (NHWC)
            x = residual_block(x, p)
    x = groupnorm_swish(x, params['norm'], n_groups=8)
    x = conv2d(x, params['final'], k=3, stride=1, pad=((1, 1), (1, 1)))
    return jnp.transpose(x, (0, 3, 1, 2))          # back to NCHW


# ----------------------------------------------------------------------------
if __name__ == "__main__":
    key = jax.random.PRNGKey(0)
    kp, kx = jax.random.split(key)

    # Small-but-valid configuration; channel counts stay multiples of 32 so the
    # hard-coded GroupNorm(32, .) inside ResidualBlock holds.
    params = init_unet(kp, image_channels=4, n_channels=32,
                       ch_mults=(1, 2, 2, 2),
                       is_attn=(False, False, False, False),
                       n_blocks=(1, 1, 1, 1))

    x = jax.random.normal(kx, (2, 4, 16, 16), jnp.float32)   # NCHW, PyTorch-style
    y = unet_forward(params, x)
    y = jax.block_until_ready(y)
    assert y.shape == (2, 4, 16, 16), y.shape
    assert bool(jnp.all(jnp.isfinite(y)))
    print("KERNEL_OK")
</pallas_src>

<mosaic_0001>
module attributes {stable_mosaic.version = 11 : i64} {
  func.func @_conv_taps_kernel(%arg0: i32, %arg1: i32, %arg2: memref<1x326x4xf32, #tpu.memory_space<vmem>>, %arg3: memref<9x4x32xbf16, #tpu.memory_space<vmem>>, %arg4: memref<1x32xf32, #tpu.memory_space<vmem>>, %arg5: memref<1x288x32xf32, #tpu.memory_space<vmem>>) attributes {dimension_semantics = [#tpu.dimension_semantics<parallel>, #tpu.dimension_semantics<arbitrary>], iteration_bounds = array<i64: 2, 1>, scalar_prefetch = 0 : i64, scratch_operands = 0 : i64, tpu.core_type = #tpu.core_type<tc>, window_params = [{transform_indices = @transform_0, window_bounds = array<i64: 1, 326, 4>}, {pipeline_mode = #tpu.pipeline_mode<synchronous>, transform_indices = @transform_1, window_bounds = array<i64: 9, 4, 32>}, {pipeline_mode = #tpu.pipeline_mode<synchronous>, transform_indices = @transform_2, window_bounds = array<i64: 1, 32>}, {transform_indices = @transform_3, window_bounds = array<i64: 1, 288, 32>}]} {
    %c288_i32 = arith.constant 288 : i32
    %0 = arith.muli %arg1, %c288_i32 : i32
    %1 = tpu.assume_multiple %0, 8 : i32
    %cst = arith.constant 0.000000e+00 : f32
    %2 = vector.broadcast %cst : f32 to vector<288x32xf32>
    %c0_i32 = arith.constant 0 : i32
    %3 = arith.addi %1, %c0_i32 : i32
    %c0 = arith.constant 0 : index
    %4 = arith.index_cast %3 : i32 to index
    %c0_0 = arith.constant 0 : index
    %5 = vector.load %arg2[%c0, %4, %c0_0] : memref<1x326x4xf32, #tpu.memory_space<vmem>>, vector<1x288x4xf32>
    %6 = vector.shape_cast %5 : vector<1x288x4xf32> to vector<288x4xf32>
    %7 = arith.truncf %6 : vector<288x4xf32> to vector<288x4xbf16>
    %c0_1 = arith.constant 0 : index
    %c0_2 = arith.constant 0 : index
    %c0_3 = arith.constant 0 : index
    %8 = vector.load %arg3[%c0_1, %c0_2, %c0_3] : memref<9x4x32xbf16, #tpu.memory_space<vmem>>, vector<1x4x32xbf16>
    %9 = vector.shape_cast %8 : vector<1x4x32xbf16> to vector<4x32xbf16>
    %cst_4 = arith.constant dense<0.000000e+00> : vector<288x32xf32>
    %10 = tpu.matmul %7, %9, %cst_4 {dimension_numbers = #tpu.dot_dimension_numbers<[1], [0], [0], [1], [0, 0, 1, 1], [], []>} : vector<288x4xbf16>, vector<4x32xbf16>, vector<288x32xf32> -> vector<288x32xf32>
    %11 = arith.addf %2, %10 : vector<288x32xf32>
    %c1_i32 = arith.constant 1 : i32
    %12 = arith.addi %1, %c1_i32 : i32
    %c0_5 = arith.constant 0 : index
    %13 = arith.index_cast %12 : i32 to index
    %c0_6 = arith.constant 0 : index
    %14 = vector.load %arg2[%c0_5, %13, %c0_6] : memref<1x326x4xf32, #tpu.memory_space<vmem>>, vector<1x288x4xf32>
    %15 = vector.shape_cast %14 : vector<1x288x4xf32> to vector<288x4xf32>
    %16 = arith.truncf %15 : vector<288x4xf32> to vector<288x4xbf16>
    %c1 = arith.constant 1 : index
    %c0_7 = arith.constant 0 : index
    %c0_8 = arith.constant 0 : index
    %17 = vector.load %arg3[%c1, %c0_7, %c0_8] : memref<9x4x32xbf16, #tpu.memory_space<vmem>>, vector<1x4x32xbf16>
    %18 = vector.shape_cast %17 : vector<1x4x32xbf16> to vector<4x32xbf16>
    %cst_9 = arith.constant dense<0.000000e+00> : vector<288x32xf32>
    %19 = tpu.matmul %16, %18, %cst_9 {dimension_numbers = #tpu.dot_dimension_numbers<[1], [0], [0], [1], [0, 0, 1, 1], [], []>} : vector<288x4xbf16>, vector<4x32xbf16>, vector<288x32xf32> -> vector<288x32xf32>
    %20 = arith.addf %11, %19 : vector<288x32xf32>
    %c2_i32 = arith.constant 2 : i32
    %21 = arith.addi %1, %c2_i32 : i32
    %c0_10 = arith.constant 0 : index
    %22 = arith.index_cast %21 : i32 to index
    %c0_11 = arith.constant 0 : index
    %23 = vector.load %arg2[%c0_10, %22, %c0_11] : memref<1x326x4xf32, #tpu.memory_space<vmem>>, vector<1x288x4xf32>
    %24 = vector.shape_cast %23 : vector<1x288x4xf32> to vector<288x4xf32>
    %25 = arith.truncf %24 : vector<288x4xf32> to vector<288x4xbf16>
    %c2 = arith.constant 2 : index
    %c0_12 = arith.constant 0 : index
    %c0_13 = arith.constant 0 : index
    %26 = vector.load %arg3[%c2, %c0_12, %c0_13] : memref<9x4x32xbf16, #tpu.memory_space<vmem>>, vector<1x4x32xbf16>
    %27 = vector.shape_cast %26 : vector<1x4x32xbf16> to vector<4x32xbf16>
    %cst_14 = arith.constant dense<0.000000e+00> : vector<288x32xf32>
    %28 = tpu.matmul %25, %27, %cst_14 {dimension_numbers = #tpu.dot_dimension_numbers<[1], [0], [0], [1], [0, 0, 1, 1], [], []>} : vector<288x4xbf16>, vector<4x32xbf16>, vector<288x32xf32> -> vector<288x32xf32>
    %29 = arith.addf %20, %28 : vector<288x32xf32>
    %c18_i32 = arith.constant 18 : i32
    %30 = arith.addi %1, %c18_i32 : i32
    %c0_15 = arith.constant 0 : index
    %31 = arith.index_cast %30 : i32 to index
    %c0_16 = arith.constant 0 : index
    %32 = vector.load %arg2[%c0_15, %31, %c0_16] : memref<1x326x4xf32, #tpu.memory_space<vmem>>, vector<1x288x4xf32>
    %33 = vector.shape_cast %32 : vector<1x288x4xf32> to vector<288x4xf32>
    %34 = arith.truncf %33 : vector<288x4xf32> to vector<288x4xbf16>
    %c3 = arith.constant 3 : index
    %c0_17 = arith.constant 0 : index
    %c0_18 = arith.constant 0 : index
    %35 = vector.load %arg3[%c3, %c0_17, %c0_18] : memref<9x4x32xbf16, #tpu.memory_space<vmem>>, vector<1x4x32xbf16>
    %36 = vector.shape_cast %35 : vector<1x4x32xbf16> to vector<4x32xbf16>
    %cst_19 = arith.constant dense<0.000000e+00> : vector<288x32xf32>
    %37 = tpu.matmul %34, %36, %cst_19 {dimension_numbers = #tpu.dot_dimension_numbers<[1], [0], [0], [1], [0, 0, 1, 1], [], []>} : vector<288x4xbf16>, vector<4x32xbf16>, vector<288x32xf32> -> vector<288x32xf32>
    %38 = arith.addf %29, %37 : vector<288x32xf32>
    %c19_i32 = arith.constant 19 : i32
    %39 = arith.addi %1, %c19_i32 : i32
    %c0_20 = arith.constant 0 : index
    %40 = arith.index_cast %39 : i32 to index
    %c0_21 = arith.constant 0 : index
    %41 = vector.load %arg2[%c0_20, %40, %c0_21] : memref<1x326x4xf32, #tpu.memory_space<vmem>>, vector<1x288x4xf32>
    %42 = vector.shape_cast %41 : vector<1x288x4xf32> to vector<288x4xf32>
    %43 = arith.truncf %42 : vector<288x4xf32> to vector<288x4xbf16>
    %c4 = arith.constant 4 : index
    %c0_22 = arith.constant 0 : index
    %c0_23 = arith.constant 0 : index
    %44 = vector.load %arg3[%c4, %c0_22, %c0_23] : memref<9x4x32xbf16, #tpu.memory_space<vmem>>, vector<1x4x32xbf16>
    %45 = vector.shape_cast %44 : vector<1x4x32xbf16> to vector<4x32xbf16>
    %cst_24 = arith.constant dense<0.000000e+00> : vector<288x32xf32>
    %46 = tpu.matmul %43, %45, %cst_24 {dimension_numbers = #tpu.dot_dimension_numbers<[1], [0], [0], [1], [0, 0, 1, 1], [], []>} : vector<288x4xbf16>, vector<4x32xbf16>, vector<288x32xf32> -> vector<288x32xf32>
    %47 = arith.addf %38, %46 : vector<288x32xf32>
    %c20_i32 = arith.constant 20 : i32
    %48 = arith.addi %1, %c20_i32 : i32
    %c0_25 = arith.constant 0 : index
    %49 = arith.index_cast %48 : i32 to index
    %c0_26 = arith.constant 0 : index
    %50 = vector.load %arg2[%c0_25, %49, %c0_26] : memref<1x326x4xf32, #tpu.memory_space<vmem>>, vector<1x288x4xf32>
    %51 = vector.shape_cast %50 : vector<1x288x4xf32> to vector<288x4xf32>
    %52 = arith.truncf %51 : vector<288x4xf32> to vector<288x4xbf16>
    %c5 = arith.constant 5 : index
    %c0_27 = arith.constant 0 : index
    %c0_28 = arith.constant 0 : index
    %53 = vector.load %arg3[%c5, %c0_27, %c0_28] : memref<9x4x32xbf16, #tpu.memory_space<vmem>>, vector<1x4x32xbf16>
    %54 = vector.shape_cast %53 : vector<1x4x32xbf16> to vector<4x32xbf16>
    %cst_29 = arith.constant dense<0.000000e+00> : vector<288x32xf32>
    %55 = tpu.matmul %52, %54, %cst_29 {dimension_numbers = #tpu.dot_dimension_numbers<[1], [0], [0], [1], [0, 0, 1, 1], [], []>} : vector<288x4xbf16>, vector<4x32xbf16>, vector<288x32xf32> -> vector<288x32xf32>
    %56 = arith.addf %47, %55 : vector<288x32xf32>
    %c36_i32 = arith.constant 36 : i32
    %57 = arith.addi %1, %c36_i32 : i32
    %c0_30 = arith.constant 0 : index
    %58 = arith.index_cast %57 : i32 to index
    %c0_31 = arith.constant 0 : index
    %59 = vector.load %arg2[%c0_30, %58, %c0_31] : memref<1x326x4xf32, #tpu.memory_space<vmem>>, vector<1x288x4xf32>
    %60 = vector.shape_cast %59 : vector<1x288x4xf32> to vector<288x4xf32>
    %61 = arith.truncf %60 : vector<288x4xf32> to vector<288x4xbf16>
    %c6 = arith.constant 6 : index
    %c0_32 = arith.constant 0 : index
    %c0_33 = arith.constant 0 : index
    %62 = vector.load %arg3[%c6, %c0_32, %c0_33] : memref<9x4x32xbf16, #tpu.memory_space<vmem>>, vector<1x4x32xbf16>
    %63 = vector.shape_cast %62 : vector<1x4x32xbf16> to vector<4x32xbf16>
    %cst_34 = arith.constant dense<0.000000e+00> : vector<288x32xf32>
    %64 = tpu.matmul %61, %63, %cst_34 {dimension_numbers = #tpu.dot_dimension_numbers<[1], [0], [0], [1], [0, 0, 1, 1], [], []>} : vector<288x4xbf16>, vector<4x32xbf16>, vector<288x32xf32> -> vector<288x32xf32>
    %65 = arith.addf %56, %64 : vector<288x32xf32>
    %c37_i32 = arith.constant 37 : i32
    %66 = arith.addi %1, %c37_i32 : i32
    %c0_35 = arith.constant 0 : index
    %67 = arith.index_cast %66 : i32 to index
    %c0_36 = arith.constant 0 : index
    %68 = vector.load %arg2[%c0_35, %67, %c0_36] : memref<1x326x4xf32, #tpu.memory_space<vmem>>, vector<1x288x4xf32>
    %69 = vector.shape_cast %68 : vector<1x288x4xf32> to vector<288x4xf32>
    %70 = arith.truncf %69 : vector<288x4xf32> to vector<288x4xbf16>
    %c7 = arith.constant 7 : index
    %c0_37 = arith.constant 0 : index
    %c0_38 = arith.constant 0 : index
    %71 = vector.load %arg3[%c7, %c0_37, %c0_38] : memref<9x4x32xbf16, #tpu.memory_space<vmem>>, vector<1x4x32xbf16>
    %72 = vector.shape_cast %71 : vector<1x4x32xbf16> to vector<4x32xbf16>
    %cst_39 = arith.constant dense<0.000000e+00> : vector<288x32xf32>
    %73 = tpu.matmul %70, %72, %cst_39 {dimension_numbers = #tpu.dot_dimension_numbers<[1], [0], [0], [1], [0, 0, 1, 1], [], []>} : vector<288x4xbf16>, vector<4x32xbf16>, vector<288x32xf32> -> vector<288x32xf32>
    %74 = arith.addf %65, %73 : vector<288x32xf32>
    %c38_i32 = arith.constant 38 : i32
    %75 = arith.addi %1, %c38_i32 : i32
    %c0_40 = arith.constant 0 : index
    %76 = arith.index_cast %75 : i32 to index
    %c0_41 = arith.constant 0 : index
    %77 = vector.load %arg2[%c0_40, %76, %c0_41] : memref<1x326x4xf32, #tpu.memory_space<vmem>>, vector<1x288x4xf32>
    %78 = vector.shape_cast %77 : vector<1x288x4xf32> to vector<288x4xf32>
    %79 = arith.truncf %78 : vector<288x4xf32> to vector<288x4xbf16>
    %c8 = arith.constant 8 : index
    %c0_42 = arith.constant 0 : index
    %c0_43 = arith.constant 0 : index
    %80 = vector.load %arg3[%c8, %c0_42, %c0_43] : memref<9x4x32xbf16, #tpu.memory_space<vmem>>, vector<1x4x32xbf16>
    %81 = vector.shape_cast %80 : vector<1x4x32xbf16> to vector<4x32xbf16>
    %cst_44 = arith.constant dense<0.000000e+00> : vector<288x32xf32>
    %82 = tpu.matmul %79, %81, %cst_44 {dimension_numbers = #tpu.dot_dimension_numbers<[1], [0], [0], [1], [0, 0, 1, 1], [], []>} : vector<288x4xbf16>, vector<4x32xbf16>, vector<288x32xf32> -> vector<288x32xf32>
    %83 = arith.addf %74, %82 : vector<288x32xf32>
    %c0_45 = arith.constant 0 : index
    %c0_46 = arith.constant 0 : index
    %84 = vector.load %arg4[%c0_45, %c0_46] : memref<1x32xf32, #tpu.memory_space<vmem>>, vector<1x32xf32>
    %85 = vector.broadcast %84 : vector<1x32xf32> to vector<288x32xf32>
    %86 = arith.addf %83, %85 : vector<288x32xf32>
    %c0_47 = arith.constant 0 : index
    %c0_48 = arith.constant 0 : index
    %c0_49 = arith.constant 0 : index
    %87 = vector.load %arg5[%c0_47, %c0_48, %c0_49] : memref<1x288x32xf32, #tpu.memory_space<vmem>>, vector<1x288x32xf32>
    %88 = vector.shape_cast %87 : vector<1x288x32xf32> to vector<288x32xf32>
    %89 = vector.shape_cast %86 : vector<288x32xf32> to vector<1x288x32xf32>
    tpu.vector_store %arg5[%c0_47, %c0_48, %c0_49], %89 {strides = array<i32>} : memref<1x288x32xf32, #tpu.memory_space<vmem>>, vector<1x288x32xf32>,
    return
  }
  func.func @transform_0(%arg0: i32, %arg1: i32) -> (i32, i32, i32) {
    %c0_i32 = arith.constant 0 : i32
    %c0_i32_0 = arith.constant 0 : i32
    %c0_i32_1 = arith.constant 0 : i32
    return %arg0, %c0_i32, %c0_i32_0 : i32, i32, i32
  }
  func.func @transform_1(%arg0: i32, %arg1: i32) -> (i32, i32, i32) {
    %c0_i32 = arith.constant 0 : i32
    %c0_i32_0 = arith.constant 0 : i32
    %c0_i32_1 = arith.constant 0 : i32
    %c0_i32_2 = arith.constant 0 : i32
    return %c0_i32, %c0_i32_0, %c0_i32_1 : i32, i32, i32
  }
  func.func @transform_2(%arg0: i32, %arg1: i32) -> (i32, i32) {
    %c0_i32 = arith.constant 0 : i32
    %c0_i32_0 = arith.constant 0 : i32
    %c0_i32_1 = arith.constant 0 : i32
    return %c0_i32, %c0_i32_0 : i32, i32
  }
  func.func @transform_3(%arg0: i32, %arg1: i32) -> (i32, i32, i32) {
    %c0_i32 = arith.constant 0 : i32
    %c0_i32_0 = arith.constant 0 : i32
    return %arg0, %arg1, %c0_i32 : i32, i32, i32
  }
}

</mosaic_0001>

<llo_original>
// kernel: tpu_custom_call.1
$region0: #{tpu_custom_call.1}
  #allocation0 [shape = 'u32[]', space=smem, size = 0x4, offset = 0x4, fixed_abs, tag = 'smem constant byte address 0x4 - core index']
  #allocation1 [shape = 'u32[144,128]{1,0:T(1,128)}', space=vmem, size = 0x12000, scoped, tag = 'internal scratch']
  %s0 = inlined_call_operand.vmem [shape: f32[2,326,4], index: 0, kind: input, shape index: {}]
  %s1 = inlined_call_operand.vmem [shape: bf16[9,4,32], index: 1, kind: input, shape index: {}]
  %s2 = inlined_call_operand.vmem [shape: f32[1,32], index: 2, kind: input, shape index: {}]
  %s3 = inlined_call_operand.vmem [shape: f32[2,288,32], index: 3, kind: output, shape index: {}]
  %s4 = sld [smem:[#allocation0]]
  $region45: #{tpu_custom_call.1} parent=0
    _
  %s6 = ssub.s32 1, %s4
  %s7 = scalar_select 0, %s6, %s4
  loop: start=0, step=1, limit=4
  $region2: #{tpu_custom_call.1} parent=0 // loop_pre_header
    _
  $region3: #{tpu_custom_call.1} parent=0 // loop_header
    %s9 = sphi 0, %s13
    %p10 = scmp.ge.s32.totalorder %s9, 4
    %s16 = sphi 0, %s28
    %s17 = sphi 0, %s24
    %s18 = sphi 0, %s16
    %s19 = sphi 0, %s17
    %s20 = sphi 0, %s18
    %s21 = sphi 0, %s19
    %s31 = sphi 0, %s33
    %s34 = sphi 0, %s31
    %s35 = sphi 0, %s34
    %s51 = sphi 0, %s35
    %s55 = sphi 0, %s55
    %s57 = sphi 0, %s55
    %s58 = sphi 0, %s57
    %s72 = sphi 0, %s58
    %s76 = sphi 0, %s76
    %s78 = sphi 0, %s76
    %s79 = sphi 0, %s78
    %s93 = sphi 0, %s79
    %s101 = sphi 0, %s103
    %s104 = sphi 0, %s101
    %s105 = sphi 0, %s104
    %s121 = sphi 0, %s105
  $region4: #{tpu_custom_call.1} parent=0 // loop_header_branch
    %12 = sbr.rel (%p10) target = $region8
  $region5: #{tpu_custom_call.1} parent=0 // loop_body
    %s14 = ssub.s32 %s9, 1
    %s15 = ssub.s32 %s9, 2
    %s22 = sadd.s32 1, %s17
    %p23 = scmp.ge.s32.totalorder %s22, 1
    %s24 = scalar_select %p23, 0, %s22
    %s25 = sadd.s32 1, %s16
    %s26 = scalar_select %p23, %s25, %s16
    %p27 = scmp.ge.s32.totalorder %s26, 2
    %s28 = scalar_select %p27, 0, %s26
    %s29 = ssub.s32 %s16, %s28
    %p30 = scmp.eq.s32.totalorder %s29, 0
    %s32 = sadd.s32 %s31, 1
    %s33 = scalar_select %p30, %s31, %s32
    %p36 = pneg %p30
    %p37 = scmp.eq.s32.totalorder %s9, 1
    %p38 = por %p36, %p37
    %p39 = scmp.ne.s32.totalorder %s31, %s34
    %p40 = scmp.eq.s32.totalorder %s9, 0
    %p41 = por %p39, %p40
    %p42 = scmp.ne.s32.totalorder %s31, %s34
    %p43 = scmp.eq.s32.totalorder %s14, 1
    %p44 = por %p42, %p43
    %p45 = scmp.ne.s32.totalorder %s34, %s35
    %p46 = scmp.eq.s32.totalorder %s14, 0
    %p47 = por %p45, %p46
    %p48 = scmp.ne.s32.totalorder %s34, %s35
    %p49 = scmp.eq.s32.totalorder %s15, 1
    %p50 = por %p48, %p49
    %p52 = scmp.ne.s32.totalorder %s35, %s51
    %p53 = scmp.eq.s32.totalorder %s15, 0
    %p54 = por %p52, %p53
    %s56 = sadd.s32 %s55, 1
    %p59 = scmp.eq.s32.totalorder %s9, 1
    %p60 = scmp.ne.s32.totalorder %s55, %s57
    %p61 = scmp.eq.s32.totalorder %s9, 0
    %p62 = por %p60, %p61
    %p63 = scmp.ne.s32.totalorder %s55, %s57
    %p64 = scmp.eq.s32.totalorder %s14, 1
    %p65 = por %p63, %p64
    %p66 = scmp.ne.s32.totalorder %s57, %s58
    %p67 = scmp.eq.s32.totalorder %s14, 0
    %p68 = por %p66, %p67
    %p69 = scmp.ne.s32.totalorder %s57, %s58
    %p70 = scmp.eq.s32.totalorder %s15, 1
    %p71 = por %p69, %p70
    %p73 = scmp.ne.s32.totalorder %s58, %s72
    %p74 = scmp.eq.s32.totalorder %s15, 0
    %p75 = por %p73, %p74
    %s77 = sadd.s32 %s76, 1
    %p80 = scmp.eq.s32.totalorder %s9, 1
    %p81 = scmp.ne.s32.totalorder %s76, %s78
    %p82 = scmp.eq.s32.totalorder %s9, 0
    %p83 = por %p81, %p82
    %p84 = scmp.ne.s32.totalorder %s76, %s78
    %p85 = scmp.eq.s32.totalorder %s14, 1
    %p86 = por %p84, %p85
    %p87 = scmp.ne.s32.totalorder %s78, %s79
    %p88 = scmp.eq.s32.totalorder %s14, 0
    %p89 = por %p87, %p88
    %p90 = scmp.ne.s32.totalorder %s78, %s79
    %p91 = scmp.eq.s32.totalorder %s15, 1
    %p92 = por %p90, %p91
    %p94 = scmp.ne.s32.totalorder %s79, %s93
    %p95 = scmp.eq.s32.totalorder %s15, 0
    %p96 = por %p94, %p95
    %s97 = ssub.s32 %s16, %s28
    %s98 = ssub.s32 %s17, %s24
    %s99 = sor.u32 %s97, %s98
    %p100 = scmp.eq.s32.totalorder %s99, 0
    %s102 = sadd.s32 %s101, 1
    %s103 = scalar_select %p100, %s101, %s102
    %p106 = pneg %p100
    %p107 = scmp.eq.s32.totalorder %s9, 1
    %p108 = por %p106, %p107
    %p109 = scmp.ne.s32.totalorder %s101, %s104
    %p110 = scmp.eq.s32.totalorder %s9, 0
    %p111 = por %p109, %p110
    %p112 = scmp.ne.s32.totalorder %s101, %s104
    %p113 = scmp.eq.s32.totalorder %s14, 1
    %p114 = por %p112, %p113
    %p115 = scmp.ne.s32.totalorder %s104, %s105
    %p116 = scmp.eq.s32.totalorder %s14, 0
    %p117 = por %p115, %p116
    %p118 = scmp.ne.s32.totalorder %s104, %s105
    %p119 = scmp.eq.s32.totalorder %s15, 1
    %p120 = por %p118, %p119
    %p122 = scmp.ne.s32.totalorder %s105, %s121
    %p123 = scmp.eq.s32.totalorder %s15, 0
    %p124 = por %p122, %p123
    %p125 = scmp.le.s32.totalorder 1, %s9
    %p126 = scmp.lt.s32.totalorder %s9, 3
    %p127 = pnand %p125, %p126
    %p128 = pneg %p127
    // Predicated region
    $region9: #{tpu_custom_call.1} parent=5 // pred_check
      _
    $region10: #{tpu_custom_call.1} parent=5 // pred_check_branch
      %130 = sbr.rel (%p127) target = $region12
    $region11: #{tpu_custom_call.1} parent=5 // pred_region
      %s131 = ssub.s32 %s9, 1
      // Predicated region
      $region13: #{tpu_custom_call.1} parent=11 // pred_check
        %p132 = pneg %p68
      $region14: #{tpu_custom_call.1} parent=11 // pred_check_branch
        %134 = sbr.rel (%p132) target = $region16
      $region15: #{tpu_custom_call.1} parent=11 // pred_region
        _
      $region16: #{tpu_custom_call.1} parent=11 // pred_fallthru
        _
      // Predicated region
      $region17: #{tpu_custom_call.1} parent=11 // pred_check
        %p135 = pneg %p89
      $region18: #{tpu_custom_call.1} parent=11 // pred_check_branch
        %137 = sbr.rel (%p135) target = $region20
      $region19: #{tpu_custom_call.1} parent=11 // pred_region
        _
      $region20: #{tpu_custom_call.1} parent=11 // pred_fallthru
        _
    $region12: #{tpu_custom_call.1} parent=5 // pred_fallthru
      _
    %p138 = scmp.lt.s32.totalorder %s9, 2
    // Predicated region
    $region21: #{tpu_custom_call.1} parent=5 // pred_check
      %p139 = pneg %p138
    $region22: #{tpu_custom_call.1} parent=5 // pred_check_branch
      %141 = sbr.rel (%p139) target = $region24
    $region23: #{tpu_custom_call.1} parent=5 // pred_region
      // Predicated region
      $region25: #{tpu_custom_call.1} parent=23 // pred_check
        %p142 = pneg %p41
      $region26: #{tpu_custom_call.1} parent=23 // pred_check_branch
        %144 = sbr.rel (%p142) target = $region28
      $region27: #{tpu_custom_call.1} parent=23 // pred_region
        %p145 = scmp.lt.s32.totalorder %s16, 1
        %s146 = scalar_select %p145, %s16, 1
        %s147 = smul.addr %s146, 41
        %s148 = smul.addr %s147, 8
        %s149 = scalar_lea.vmem %s0, %s148
      $region28: #{tpu_custom_call.1} parent=23 // pred_fallthru
        _
    $region24: #{tpu_custom_call.1} parent=5 // pred_fallthru
      _
    %p150 = scmp.le.s32.totalorder 1, %s9
    %p151 = scmp.lt.s32.totalorder %s9, 3
    %p152 = pnand %p150, %p151
    %p153 = pneg %p152
    // Predicated region
    $region29: #{tpu_custom_call.1} parent=5 // pred_check
      _
    $region30: #{tpu_custom_call.1} parent=5 // pred_check_branch
      %155 = sbr.rel (%p152) target = $region32
    $region31: #{tpu_custom_call.1} parent=5 // pred_region
      %s156 = ssub.s32 %s9, 1
      %p157 = scmp.lt.s32.totalorder %s18, 1
      %s158 = scalar_select %p157, %s18, 1
      %s159 = smul.addr %s158, 41
      %s160 = smul.addr %s159, 8
      %s161 = scalar_lea.vmem %s0, %s160
      %p162 = pneg %p47
      %p163 = pneg %p44
      %p164 = pneg %p68
      %p165 = pneg %p65
      %p166 = pneg %p89
      %p167 = pneg %p86
      %p168 = pneg %p117
      %p169 = pneg %p114
      %s170 = smul.u32 36, %s19
      %p171 = scmp.lt.s32.totalorder %s18, 1
      %s172 = scalar_select %p171, %s18, 1
      %p173 = scmp.lt.s32.totalorder %s170, 35
      %s174 = scalar_select %p173, %s170, 35
      %s175 = smul.addr %s172, 36
      %s176 = sadd.s32 %s174, %s175
      %s177 = smul.addr %s176, 8
      %s178 = scalar_lea.vmem %s3, %s177
      %p179 = scmp.lt.s32.totalorder %s18, 1
      %s180 = scalar_select %p179, %s18, 1
      %s181 = smul.addr %s180, 41
      %s182 = smul.addr %s181, 8
      %s183 = scalar_lea.vmem %s0, %s182
      %s184 = smul.u32 36, %s19
      %p185 = scmp.lt.s32.totalorder %s18, 1
      %s186 = scalar_select %p185, %s18, 1
      %p187 = scmp.lt.s32.totalorder %s184, 35
      %s188 = scalar_select %p187, %s184, 35
      %s189 = smul.addr %s186, 36
      %s190 = sadd.s32 %s188, %s189
      %s191 = smul.addr %s190, 8
      %s192 = scalar_lea.vmem %s3, %s191
      %s193 = smul.u32 36, %s19
      %s195 = smul.u32 %s19, 288
      %s196 = scalar_lea.vmem %s183, %s195
      %v197 = vld [vmem:[%s196] sm:$0xff]
      %v198 = vld [vmem:[%s196 + $0x8] sm:$0xff]
      %v199 = vld [vmem:[%s196 + $0x10] sm:$0xff]
      %v200 = vld [vmem:[%s196 + $0x18] sm:$0xff]
      %v201 = vld [vmem:[%s196 + $0x20] sm:$0xff]
      %v202 = vld [vmem:[%s196 + $0x28] sm:$0xff]
      %v203 = vld [vmem:[%s196 + $0x30] sm:$0xff]
      %v204 = vld [vmem:[%s196 + $0x38] sm:$0xff]
      %v205 = vld [vmem:[%s196 + $0x40] sm:$0xff]
      %v206 = vld [vmem:[%s196 + $0x48] sm:$0xff]
      %v207 = vld [vmem:[%s196 + $0x50] sm:$0xff]
      %v208 = vld [vmem:[%s196 + $0x58] sm:$0xff]
      %v209 = vld [vmem:[%s196 + $0x60] sm:$0xff]
      %v210 = vld [vmem:[%s196 + $0x68] sm:$0xff]
      %v211 = vld [vmem:[%s196 + $0x70] sm:$0xff]
      %v212 = vld [vmem:[%s196 + $0x78] sm:$0xff]
      %v213 = vld [vmem:[%s196 + $0x80] sm:$0xff]
      %v214 = vld [vmem:[%s196 + $0x88] sm:$0xff]
      %v215 = vld [vmem:[%s196 + $0x90] sm:$0xff]
      %v216 = vld [vmem:[%s196 + $0x98] sm:$0xff]
      %v217 = vld [vmem:[%s196 + $0xa0] sm:$0xff]
      %v218 = vld [vmem:[%s196 + $0xa8] sm:$0xff]
      %v219 = vld [vmem:[%s196 + $0xb0] sm:$0xff]
      %v220 = vld [vmem:[%s196 + $0xb8] sm:$0xff]
      %v221 = vld [vmem:[%s196 + $0xc0] sm:$0xff]
      %v222 = vld [vmem:[%s196 + $0xc8] sm:$0xff]
      %v223 = vld [vmem:[%s196 + $0xd0] sm:$0xff]
      %v224 = vld [vmem:[%s196 + $0xd8] sm:$0xff]
      %v225 = vld [vmem:[%s196 + $0xe0] sm:$0xff]
      %v226 = vld [vmem:[%s196 + $0xe8] sm:$0xff]
      %v227 = vld [vmem:[%s196 + $0xf0] sm:$0xff]
      %v228 = vld [vmem:[%s196 + $0xf8] sm:$0xff]
      %v229 = vld [vmem:[%s196 + $0x100] sm:$0xff]
      %v230 = vld [vmem:[%s196 + $0x108] sm:$0xff]
      %v231 = vld [vmem:[%s196 + $0x110] sm:$0xff]
      %v232 = vld [vmem:[%s196 + $0x118] sm:$0xff]
      %v233 = vpack.c.bf16 %v198, %v197
      %v234 = vpack.c.bf16 %v200, %v199
      %v235 = vpack.c.bf16 %v202, %v201
      %v236 = vpack.c.bf16 %v204, %v203
      %v237 = vpack.c.bf16 %v206, %v205
      %v238 = vpack.c.bf16 %v208, %v207
      %v239 = vpack.c.bf16 %v210, %v209
      %v240 = vpack.c.bf16 %v212, %v211
      %v241 = vpack.c.bf16 %v214, %v213
      %v242 = vpack.c.bf16 %v216, %v215
      %v243 = vpack.c.bf16 %v218, %v217
      %v244 = vpack.c.bf16 %v220, %v219
      %v245 = vpack.c.bf16 %v222, %v221
      %v246 = vpack.c.bf16 %v224, %v223
      %v247 = vpack.c.bf16 %v226, %v225
      %v248 = vpack.c.bf16 %v228, %v227
      %v249 = vpack.c.bf16 %v230, %v229
      %v250 = vpack.c.bf16 %v232, %v231
      %v251 = vld [vmem:[%s1] sm:$0x3]
      %s252 = sadd.s32 %s195, 1
      %s253 = scalar_lea.vmem %s183, %s252
      %v254 = vld [vmem:[%s253] sm:$0xff]
      %v255 = vld [vmem:[%s253 + $0x8] sm:$0xff]
      %v256 = vld [vmem:[%s253 + $0x10] sm:$0xff]
      %v257 = vld [vmem:[%s253 + $0x18] sm:$0xff]
      %v258 = vld [vmem:[%s253 + $0x20] sm:$0xff]
      %v259 = vld [vmem:[%s253 + $0x28] sm:$0xff]
      %v260 = vld [vmem:[%s253 + $0x30] sm:$0xff]
      %v261 = vld [vmem:[%s253 + $0x38] sm:$0xff]
      %v262 = vld [vmem:[%s253 + $0x40] sm:$0xff]
      %v263 = vld [vmem:[%s253 + $0x48] sm:$0xff]
      %v264 = vld [vmem:[%s253 + $0x50] sm:$0xff]
      %v265 = vld [vmem:[%s253 + $0x58] sm:$0xff]
      %v266 = vld [vmem:[%s253 + $0x60] sm:$0xff]
      %v267 = vld [vmem:[%s253 + $0x68] sm:$0xff]
      %v268 = vld [vmem:[%s253 + $0x70] sm:$0xff]
      %v269 = vld [vmem:[%s253 + $0x78] sm:$0xff]
      %v270 = vld [vmem:[%s253 + $0x80] sm:$0xff]
      %v271 = vld [vmem:[%s253 + $0x88] sm:$0xff]
      %v272 = vld [vmem:[%s253 + $0x90] sm:$0xff]
      %v273 = vld [vmem:[%s253 + $0x98] sm:$0xff]
      %v274 = vld [vmem:[%s253 + $0xa0] sm:$0xff]
      %v275 = vld [vmem:[%s253 + $0xa8] sm:$0xff]
      %v276 = vld [vmem:[%s253 + $0xb0] sm:$0xff]
      %v277 = vld [vmem:[%s253 + $0xb8] sm:$0xff]
      %v278 = vld [vmem:[%s253 + $0xc0] sm:$0xff]
      %v279 = vld [vmem:[%s253 + $0xc8] sm:$0xff]
      %v280 = vld [vmem:[%s253 + $0xd0] sm:$0xff]
      %v281 = vld [vmem:[%s253 + $0xd8] sm:$0xff]
      %v282 = vld [vmem:[%s253 + $0xe0] sm:$0xff]
      %v283 = vld [vmem:[%s253 + $0xe8] sm:$0xff]
      %v284 = vld [vmem:[%s253 + $0xf0] sm:$0xff]
      %v285 = vld [vmem:[%s253 + $0xf8] sm:$0xff]
      %v286 = vld [vmem:[%s253 + $0x100] sm:$0xff]
      %v287 = vld [vmem:[%s253 + $0x108] sm:$0xff]
      %v288 = vld [vmem:[%s253 + $0x110] sm:$0xff]
      %v289 = vld [vmem:[%s253 + $0x118] sm:$0xff]
      %v290 = vpack.c.bf16 %v255, %v254
      %v291 = vpack.c.bf16 %v257, %v256
      %v292 = vpack.c.bf16 %v259, %v258
      %v293 = vpack.c.bf16 %v261, %v260
      %v294 = vpack.c.bf16 %v263, %v262
      %v295 = vpack.c.bf16 %v265, %v264
      %v296 = vpack.c.bf16 %v267, %v266
      %v297 = vpack.c.bf16 %v269, %v268
      %v298 = vpack.c.bf16 %v271, %v270
      %v299 = vpack.c.bf16 %v273, %v272
      %v300 = vpack.c.bf16 %v275, %v274
      %v301 = vpack.c.bf16 %v277, %v276
      %v302 = vpack.c.bf16 %v279, %v278
      %v303 = vpack.c.bf16 %v281, %v280
      %v304 = vpack.c.bf16 %v283, %v282
      %v305 = vpack.c.bf16 %v285, %v284
      %v306 = vpack.c.bf16 %v287, %v286
      %v307 = vpack.c.bf16 %v289, %v288
      %s308 = scalar_lea.vmem %s1, 2
      %v309 = vld [vmem:[%s308] sm:$0x3]
      %vm310 = vcmask 31744
      %v312 = vsel %vm310, %v290, 0
      %v315 = vsel %vm310, %v291, 0
      %v318 = vsel %vm310, %v292, 0
      %v321 = vsel %vm310, %v293, 0
      %v324 = vsel %vm310, %v294, 0
      %v327 = vsel %vm310, %v295, 0
      %v330 = vsel %vm310, %v296, 0
      %v333 = vsel %vm310, %v297, 0
      %v336 = vsel %vm310, %v298, 0
      %v339 = vsel %vm310, %v299, 0
      %v342 = vsel %vm310, %v300, 0
      %v345 = vsel %vm310, %v301, 0
      %v348 = vsel %vm310, %v302, 0
      %v351 = vsel %vm310, %v303, 0
      %v354 = vsel %vm310, %v304, 0
      %v357 = vsel %vm310, %v305, 0
      %v360 = vsel %vm310, %v306, 0
      %v363 = vsel %vm310, %v307, 0
      %vm365 = vcmask 1041408
      %v367 = vsel %vm365, %v309, 0
      %369 = vmatprep.subr.bf16.mxu0 0
      %370 = vmatpush1.bf16.msra.mxu0 %v367
      %371 = vmatprep.subr.bf16.mxu0 0
      %372 = vmatpush1.bf16.msra.mxu0 0
      %373 = vmatprep.subr.bf16.mxu0 0
      %374 = vmatpush1.bf16.msra.mxu0 0
      %375 = vmatprep.subr.bf16.mxu0 0
      %376 = vmatpush1.bf16.msra.mxu0 0
      %377 = vmatprep.subr.bf16.mxu0 0
      %378 = vmatpush1.bf16.msra.mxu0 0
      %379 = vmatprep.subr.bf16.mxu0 0
      %380 = vmatpush1.bf16.msra.mxu0 0
      %381 = vmatprep.subr.bf16.mxu0 0
      %382 = vmatpush1.bf16.msra.mxu0 0
      %383 = vmatprep.subr.bf16.mxu0 0
      %384 = vmatpush1.bf16.msra.mxu0 0
      %385 = vmatprep.subr.bf16.mxu0 0
      %386 = vmatpush1.bf16.msra.mxu0 0
      %387 = vmatprep.subr.bf16.mxu0 0
      %388 = vmatpush1.bf16.msra.mxu0 0
      %389 = vmatprep.subr.bf16.mxu0 0
      %390 = vmatpush1.bf16.msra.mxu0 0
      %391 = vmatprep.subr.bf16.mxu0 0
      %392 = vmatpush1.bf16.msra.mxu0 0
      %393 = vmatprep.subr.bf16.mxu0 0
      %394 = vmatpush1.bf16.msra.mxu0 0
      %395 = vmatprep.subr.bf16.mxu0 0
      %396 = vmatpush1.bf16.msra.mxu0 0
      %397 = vmatprep.subr.bf16.mxu0 0
      %398 = vmatpush1.bf16.msra.mxu0 0
      %399 = vmatprep.subr.bf16.mxu0 0
      %400 = vmatpush1.bf16.msra.mxu0 0
      %401 = vmatprep.mubr.bf16.mxu0 0
      %402 = vmatmul.mubr.bf16.gmra.mrb[0].mxu0 %v312
      %v403 = vpop.f32.mrb[0].mxu0
      %v404 = vadd.f32 0.0, %v403
      %v405 = vpop.f32.mrb[0].mxu0
      %v406 = vpop.f32.mrb[0].mxu0
      %v407 = vadd.f32 0.0, %v406
      %v408 = vpop.f32.mrb[0].mxu0
      %409 = vmatprep.mubr.bf16.mxu0 0
      %410 = vmatmul.mubr.bf16.gmra.mrb[0].mxu0 %v315
      %v411 = vpop.f32.mrb[0].mxu0
      %v412 = vadd.f32 0.0, %v411
      %v413 = vpop.f32.mrb[0].mxu0
      %v414 = vpop.f32.mrb[0].mxu0
      %v415 = vadd.f32 0.0, %v414
      %v416 = vpop.f32.mrb[0].mxu0
      %417 = vmatprep.mubr.bf16.mxu0 0
      %418 = vmatmul.mubr.bf16.gmra.mrb[0].mxu0 %v318
      %v419 = vpop.f32.mrb[0].mxu0
      %v420 = vadd.f32 0.0, %v419
      %v421 = vpop.f32.mrb[0].mxu0
      %v422 = vpop.f32.mrb[0].mxu0
      %v423 = vadd.f32 0.0, %v422
      %v424 = vpop.f32.mrb[0].mxu0
      %425 = vmatprep.mubr.bf16.mxu0 0
      %426 = vmatmul.mubr.bf16.gmra.mrb[0].mxu0 %v321
      %v427 = vpop.f32.mrb[0].mxu0
      %v428 = vadd.f32 0.0, %v427
      %v429 = vpop.f32.mrb[0].mxu0
      %v430 = vpop.f32.mrb[0].mxu0
      %v431 = vadd.f32 0.0, %v430
      %v432 = vpop.f32.mrb[0].mxu0
      %433 = vmatprep.mubr.bf16.mxu0 0
      %434 = vmatmul.mubr.bf16.gmra.mrb[0].mxu0 %v324
      %v435 = vpop.f32.mrb[0].mxu0
      %v436 = vadd.f32 0.0, %v435
      %v437 = vpop.f32.mrb[0].mxu0
      %v438 = vpop.f32.mrb[0].mxu0
      %v439 = vadd.f32 0.0, %v438
      %v440 = vpop.f32.mrb[0].mxu0
      %441 = vmatprep.mubr.bf16.mxu0 0
      %442 = vmatmul.mubr.bf16.gmra.mrb[0].mxu0 %v327
      %v443 = vpop.f32.mrb[0].mxu0
      %v444 = vadd.f32 0.0, %v443
      %v445 = vpop.f32.mrb[0].mxu0
      %v446 = vpop.f32.mrb[0].mxu0
      %v447 = vadd.f32 0.0, %v446
      %v448 = vpop.f32.mrb[0].mxu0
      %449 = vmatprep.mubr.bf16.mxu0 0
      %450 = vmatmul.mubr.bf16.gmra.mrb[0].mxu0 %v330
      %v451 = vpop.f32.mrb[0].mxu0
      %v452 = vadd.f32 0.0, %v451
      %v453 = vpop.f32.mrb[0].mxu0
      %v454 = vpop.f32.mrb[0].mxu0
      %v455 = vadd.f32 0.0, %v454
      %v456 = vpop.f32.mrb[0].mxu0
      %457 = vmatprep.mubr.bf16.mxu0 0
      %458 = vmatmul.mubr.bf16.gmra.mrb[0].mxu0 %v333
      %v459 = vpop.f32.mrb[0].mxu0
      %v460 = vadd.f32 0.0, %v459
      %v461 = vpop.f32.mrb[0].mxu0
      %v462 = vpop.f32.mrb[0].mxu0
      %v463 = vadd.f32 0.0, %v462
      %v464 = vpop.f32.mrb[0].mxu0
      %465 = vmatprep.mubr.bf16.mxu0 0
      %466 = vmatmul.mubr.bf16.gmra.mrb[0].mxu0 %v336
      %v467 = vpop.f32.mrb[0].mxu0
      %v468 = vadd.f32 0.0, %v467
      %v469 = vpop.f32.mrb[0].mxu0
      %v470 = vpop.f32.mrb[0].mxu0
      %v471 = vadd.f32 0.0, %v470
      %v472 = vpop.f32.mrb[0].mxu0
      %473 = vmatprep.mubr.bf16.mxu0 0
      %474 = vmatmul.mubr.bf16.gmra.mrb[0].mxu0 %v339
      %v475 = vpop.f32.mrb[0].mxu0
      %v476 = vadd.f32 0.0, %v475
      %v477 = vpop.f32.mrb[0].mxu0
      %v478 = vpop.f32.mrb[0].mxu0
      %v479 = vadd.f32 0.0, %v478
      %v480 = vpop.f32.mrb[0].mxu0
      %481 = vmatprep.mubr.bf16.mxu0 0
      %482 = vmatmul.mubr.bf16.gmra.mrb[0].mxu0 %v342
      %v483 = vpop.f32.mrb[0].mxu0
      %v484 = vadd.f32 0.0, %v483
      %v485 = vpop.f32.mrb[0].mxu0
      %v486 = vpop.f32.mrb[0].mxu0
      %v487 = vadd.f32 0.0, %v486
      %v488 = vpop.f32.mrb[0].mxu0
      %489 = vmatprep.mubr.bf16.mxu0 0
      %490 = vmatmul.mubr.bf16.gmra.mrb[0].mxu0 %v345
      %v491 = vpop.f32.mrb[0].mxu0
      %v492 = vadd.f32 0.0, %v491
      %v493 = vpop.f32.mrb[0].mxu0
      %v494 = vpop.f32.mrb[0].mxu0
      %v495 = vadd.f32 0.0, %v494
      %v496 = vpop.f32.mrb[0].mxu0
      %497 = vmatprep.mubr.bf16.mxu0 0
      %498 = vmatmul.mubr.bf16.gmra.mrb[0].mxu0 %v348
      %v499 = vpop.f32.mrb[0].mxu0
      %v500 = vadd.f32 0.0, %v499
      %v501 = vpop.f32.mrb[0].mxu0
      %v502 = vpop.f32.mrb[0].mxu0
      %v503 = vadd.f32 0.0, %v502
      %v504 = vpop.f32.mrb[0].mxu0
      %505 = vmatprep.mubr.bf16.mxu0 0
      %506 = vmatmul.mubr.bf16.gmra.mrb[0].mxu0 %v351
      %v507 = vpop.f32.mrb[0].mxu0
      %v508 = vadd.f32 0.0, %v507
      %v509 = vpop.f32.mrb[0].mxu0
      %v510 = vpop.f32.mrb[0].mxu0
      %v511 = vadd.f32 0.0, %v510
      %v512 = vpop.f32.mrb[0].mxu0
      %513 = vmatprep.mubr.bf16.mxu0 0
      %514 = vmatmul.mubr.bf16.gmra.mrb[0].mxu0 %v354
      %v515 = vpop.f32.mrb[0].mxu0
      %v516 = vadd.f32 0.0, %v515
      %v517 = vpop.f32.mrb[0].mxu0
      %v518 = vpop.f32.mrb[0].mxu0
      %v519 = vadd.f32 0.0, %v518
      %v520 = vpop.f32.mrb[0].mxu0
      %521 = vmatprep.mubr.bf16.mxu0 0
      %522 = vmatmul.mubr.bf16.gmra.mrb[0].mxu0 %v357
      %v523 = vpop.f32.mrb[0].mxu0
      %v524 = vadd.f32 0.0, %v523
      %v525 = vpop.f32.mrb[0].mxu0
      %v526 = vpop.f32.mrb[0].mxu0
      %v527 = vadd.f32 0.0, %v526
      %v528 = vpop.f32.mrb[0].mxu0
      %529 = vmatprep.mubr.bf16.mxu0 0
      %530 = vmatmul.mubr.bf16.gmra.mrb[0].mxu0 %v360
      %v531 = vpop.f32.mrb[0].mxu0
      %v532 = vadd.f32 0.0, %v531
      %v533 = vpop.f32.mrb[0].mxu0
      %v534 = vpop.f32.mrb[0].mxu0
      %v535 = vadd.f32 0.0, %v534
      %v536 = vpop.f32.mrb[0].mxu0
      %537 = vmatprep.mubr.bf16.mxu0 0
      %538 = vmatmul.mubr.bf16.gmra.mrb[0].mxu0 %v363
      %v539 = vpop.f32.mrb[0].mxu0
      %v540 = vadd.f32 0.0, %v539
      %v541 = vpop.f32.mrb[0].mxu0
      %v542 = vpop.f32.mrb[0].mxu0
      %v543 = vadd.f32 0.0, %v542
      %v544 = vpop.f32.mrb[0].mxu0
      %545 = vdwg.mxu0
      %v547 = vsel %vm310, %v233, 0
      %v550 = vsel %vm310, %v234, 0
      %v553 = vsel %vm310, %v235, 0
      %v556 = vsel %vm310, %v236, 0
      %v559 = vsel %vm310, %v237, 0
      %v562 = vsel %vm310, %v238, 0
      %v565 = vsel %vm310, %v239, 0
      %v568 = vsel %vm310, %v240, 0
      %v571 = vsel %vm310, %v241, 0
      %v574 = vsel %vm310, %v242, 0
      %v577 = vsel %vm310, %v243, 0
      %v580 = vsel %vm310, %v244, 0
      %v583 = vsel %vm310, %v245, 0
      %v586 = vsel %vm310, %v246, 0
      %v589 = vsel %vm310, %v247, 0
      %v592 = vsel %vm310, %v248, 0
      %v595 = vsel %vm310, %v249, 0
      %v598 = vsel %vm310, %v250, 0
      %v601 = vsel %vm365, %v251, 0
      %603 = vmatprep.subr.bf16.mxu0 0
      %604 = vmatpush1.bf16.msra.mxu0 %v601
      %605 = vmatprep.subr.bf16.mxu0 0
      %606 = vmatpush1.bf16.msra.mxu0 0
      %607 = vmatprep.subr.bf16.mxu0 0
      %608 = vmatpush1.bf16.msra.mxu0 0
      %609 = vmatprep.subr.bf16.mxu0 0
      %610 = vmatpush1.bf16.msra.mxu0 0
      %611 = vmatprep.subr.bf16.mxu0 0
      %612 = vmatpush1.bf16.msra.mxu0 0
      %613 = vmatprep.subr.bf16.mxu0 0
      %614 = vmatpush1.bf16.msra.mxu0 0
      %615 = vmatprep.subr.bf16.mxu0 0
      %616 = vmatpush1.bf16.msra.mxu0 0
      %617 = vmatprep.subr.bf16.mxu0 0
      %618 = vmatpush1.bf16.msra.mxu0 0
      %619 = vmatprep.subr.bf16.mxu0 0
      %620 = vmatpush1.bf16.msra.mxu0 0
      %621 = vmatprep.subr.bf16.mxu0 0
      %622 = vmatpush1.bf16.msra.mxu0 0
      %623 = vmatprep.subr.bf16.mxu0 0
      %624 = vmatpush1.bf16.msra.mxu0 0
      %625 = vmatprep.subr.bf16.mxu0 0
      %626 = vmatpush1.bf16.msra.mxu0 0
      %627 = vmatprep.subr.bf16.mxu0 0
      %628 = vmatpush1.bf16.msra.mxu0 0
      %629 = vmatprep.subr.bf16.mxu0 0
      %630 = vmatpush1.bf16.msra.mxu0 0
      %631 = vmatprep.subr.bf16.mxu0 0
      %632 = vmatpush1.bf16.msra.mxu0 0
      %633 = vmatprep.subr.bf16.mxu0 0
      %634 = vmatpush1.bf16.msra.mxu0 0
      %635 = vmatprep.mubr.bf16.mxu0 0
      %636 = vmatmul.mubr.bf16.gmra.mrb[0].mxu0 %v547
      %v637 = vpop.f32.mrb[0].mxu0
      %v638 = vadd.f32 %v404, %v637
      %v639 = vpop.f32.mrb[0].mxu0
      %v640 = vpop.f32.mrb[0].mxu0
      %v641 = vadd.f32 %v407, %v640
      %v642 = vpop.f32.mrb[0].mxu0
      %643 = vmatprep.mubr.bf16.mxu0 0
      %644 = vmatmul.mubr.bf16.gmra.mrb[0].mxu0 %v550
      %v645 = vpop.f32.mrb[0].mxu0
      %v646 = vadd.f32 %v412, %v645
      %v647 = vpop.f32.mrb[0].mxu0
      %v648 = vpop.f32.mrb[0].mxu0
      %v649 = vadd.f32 %v415, %v648
      %v650 = vpop.f32.mrb[0].mxu0
      %651 = vmatprep.mubr.bf16.mxu0 0
      %652 = vmatmul.mubr.bf16.gmra.mrb[0].mxu0 %v553
      %v653 = vpop.f32.mrb[0].mxu0
      %v654 = vadd.f32 %v420, %v653
      %v655 = vpop.f32.mrb[0].mxu0
      %v656 = vpop.f32.mrb[0].mxu0
      %v657 = vadd.f32 %v423, %v656
      %v658 = vpop.f32.mrb[0].mxu0
      %659 = vmatprep.mubr.bf16.mxu0 0
      %660 = vmatmul.mubr.bf16.gmra.mrb[0].mxu0 %v556
      %v661 = vpop.f32.mrb[0].mxu0
      %v662 = vadd.f32 %v428, %v661
      %v663 = vpop.f32.mrb[0].mxu0
      %v664 = vpop.f32.mrb[0].mxu0
      %v665 = vadd.f32 %v431, %v664
      %v666 = vpop.f32.mrb[0].mxu0
      %667 = vmatprep.mubr.bf16.mxu0 0
      %668 = vmatmul.mubr.bf16.gmra.mrb[0].mxu0 %v559
      %v669 = vpop.f32.mrb[0].mxu0
      %v670 = vadd.f32 %v436, %v669
      %v671 = vpop.f32.mrb[0].mxu0
      %v672 = vpop.f32.mrb[0].mxu0
      %v673 = vadd.f32 %v439, %v672
      %v674 = vpop.f32.mrb[0].mxu0
      %675 = vmatprep.mubr.bf16.mxu0 0
      %676 = vmatmul.mubr.bf16.gmra.mrb[0].mxu0 %v562
      %v677 = vpop.f32.mrb[0].mxu0
      %v678 = vadd.f32 %v444, %v677
      %v679 = vpop.f32.mrb[0].mxu0
      %v680 = vpop.f32.mrb[0].mxu0
      %v681 = vadd.f32 %v447, %v680
      %v682 = vpop.f32.mrb[0].mxu0
      %683 = vmatprep.mubr.bf16.mxu0 0
      %684 = vmatmul.mubr.bf16.gmra.mrb[0].mxu0 %v565
      %v685 = vpop.f32.mrb[0].mxu0
      %v686 = vadd.f32 %v452, %v685
      %v687 = vpop.f32.mrb[0].mxu0
      %v688 = vpop.f32.mrb[0].mxu0
      %v689 = vadd.f32 %v455, %v688
      %v690 = vpop.f32.mrb[0].mxu0
      %691 = vmatprep.mubr.bf16.mxu0 0
      %692 = vmatmul.mubr.bf16.gmra.mrb[0].mxu0 %v568
      %v693 = vpop.f32.mrb[0].mxu0
      %v694 = vadd.f32 %v460, %v693
      %v695 = vpop.f32.mrb[0].mxu0
      %v696 = vpop.f32.mrb[0].mxu0
      %v697 = vadd.f32 %v463, %v696
      %v698 = vpop.f32.mrb[0].mxu0
      %699 = vmatprep.mubr.bf16.mxu0 0
      %700 = vmatmul.mubr.bf16.gmra.mrb[0].mxu0 %v571
      %v701 = vpop.f32.mrb[0].mxu0
      %v702 = vadd.f32 %v468, %v701
      %v703 = vpop.f32.mrb[0].mxu0
      %v704 = vpop.f32.mrb[0].mxu0
      %v705 = vadd.f32 %v471, %v704
      %v706 = vpop.f32.mrb[0].mxu0
      %707 = vmatprep.mubr.bf16.mxu0 0
      %708 = vmatmul.mubr.bf16.gmra.mrb[0].mxu0 %v574
      %v709 = vpop.f32.mrb[0].mxu0
      %v710 = vadd.f32 %v476, %v709
      %v711 = vpop.f32.mrb[0].mxu0
      %v712 = vpop.f32.mrb[0].mxu0
      %v713 = vadd.f32 %v479, %v712
      %v714 = vpop.f32.mrb[0].mxu0
      %715 = vmatprep.mubr.bf16.mxu0 0
      %716 = vmatmul.mubr.bf16.gmra.mrb[0].mxu0 %v577
      %v717 = vpop.f32.mrb[0].mxu0
      %v718 = vadd.f32 %v484, %v717
      %v719 = vpop.f32.mrb[0].mxu0
      %v720 = vpop.f32.mrb[0].mxu0
      %v721 = vadd.f32 %v487, %v720
      %v722 = vpop.f32.mrb[0].mxu0
      %723 = vmatprep.mubr.bf16.mxu0 0
      %724 = vmatmul.mubr.bf16.gmra.mrb[0].mxu0 %v580
      %v725 = vpop.f32.mrb[0].mxu0
      %v726 = vadd.f32 %v492, %v725
      %v727 = vpop.f32.mrb[0].mxu0
      %v728 = vpop.f32.mrb[0].mxu0
      %v729 = vadd.f32 %v495, %v728
      %v730 = vpop.f32.mrb[0].mxu0
      %731 = vmatprep.mubr.bf16.mxu0 0
      %732 = vmatmul.mubr.bf16.gmra.mrb[0].mxu0 %v583
      %v733 = vpop.f32.mrb[0].mxu0
      %v734 = vadd.f32 %v500, %v733
      %v735 = vpop.f32.mrb[0].mxu0
      %v736 = vpop.f32.mrb[0].mxu0
      %v737 = vadd.f32 %v503, %v736
      %v738 = vpop.f32.mrb[0].mxu0
      %739 = vmatprep.mubr.bf16.mxu0 0
      %740 = vmatmul.mubr.bf16.gmra.mrb[0].mxu0 %v586
      %v741 = vpop.f32.mrb[0].mxu0
      %v742 = vadd.f32 %v508, %v741
      %v743 = vpop.f32.mrb[0].mxu0
      %v744 = vpop.f32.mrb[0].mxu0
      %v745 = vadd.f32 %v511, %v744
      %v746 = vpop.f32.mrb[0].mxu0
      %747 = vmatprep.mubr.bf16.mxu0 0
      %748 = vmatmul.mubr.bf16.gmra.mrb[0].mxu0 %v589
      %v749 = vpop.f32.mrb[0].mxu0
      %v750 = vadd.f32 %v516, %v749
      %v751 = vpop.f32.mrb[0].mxu0
      %v752 = vpop.f32.mrb[0].mxu0
      %v753 = vadd.f32 %v519, %v752
      %v754 = vpop.f32.mrb[0].mxu0
      %755 = vmatprep.mubr.bf16.mxu0 0
      %756 = vmatmul.mubr.bf16.gmra.mrb[0].mxu0 %v592
      %v757 = vpop.f32.mrb[0].mxu0
      %v758 = vadd.f32 %v524, %v757
      %v759 = vpop.f32.mrb[0].mxu0
      %v760 = vpop.f32.mrb[0].mxu0
      %v761 = vadd.f32 %v527, %v760
      %v762 = vpop.f32.mrb[0].mxu0
      %763 = vmatprep.mubr.bf16.mxu0 0
      %764 = vmatmul.mubr.bf16.gmra.mrb[0].mxu0 %v595
      %v765 = vpop.f32.mrb[0].mxu0
      %v766 = vadd.f32 %v532, %v765
      %v767 = vpop.f32.mrb[0].mxu0
      %v768 = vpop.f32.mrb[0].mxu0
      %v769 = vadd.f32 %v535, %v768
      %v770 = vpop.f32.mrb[0].mxu0
      %771 = vmatprep.mubr.bf16.mxu0 0
      %772 = vmatmul.mubr.bf16.gmra.mrb[0].mxu0 %v598
      %v773 = vpop.f32.mrb[0].mxu0
      %v774 = vadd.f32 %v540, %v773
      %v775 = vpop.f32.mrb[0].mxu0
      %v776 = vpop.f32.mrb[0].mxu0
      %v777 = vadd.f32 %v543, %v776
      %v778 = vpop.f32.mrb[0].mxu0
      %779 = vdwg.mxu0
      %s780 = sadd.s32 %s195, 2
      %s781 = scalar_lea.vmem %s183, %s780
      %v782 = vld [vmem:[%s781] sm:$0xff]
      %v783 = vld [vmem:[%s781 + $0x8] sm:$0xff]
      %v784 = vld [vmem:[%s781 + $0x10] sm:$0xff]
      %v785 = vld [vmem:[%s781 + $0x18] sm:$0xff]
      %v786 = vld [vmem:[%s781 + $0x20] sm:$0xff]
      %v787 = vld [vmem:[%s781 + $0x28] sm:$0xff]
      %v788 = vld [vmem:[%s781 + $0x30] sm:$0xff]
      %v789 = vld [vmem:[%s781 + $0x38] sm:$0xff]
      %v790 = vld [vmem:[%s781 + $0x40] sm:$0xff]
      %v791 = vld [vmem:[%s781 + $0x48] sm:$0xff]
      %v792 = vld [vmem:[%s781 + $0x50] sm:$0xff]
      %v793 = vld [vmem:[%s781 + $0x58] sm:$0xff]
      %v794 = vld [vmem:[%s781 + $0x60] sm:$0xff]
      %v795 = vld [vmem:[%s781 + $0x68] sm:$0xff]
      %v796 = vld [vmem:[%s781 + $0x70] sm:$0xff]
      %v797 = vld [vmem:[%s781 + $0x78] sm:$0xff]
      %v798 = vld [vmem:[%s781 + $0x80] sm:$0xff]
      %v799 = vld [vmem:[%s781 + $0x88] sm:$0xff]
      %v800 = vld [vmem:[%s781 + $0x90] sm:$0xff]
      %v801 = vld [vmem:[%s781 + $0x98] sm:$0xff]
      %v802 = vld [vmem:[%s781 + $0xa0] sm:$0xff]
      %v803 = vld [vmem:[%s781 + $0xa8] sm:$0xff]
      %v804 = vld [vmem:[%s781 + $0xb0] sm:$0xff]
      %v805 = vld [vmem:[%s781 + $0xb8] sm:$0xff]
      %v806 = vld [vmem:[%s781 + $0xc0] sm:$0xff]
      %v807 = vld [vmem:[%s781 + $0xc8] sm:$0xff]
      %v808 = vld [vmem:[%s781 + $0xd0] sm:$0xff]
      %v809 = vld [vmem:[%s781 + $0xd8] sm:$0xff]
      %v810 = vld [vmem:[%s781 + $0xe0] sm:$0xff]
      %v811 = vld [vmem:[%s781 + $0xe8] sm:$0xff]
      %v812 = vld [vmem:[%s781 + $0xf0] sm:$0xff]
      %v813 = vld [vmem:[%s781 + $0xf8] sm:$0xff]
      %v814 = vld [vmem:[%s781 + $0x100] sm:$0xff]
      %v815 = vld [vmem:[%s781 + $0x108] sm:$0xff]
      %v816 = vld [vmem:[%s781 + $0x110] sm:$0xff]
      %v817 = vld [vmem:[%s781 + $0x118] sm:$0xff]
      %v818 = vpack.c.bf16 %v783, %v782
      %v819 = vpack.c.bf16 %v785, %v784
      %v820 = vpack.c.bf16 %v787, %v786
      %v821 = vpack.c.bf16 %v789, %v788
      %v822 = vpack.c.bf16 %v791, %v790
      %v823 = vpack.c.bf16 %v793, %v792
      %v824 = vpack.c.bf16 %v795, %v794
      %v825 = vpack.c.bf16 %v797, %v796
      %v826 = vpack.c.bf16 %v799, %v798
      %v827 = vpack.c.bf16 %v801, %v800
      %v828 = vpack.c.bf16 %v803, %v802
      %v829 = vpack.c.bf16 %v805, %v804
      %v830 = vpack.c.bf16 %v807, %v806
      %v831 = vpack.c.bf16 %v809, %v808
      %v832 = vpack.c.bf16 %v811, %v810
      %v833 = vpack.c.bf16 %v813, %v812
      %v834 = vpack.c.bf16 %v815, %v814
      %v835 = vpack.c.bf16 %v817, %v816
      %s836 = scalar_lea.vmem %s1, 4
      %v837 = vld [vmem:[%s836] sm:$0x3]
      %v839 = vsel %vm310, %v818, 0
      %v842 = vsel %vm310, %v819, 0
      %v845 = vsel %vm310, %v820, 0
      %v848 = vsel %vm310, %v821, 0
      %v851 = vsel %vm310, %v822, 0
      %v854 = vsel %vm310, %v823, 0
      %v857 = vsel %vm310, %v824, 0
      %v860 = vsel %vm310, %v825, 0
      %v863 = vsel %vm310, %v826, 0
      %v866 = vsel %vm310, %v827, 0
      %v869 = vsel %vm310, %v828, 0
      %v872 = vsel %vm310, %v829, 0
      %v875 = vsel %vm310, %v830, 0
      %v878 = vsel %vm310, %v831, 0
      %v881 = vsel %vm310, %v832, 0
      %v884 = vsel %vm310, %v833, 0
      %v887 = vsel %vm310, %v834, 0
      %v890 = vsel %vm310, %v835, 0
      %v893 = vsel %vm365, %v837, 0
      %895 = vmatprep.subr.bf16.mxu0 0
      %896 = vmatpush1.bf16.msra.mxu0 %v893
      %897 = vmatprep.subr.bf16.mxu0 0
      %898 = vmatpush1.bf16.msra.mxu0 0
      %899 = vmatprep.subr.bf16.mxu0 0
      %900 = vmatpush1.bf16.msra.mxu0 0
      %901 = vmatprep.subr.bf16.mxu0 0
      %902 = vmatpush1.bf16.msra.mxu0 0
      %903 = vmatprep.subr.bf16.mxu0 0
      %904 = vmatpush1.bf16.msra.mxu0 0
      %905 = vmatprep.subr.bf16.mxu0 0
      %906 = vmatpush1.bf16.msra.mxu0 0
      %907 = vmatprep.subr.bf16.mxu0 0
      %908 = vmatpush1.bf16.msra.mxu0 0
      %909 = vmatprep.subr.bf16.mxu0 0
      %910 = vmatpush1.bf16.msra.mxu0 0
      %911 = vmatprep.subr.bf16.mxu0 0
      %912 = vmatpush1.bf16.msra.mxu0 0
      %913 = vmatprep.subr.bf16.mxu0 0
      %914 = vmatpush1.bf16.msra.mxu0 0
      %915 = vmatprep.subr.bf16.mxu0 0
      %916 = vmatpush1.bf16.msra.mxu0 0
      %917 = vmatprep.subr.bf16.mxu0 0
      %918 = vmatpush1.bf16.msra.mxu0 0
      %919 = vmatprep.subr.bf16.mxu0 0
      %920 = vmatpush1.bf16.msra.mxu0 0
      %921 = vmatprep.subr.bf16.mxu0 0
      %922 = vmatpush1.bf16.msra.mxu0 0
      %923 = vmatprep.subr.bf16.mxu0 0
      %924 = vmatpush1.bf16.msra.mxu0 0
      %925 = vmatprep.subr.bf16.mxu0 0
      %926 = vmatpush1.bf16.msra.mxu0 0
      %927 = vmatprep.mubr.bf16.mxu0 0
      %928 = vmatmul.mubr.bf16.gmra.mrb[0].mxu0 %v839
      %v929 = vpop.f32.mrb[0].mxu0
      %v930 = vadd.f32 0.0, %v929
      %v931 = vpop.f32.mrb[0].mxu0
      %v932 = vpop.f32.mrb[0].mxu0
      %v933 = vadd.f32 0.0, %v932
      %v934 = vpop.f32.mrb[0].mxu0
      %935 = vmatprep.mubr.bf16.mxu0 0
      %936 = vmatmul.mubr.bf16.gmra.mrb[0].mxu0 %v842
      %v937 = vpop.f32.mrb[0].mxu0
      %v938 = vadd.f32 0.0, %v937
      %v939 = vpop.f32.mrb[0].mxu0
      %v940 = vpop.f32.mrb[0].mxu0
      %v941 = vadd.f32 0.0, %v940
      %v942 = vpop.f32.mrb[0].mxu0
      %943 = vmatprep.mubr.bf16.mxu0 0
      %944 = vmatmul.mubr.bf16.gmra.mrb[0].mxu0 %v845
      %v945 = vpop.f32.mrb[0].mxu0
      %v946 = vadd.f32 0.0, %v945
      %v947 = vpop.f32.mrb[0].mxu0
      %v948 = vpop.f32.mrb[0].mxu0
      %v949 = vadd.f32 0.0, %v948
      %v950 = vpop.f32.mrb[0].mxu0
      %951 = vmatprep.mubr.bf16.mxu0 0
      %952 = vmatmul.mubr.bf16.gmra.mrb[0].mxu0 %v848
      %v953 = vpop.f32.mrb[0].mxu0
      %v954 = vadd.f32 0.0, %v953
      %v955 = vpop.f32.mrb[0].mxu0
      %v956 = vpop.f32.mrb[0].mxu0
      %v957 = vadd.f32 0.0, %v956
      %v958 = vpop.f32.mrb[0].mxu0
      %959 = vmatprep.mubr.bf16.mxu0 0
      %960 = vmatmul.mubr.bf16.gmra.mrb[0].mxu0 %v851
      %v961 = vpop.f32.mrb[0].mxu0
      %v962 = vadd.f32 0.0, %v961
      %v963 = vpop.f32.mrb[0].mxu0
      %v964 = vpop.f32.mrb[0].mxu0
      %v965 = vadd.f32 0.0, %v964
      %v966 = vpop.f32.mrb[0].mxu0
      %967 = vmatprep.mubr.bf16.mxu0 0
      %968 = vmatmul.mubr.bf16.gmra.mrb[0].mxu0 %v854
      %v969 = vpop.f32.mrb[0].mxu0
      %v970 = vadd.f32 0.0, %v969
      %v971 = vpop.f32.mrb[0].mxu0
      %v972 = vpop.f32.mrb[0].mxu0
      %v973 = vadd.f32 0.0, %v972
      %v974 = vpop.f32.mrb[0].mxu0
      %975 = vmatprep.mubr.bf16.mxu0 0
      %976 = vmatmul.mubr.bf16.gmra.mrb[0].mxu0 %v857
      %v977 = vpop.f32.mrb[0].mxu0
      %v978 = vadd.f32 0.0, %v977
      %v979 = vpop.f32.mrb[0].mxu0
      %v980 = vpop.f32.mrb[0].mxu0
      %v981 = vadd.f32 0.0, %v980
      %v982 = vpop.f32.mrb[0].mxu0
      %983 = vmatprep.mubr.bf16.mxu0 0
      %984 = vmatmul.mubr.bf16.gmra.mrb[0].mxu0 %v860
      %v985 = vpop.f32.mrb[0].mxu0
      %v986 = vadd.f32 0.0, %v985
      %v987 = vpop.f32.mrb[0].mxu0
      %v988 = vpop.f32.mrb[0].mxu0
      %v989 = vadd.f32 0.0, %v988
      %v990 = vpop.f32.mrb[0].mxu0
      %991 = vmatprep.mubr.bf16.mxu0 0
      %992 = vmatmul.mubr.bf16.gmra.mrb[0].mxu0 %v863
      %v993 = vpop.f32.mrb[0].mxu0
      %v994 = vadd.f32 0.0, %v993
      %v995 = vpop.f32.mrb[0].mxu0
      %v996 = vpop.f32.mrb[0].mxu0
      %v997 = vadd.f32 0.0, %v996
      %v998 = vpop.f32.mrb[0].mxu0
      %999 = vmatprep.mubr.bf16.mxu0 0
      %1000 = vmatmul.mubr.bf16.gmra.mrb[0].mxu0 %v866
      %v1001 = vpop.f32.mrb[0].mxu0
      %v1002 = vadd.f32 0.0, %v1001
      %v1003 = vpop.f32.mrb[0].mxu0
      %v1004 = vpop.f32.mrb[0].mxu0
      %v1005 = vadd.f32 0.0, %v1004
      %v1006 = vpop.f32.mrb[0].mxu0
      %1007 = vmatprep.mubr.bf16.mxu0 0
      %1008 = vmatmul.mubr.bf16.gmra.mrb[0].mxu0 %v869
      %v1009 = vpop.f32.mrb[0].mxu0
      %v1010 = vadd.f32 0.0, %v1009
      %v1011 = vpop.f32.mrb[0].mxu0
      %v1012 = vpop.f32.mrb[0].mxu0
      %v1013 = vadd.f32 0.0, %v1012
      %v1014 = vpop.f32.mrb[0].mxu0
      %1015 = vmatprep.mubr.bf16.mxu0 0
      %1016 = vmatmul.mubr.bf16.gmra.mrb[0].mxu0 %v872
      %v1017 = vpop.f32.mrb[0].mxu0
      %v1018 = vadd.f32 0.0, %v1017
      %v1019 = vpop.f32.mrb[0].mxu0
      %v1020 = vpop.f32.mrb[0].mxu0
      %v1021 = vadd.f32 0.0, %v1020
      %v1022 = vpop.f32.mrb[0].mxu0
      %1023 = vmatprep.mubr.bf16.mxu0 0
      %1024 = vmatmul.mubr.bf16.gmra.mrb[0].mxu0 %v875
      %v1025 = vpop.f32.mrb[0].mxu0
      %v1026 = vadd.f32 0.0, %v1025
      %v1027 = vpop.f32.mrb[0].mxu0
      %v1028 = vpop.f32.mrb[0].mxu0
      %v1029 = vadd.f32 0.0, %v1028
      %v1030 = vpop.f32.mrb[0].mxu0
      %1031 = vmatprep.mubr.bf16.mxu0 0
      %1032 = vmatmul.mubr.bf16.gmra.mrb[0].mxu0 %v878
      %v1033 = vpop.f32.mrb[0].mxu0
      %v1034 = vadd.f32 0.0, %v1033
      %v1035 = vpop.f32.mrb[0].mxu0
      %v1036 = vpop.f32.mrb[0].mxu0
      %v1037 = vadd.f32 0.0, %v1036
      %v1038 = vpop.f32.mrb[0].mxu0
      %1039 = vmatprep.mubr.bf16.mxu0 0
      %1040 = vmatmul.mubr.bf16.gmra.mrb[0].mxu0 %v881
      %v1041 = vpop.f32.mrb[0].mxu0
      %v1042 = vadd.f32 0.0, %v1041
      %v1043 = vpop.f32.mrb[0].mxu0
      %v1044 = vpop.f32.mrb[0].mxu0
      %v1045 = vadd.f32 0.0, %v1044
      %v1046 = vpop.f32.mrb[0].mxu0
      %1047 = vmatprep.mubr.bf16.mxu0 0
      %1048 = vmatmul.mubr.bf16.gmra.mrb[0].mxu0 %v884
      %v1049 = vpop.f32.mrb[0].mxu0
      %v1050 = vadd.f32 0.0, %v1049
      %v1051 = vpop.f32.mrb[0].mxu0
      %v1052 = vpop.f32.mrb[0].mxu0
      %v1053 = vadd.f32 0.0, %v1052
      %v1054 = vpop.f32.mrb[0].mxu0
      %1055 = vmatprep.mubr.bf16.mxu0 0
      %1056 = vmatmul.mubr.bf16.gmra.mrb[0].mxu0 %v887
      %v1057 = vpop.f32.mrb[0].mxu0
      %v1058 = vadd.f32 0.0, %v1057
      %v1059 = vpop.f32.mrb[0].mxu0
      %v1060 = vpop.f32.mrb[0].mxu0
      %v1061 = vadd.f32 0.0, %v1060
      %v1062 = vpop.f32.mrb[0].mxu0
      %1063 = vmatprep.mubr.bf16.mxu0 0
      %1064 = vmatmul.mubr.bf16.gmra.mrb[0].mxu0 %v890
      %v1065 = vpop.f32.mrb[0].mxu0
      %v1066 = vadd.f32 0.0, %v1065
      %v1067 = vpop.f32.mrb[0].mxu0
      %v1068 = vpop.f32.mrb[0].mxu0
      %v1069 = vadd.f32 0.0, %v1068
      %v1070 = vpop.f32.mrb[0].mxu0
      %1071 = vdwg.mxu0
      %v1072 = vadd.f32 %v638, %v930
      %v1073 = vadd.f32 %v641, %v933
      %v1074 = vadd.f32 %v646, %v938
      %v1075 = vadd.f32 %v649, %v941
      %v1076 = vadd.f32 %v654, %v946
      %v1077 = vadd.f32 %v657, %v949
      %v1078 = vadd.f32 %v662, %v954
      %v1079 = vadd.f32 %v665, %v957
      %v1080 = vadd.f32 %v670, %v962
      %v1081 = vadd.f32 %v673, %v965
      %v1082 = vadd.f32 %v678, %v970
      %v1083 = vadd.f32 %v681, %v973
      %v1084 = vadd.f32 %v686, %v978
      %v1085 = vadd.f32 %v689, %v981
      %v1086 = vadd.f32 %v694, %v986
      %v1087 = vadd.f32 %v697, %v989
      %v1088 = vadd.f32 %v702, %v994
      %v1089 = vadd.f32 %v705, %v997
      %v1090 = vadd.f32 %v710, %v1002
      %v1091 = vadd.f32 %v713, %v1005
      %v1092 = vadd.f32 %v718, %v1010
      %v1093 = vadd.f32 %v721, %v1013
      %v1094 = vadd.f32 %v726, %v1018
      %v1095 = vadd.f32 %v729, %v1021
      %v1096 = vadd.f32 %v734, %v1026
      %v1097 = vadd.f32 %v737, %v1029
      %v1098 = vadd.f32 %v742, %v1034
      %v1099 = vadd.f32 %v745, %v1037
      %v1100 = vadd.f32 %v750, %v1042
      %v1101 = vadd.f32 %v753, %v1045
      %v1102 = vadd.f32 %v758, %v1050
      %v1103 = vadd.f32 %v761, %v1053
      %v1104 = vadd.f32 %v766, %v1058
      %v1105 = vadd.f32 %v769, %v1061
      %v1106 = vadd.f32 %v774, %v1066
      %v1107 = vadd.f32 %v777, %v1069
      %s1108 = sadd.s32 %s195, 18
      %s1109 = scalar_lea.vmem %s183, %s1108
      %v1110 = vld [vmem:[%s1109] sm:$0xff]
      %v1111 = vld [vmem:[%s1109 + $0x8] sm:$0xff]
      %v1112 = vld [vmem:[%s1109 + $0x10] sm:$0xff]
      %v1113 = vld [vmem:[%s1109 + $0x18] sm:$0xff]
      %v1114 = vld [vmem:[%s1109 + $0x20] sm:$0xff]
      %v1115 = vld [vmem:[%s1109 + $0x28] sm:$0xff]
      %v1116 = vld [vmem:[%s1109 + $0x30] sm:$0xff]
      %v1117 = vld [vmem:[%s1109 + $0x38] sm:$0xff]
      %v1118 = vld [vmem:[%s1109 + $0x40] sm:$0xff]
      %v1119 = vld [vmem:[%s1109 + $0x48] sm:$0xff]
      %v1120 = vld [vmem:[%s1109 + $0x50] sm:$0xff]
      %v1121 = vld [vmem:[%s1109 + $0x58] sm:$0xff]
      %v1122 = vld [vmem:[%s1109 + $0x60] sm:$0xff]
      %v1123 = vld [vmem:[%s1109 + $0x68] sm:$0xff]
      %v1124 = vld [vmem:[%s1109 + $0x70] sm:$0xff]
      %v1125 = vld [vmem:[%s1109 + $0x78] sm:$0xff]
      %v1126 = vld [vmem:[%s1109 + $0x80] sm:$0xff]
      %v1127 = vld [vmem:[%s1109 + $0x88] sm:$0xff]
      %v1128 = vld [vmem:[%s1109 + $0x90] sm:$0xff]
      %v1129 = vld [vmem:[%s1109 + $0x98] sm:$0xff]
      %v1130 = vld [vmem:[%s1109 + $0xa0] sm:$0xff]
      %v1131 = vld [vmem:[%s1109 + $0xa8] sm:$0xff]
      %v1132 = vld [vmem:[%s1109 + $0xb0] sm:$0xff]
      %v1133 = vld [vmem:[%s1109 + $0xb8] sm:$0xff]
      %v1134 = vld [vmem:[%s1109 + $0xc0] sm:$0xff]
      %v1135 = vld [vmem:[%s1109 + $0xc8] sm:$0xff]
      %v1136 = vld [vmem:[%s1109 + $0xd0] sm:$0xff]
      %v1137 = vld [vmem:[%s1109 + $0xd8] sm:$0xff]
      %v1138 = vld [vmem:[%s1109 + $0xe0] sm:$0xff]
      %v1139 = vld [vmem:[%s1109 + $0xe8] sm:$0xff]
      %v1140 = vld [vmem:[%s1109 + $0xf0] sm:$0xff]
      %v1141 = vld [vmem:[%s1109 + $0xf8] sm:$0xff]
      %v1142 = vld [vmem:[%s1109 + $0x100] sm:$0xff]
      %v1143 = vld [vmem:[%s1109 + $0x108] sm:$0xff]
      %v1144 = vld [vmem:[%s1109 + $0x110] sm:$0xff]
      %v1145 = vld [vmem:[%s1109 + $0x118] sm:$0xff]
      %v1146 = vpack.c.bf16 %v1111, %v1110
      %v1147 = vpack.c.bf16 %v1113, %v1112
      %v1148 = vpack.c.bf16 %v1115, %v1114
      %v1149 = vpack.c.bf16 %v1117, %v1116
      %v1150 = vpack.c.bf16 %v1119, %v1118
      %v1151 = vpack.c.bf16 %v1121, %v1120
      %v1152 = vpack.c.bf16 %v1123, %v1122
      %v1153 = vpack.c.bf16 %v1125, %v1124
      %v1154 = vpack.c.bf16 %v1127, %v1126
      %v1155 = vpack.c.bf16 %v1129, %v1128
      %v1156 = vpack.c.bf16 %v1131, %v1130
      %v1157 = vpack.c.bf16 %v1133, %v1132
      %v1158 = vpack.c.bf16 %v1135, %v1134
      %v1159 = vpack.c.bf16 %v1137, %v1136
      %v1160 = vpack.c.bf16 %v1139, %v1138
      %v1161 = vpack.c.bf16 %v1141, %v1140
      %v1162 = vpack.c.bf16 %v1143, %v1142
      %v1163 = vpack.c.bf16 %v1145, %v1144
      %s1164 = scalar_lea.vmem %s1, 6
      %v1165 = vld [vmem:[%s1164] sm:$0x3]
      %v1167 = vsel %vm310, %v1146, 0
      %v1170 = vsel %vm310, %v1147, 0
      %v1173 = vsel %vm310, %v1148, 0
      %v1176 = vsel %vm310, %v1149, 0
      %v1179 = vsel %vm310, %v1150, 0
      %v1182 = vsel %vm310, %v1151, 0
      %v1185 = vsel %vm310, %v1152, 0
      %v1188 = vsel %vm310, %v1153, 0
      %v1191 = vsel %vm310, %v1154, 0
      %v1194 = vsel %vm310, %v1155, 0
      %v1197 = vsel %vm310, %v1156, 0
      %v1200 = vsel %vm310, %v1157, 0
      %v1203 = vsel %vm310, %v1158, 0
      %v1206 = vsel %vm310, %v1159, 0
      %v1209 = vsel %vm310, %v1160, 0
      %v1212 = vsel %vm310, %v1161, 0
      %v1215 = vsel %vm310, %v1162, 0
      %v1218 = vsel %vm310, %v1163, 0
      %v1221 = vsel %vm365, %v1165, 0
      %1223 = vmatprep.subr.bf16.mxu0 0
      %1224 = vmatpush1.bf16.msra.mxu0 %v1221
      %1225 = vmatprep.subr.bf16.mxu0 0
      %1226 = vmatpush1.bf16.msra.mxu0 0
      %1227 = vmatprep.subr.bf16.mxu0 0
      %1228 = vmatpush1.bf16.msra.mxu0 0
      %1229 = vmatprep.subr.bf16.mxu0 0
      %1230 = vmatpush1.bf16.msra.mxu0 0
      %1231 = vmatprep.subr.bf16.mxu0 0
      %1232 = vmatpush1.bf16.msra.mxu0 0
      %1233 = vmatprep.subr.bf16.mxu0 0
      %1234 = vmatpush1.bf16.msra.mxu0 0
      %1235 = vmatprep.subr.bf16.mxu0 0
      %1236 = vmatpush1.bf16.msra.mxu0 0
      %1237 = vmatprep.subr.bf16.mxu0 0
      %1238 = vmatpush1.bf16.msra.mxu0 0
      %1239 = vmatprep.subr.bf16.mxu0 0
      %1240 = vmatpush1.bf16.msra.mxu0 0
      %1241 = vmatprep.subr.bf16.mxu0 0
      %1242 = vmatpush1.bf16.msra.mxu0 0
      %1243 = vmatprep.subr.bf16.mxu0 0
      %1244 = vmatpush1.bf16.msra.mxu0 0
      %1245 = vmatprep.subr.bf16.mxu0 0
      %1246 = vmatpush1.bf16.msra.mxu0 0
      %1247 = vmatprep.subr.bf16.mxu0 0
      %1248 = vmatpush1.bf16.msra.mxu0 0
      %1249 = vmatprep.subr.bf16.mxu0 0
      %1250 = vmatpush1.bf16.msra.mxu0 0
      %1251 = vmatprep.subr.bf16.mxu0 0
      %1252 = vmatpush1.bf16.msra.mxu0 0
      %1253 = vmatprep.subr.bf16.mxu0 0
      %1254 = vmatpush1.bf16.msra.mxu0 0
      %1255 = vmatprep.mubr.bf16.mxu0 0
      %1256 = vmatmul.mubr.bf16.gmra.mrb[0].mxu0 %v1167
      %v1257 = vpop.f32.mrb[0].mxu0
      %v1258 = vadd.f32 0.0, %v1257
      %v1259 = vpop.f32.mrb[0].mxu0
      %v1260 = vpop.f32.mrb[0].mxu0
      %v1261 = vadd.f32 0.0, %v1260
      %v1262 = vpop.f32.mrb[0].mxu0
      %1263 = vmatprep.mubr.bf16.mxu0 0
      %1264 = vmatmul.mubr.bf16.gmra.mrb[0].mxu0 %v1170
      %v1265 = vpop.f32.mrb[0].mxu0
      %v1266 = vadd.f32 0.0, %v1265
      %v1267 = vpop.f32.mrb[0].mxu0
      %v1268 = vpop.f32.mrb[0].mxu0
      %v1269 = vadd.f32 0.0, %v1268
      %v1270 = vpop.f32.mrb[0].mxu0
      %1271 = vmatprep.mubr.bf16.mxu0 0
      %1272 = vmatmul.mubr.bf16.gmra.mrb[0].mxu0 %v1173
      %v1273 = vpop.f32.mrb[0].mxu0
      %v1274 = vadd.f32 0.0, %v1273
      %v1275 = vpop.f32.mrb[0].mxu0
      %v1276 = vpop.f32.mrb[0].mxu0
      %v1277 = vadd.f32 0.0, %v1276
      %v1278 = vpop.f32.mrb[0].mxu0
      %1279 = vmatprep.mubr.bf16.mxu0 0
      %1280 = vmatmul.mubr.bf16.gmra.mrb[0].mxu0 %v1176
      %v1281 = vpop.f32.mrb[0].mxu0
      %v1282 = vadd.f32 0.0, %v1281
      %v1283 = vpop.f32.mrb[0].mxu0
      %v1284 = vpop.f32.mrb[0].mxu0
      %v1285 = vadd.f32 0.0, %v1284
      %v1286 = vpop.f32.mrb[0].mxu0
      %1287 = vmatprep.mubr.bf16.mxu0 0
      %1288 = vmatmul.mubr.bf16.gmra.mrb[0].mxu0 %v1179
      %v1289 = vpop.f32.mrb[0].mxu0
      %v1290 = vadd.f32 0.0, %v1289
      %v1291 = vpop.f32.mrb[0].mxu0
      %v1292 = vpop.f32.mrb[0].mxu0
      %v1293 = vadd.f32 0.0, %v1292
      %v1294 = vpop.f32.mrb[0].mxu0
      %1295 = vmatprep.mubr.bf16.mxu0 0
      %1296 = vmatmul.mubr.bf16.gmra.mrb[0].mxu0 %v1182
      %v1297 = vpop.f32.mrb[0].mxu0
      %v1298 = vadd.f32 0.0, %v1297
      %v1299 = vpop.f32.mrb[0].mxu0
      %v1300 = vpop.f32.mrb[0].mxu0
      %v1301 = vadd.f32 0.0, %v1300
      %v1302 = vpop.f32.mrb[0].mxu0
      %1303 = vmatprep.mubr.bf16.mxu0 0
      %1304 = vmatmul.mubr.bf16.gmra.mrb[0].mxu0 %v1185
      %v1305 = vpop.f32.mrb[0].mxu0
      %v1306 = vadd.f32 0.0, %v1305
      %v1307 = vpop.f32.mrb[0].mxu0
      %v1308 = vpop.f32.mrb[0].mxu0
      %v1309 = vadd.f32 0.0, %v1308
      %v1310 = vpop.f32.mrb[0].mxu0
      %1311 = vmatprep.mubr.bf16.mxu0 0
      %1312 = vmatmul.mubr.bf16.gmra.mrb[0].mxu0 %v1188
      %v1313 = vpop.f32.mrb[0].mxu0
      %v1314 = vadd.f32 0.0, %v1313
      %v1315 = vpop.f32.mrb[0].mxu0
      %v1316 = vpop.f32.mrb[0].mxu0
      %v1317 = vadd.f32 0.0, %v1316
      %v1318 = vpop.f32.mrb[0].mxu0
      %1319 = vmatprep.mubr.bf16.mxu0 0
      %1320 = vmatmul.mubr.bf16.gmra.mrb[0].mxu0 %v1191
      %v1321 = vpop.f32.mrb[0].mxu0
      %v1322 = vadd.f32 0.0, %v1321
      %v1323 = vpop.f32.mrb[0].mxu0
      %v1324 = vpop.f32.mrb[0].mxu0
      %v1325 = vadd.f32 0.0, %v1324
      %v1326 = vpop.f32.mrb[0].mxu0
      %1327 = vmatprep.mubr.bf16.mxu0 0
      %1328 = vmatmul.mubr.bf16.gmra.mrb[0].mxu0 %v1194
      %v1329 = vpop.f32.mrb[0].mxu0
      %v1330 = vadd.f32 0.0, %v1329
      %v1331 = vpop.f32.mrb[0].mxu0
      %v1332 = vpop.f32.mrb[0].mxu0
      %v1333 = vadd.f32 0.0, %v1332
      %v1334 = vpop.f32.mrb[0].mxu0
      %1335 = vmatprep.mubr.bf16.mxu0 0
      %1336 = vmatmul.mubr.bf16.gmra.mrb[0].mxu0 %v1197
      %v1337 = vpop.f32.mrb[0].mxu0
      %v1338 = vadd.f32 0.0, %v1337
      %v1339 = vpop.f32.mrb[0].mxu0
      %v1340 = vpop.f32.mrb[0].mxu0
      %v1341 = vadd.f32 0.0, %v1340
      %v1342 = vpop.f32.mrb[0].mxu0
      %1343 = vmatprep.mubr.bf16.mxu0 0
      %1344 = vmatmul.mubr.bf16.gmra.mrb[0].mxu0 %v1200
      %v1345 = vpop.f32.mrb[0].mxu0
      %v1346 = vadd.f32 0.0, %v1345
      %v1347 = vpop.f32.mrb[0].mxu0
      %v1348 = vpop.f32.mrb[0].mxu0
      %v1349 = vadd.f32 0.0, %v1348
      %v1350 = vpop.f32.mrb[0].mxu0
      %1351 = vmatprep.mubr.bf16.mxu0 0
      %1352 = vmatmul.mubr.bf16.gmra.mrb[0].mxu0 %v1203
      %v1353 = vpop.f32.mrb[0].mxu0
      %v1354 = vadd.f32 0.0, %v1353
      %v1355 = vpop.f32.mrb[0].mxu0
      %v1356 = vpop.f32.mrb[0].mxu0
      %v1357 = vadd.f32 0.0, %v1356
      %v1358 = vpop.f32.mrb[0].mxu0
      %1359 = vmatprep.mubr.bf16.mxu0 0
      %1360 = vmatmul.mubr.bf16.gmra.mrb[0].mxu0 %v1206
      %v1361 = vpop.f32.mrb[0].mxu0
      %v1362 = vadd.f32 0.0, %v1361
      %v1363 = vpop.f32.mrb[0].mxu0
      %v1364 = vpop.f32.mrb[0].mxu0
      %v1365 = vadd.f32 0.0, %v1364
      %v1366 = vpop.f32.mrb[0].mxu0
      %1367 = vmatprep.mubr.bf16.mxu0 0
      %1368 = vmatmul.mubr.bf16.gmra.mrb[0].mxu0 %v1209
      %v1369 = vpop.f32.mrb[0].mxu0
      %v1370 = vadd.f32 0.0, %v1369
      %v1371 = vpop.f32.mrb[0].mxu0
      %v1372 = vpop.f32.mrb[0].mxu0
      %v1373 = vadd.f32 0.0, %v1372
      %v1374 = vpop.f32.mrb[0].mxu0
      %1375 = vmatprep.mubr.bf16.mxu0 0
      %1376 = vmatmul.mubr.bf16.gmra.mrb[0].mxu0 %v1212
      %v1377 = vpop.f32.mrb[0].mxu0
      %v1378 = vadd.f32 0.0, %v1377
      %v1379 = vpop.f32.mrb[0].mxu0
      %v1380 = vpop.f32.mrb[0].mxu0
      %v1381 = vadd.f32 0.0, %v1380
      %v1382 = vpop.f32.mrb[0].mxu0
      %1383 = vmatprep.mubr.bf16.mxu0 0
      %1384 = vmatmul.mubr.bf16.gmra.mrb[0].mxu0 %v1215
      %v1385 = vpop.f32.mrb[0].mxu0
      %v1386 = vadd.f32 0.0, %v1385
      %v1387 = vpop.f32.mrb[0].mxu0
      %v1388 = vpop.f32.mrb[0].mxu0
      %v1389 = vadd.f32 0.0, %v1388
      %v1390 = vpop.f32.mrb[0].mxu0
      %1391 = vmatprep.mubr.bf16.mxu0 0
      %1392 = vmatmul.mubr.bf16.gmra.mrb[0].mxu0 %v1218
      %v1393 = vpop.f32.mrb[0].mxu0
      %v1394 = vadd.f32 0.0, %v1393
      %v1395 = vpop.f32.mrb[0].mxu0
      %v1396 = vpop.f32.mrb[0].mxu0
      %v1397 = vadd.f32 0.0, %v1396
      %v1398 = vpop.f32.mrb[0].mxu0
      %1399 = vdwg.mxu0
      %v1400 = vadd.f32 %v1072, %v1258
      %v1401 = vadd.f32 %v1073, %v1261
      %v1402 = vadd.f32 %v1074, %v1266
      %v1403 = vadd.f32 %v1075, %v1269
      %v1404 = vadd.f32 %v1076, %v1274
      %v1405 = vadd.f32 %v1077, %v1277
      %v1406 = vadd.f32 %v1078, %v1282
      %v1407 = vadd.f32 %v1079, %v1285
      %v1408 = vadd.f32 %v1080, %v1290
      %v1409 = vadd.f32 %v1081, %v1293
      %v1410 = vadd.f32 %v1082, %v1298
      %v1411 = vadd.f32 %v1083, %v1301
      %v1412 = vadd.f32 %v1084, %v1306
      %v1413 = vadd.f32 %v1085, %v1309
      %v1414 = vadd.f32 %v1086, %v1314
      %v1415 = vadd.f32 %v1087, %v1317
      %v1416 = vadd.f32 %v1088, %v1322
      %v1417 = vadd.f32 %v1089, %v1325
      %v1418 = vadd.f32 %v1090, %v1330
      %v1419 = vadd.f32 %v1091, %v1333
      %v1420 = vadd.f32 %v1092, %v1338
      %v1421 = vadd.f32 %v1093, %v1341
      %v1422 = vadd.f32 %v1094, %v1346
      %v1423 = vadd.f32 %v1095, %v1349
      %v1424 = vadd.f32 %v1096, %v1354
      %v1425 = vadd.f32 %v1097, %v1357
      %v1426 = vadd.f32 %v1098, %v1362
      %v1427 = vadd.f32 %v1099, %v1365
      %v1428 = vadd.f32 %v1100, %v1370
      %v1429 = vadd.f32 %v1101, %v1373
      %v1430 = vadd.f32 %v1102, %v1378
      %v1431 = vadd.f32 %v1103, %v1381
      %v1432 = vadd.f32 %v1104, %v1386
      %v1433 = vadd.f32 %v1105, %v1389
      %v1434 = vadd.f32 %v1106, %v1394
      %v1435 = vadd.f32 %v1107, %v1397
      %s1436 = sadd.s32 %s195, 19
      %s1437 = scalar_lea.vmem %s183, %s1436
      %v1438 = vld [vmem:[%s1437] sm:$0xff]
      %v1439 = vld [vmem:[%s1437 + $0x8] sm:$0xff]
      %v1440 = vld [vmem:[%s1437 + $0x10] sm:$0xff]
      %v1441 = vld [vmem:[%s1437 + $0x18] sm:$0xff]
      %v1442 = vld [vmem:[%s1437 + $0x20] sm:$0xff]
      %v1443 = vld [vmem:[%s1437 + $0x28] sm:$0xff]
      %v1444 = vld [vmem:[%s1437 + $0x30] sm:$0xff]
      %v1445 = vld [vmem:[%s1437 + $0x38] sm:$0xff]
      %v1446 = vld [vmem:[%s1437 + $0x40] sm:$0xff]
      %v1447 = vld [vmem:[%s1437 + $0x48] sm:$0xff]
      %v1448 = vld [vmem:[%s1437 + $0x50] sm:$0xff]
      %v1449 = vld [vmem:[%s1437 + $0x58] sm:$0xff]
      %v1450 = vld [vmem:[%s1437 + $0x60] sm:$0xff]
      %v1451 = vld [vmem:[%s1437 + $0x68] sm:$0xff]
      %v1452 = vld [vmem:[%s1437 + $0x70] sm:$0xff]
      %v1453 = vld [vmem:[%s1437 + $0x78] sm:$0xff]
      %v1454 = vld [vmem:[%s1437 + $0x80] sm:$0xff]
      %v1455 = vld [vmem:[%s1437 + $0x88] sm:$0xff]
      %v1456 = vld [vmem:[%s1437 + $0x90] sm:$0xff]
      %v1457 = vld [vmem:[%s1437 + $0x98] sm:$0xff]
      %v1458 = vld [vmem:[%s1437 + $0xa0] sm:$0xff]
      %v1459 = vld [vmem:[%s1437 + $0xa8] sm:$0xff]
      %v1460 = vld [vmem:[%s1437 + $0xb0] sm:$0xff]
      %v1461 = vld [vmem:[%s1437 + $0xb8] sm:$0xff]
      %v1462 = vld [vmem:[%s1437 + $0xc0] sm:$0xff]
      %v1463 = vld [vmem:[%s1437 + $0xc8] sm:$0xff]
      %v1464 = vld [vmem:[%s1437 + $0xd0] sm:$0xff]
      %v1465 = vld [vmem:[%s1437 + $0xd8] sm:$0xff]
      %v1466 = vld [vmem:[%s1437 + $0xe0] sm:$0xff]
      %v1467 = vld [vmem:[%s1437 + $0xe8] sm:$0xff]
      %v1468 = vld [vmem:[%s1437 + $0xf0] sm:$0xff]
      %v1469 = vld [vmem:[%s1437 + $0xf8] sm:$0xff]
      %v1470 = vld [vmem:[%s1437 + $0x100] sm:$0xff]
      %v1471 = vld [vmem:[%s1437 + $0x108] sm:$0xff]
      %v1472 = vld [vmem:[%s1437 + $0x110] sm:$0xff]
      %v1473 = vld [vmem:[%s1437 + $0x118] sm:$0xff]
      %v1474 = vpack.c.bf16 %v1439, %v1438
      %v1475 = vpack.c.bf16 %v1441, %v1440
      %v1476 = vpack.c.bf16 %v1443, %v1442
      %v1477 = vpack.c.bf16 %v1445, %v1444
      %v1478 = vpack.c.bf16 %v1447, %v1446
      %v1479 = vpack.c.bf16 %v1449, %v1448
      %v1480 = vpack.c.bf16 %v1451, %v1450
      %v1481 = vpack.c.bf16 %v1453, %v1452
      %v1482 = vpack.c.bf16 %v1455, %v1454
      %v1483 = vpack.c.bf16 %v1457, %v1456
      %v1484 = vpack.c.bf16 %v1459, %v1458
      %v1485 = vpack.c.bf16 %v1461, %v1460
      %v1486 = vpack.c.bf16 %v1463, %v1462
      %v1487 = vpack.c.bf16 %v1465, %v1464
      %v1488 = vpack.c.bf16 %v1467, %v1466
      %v1489 = vpack.c.bf16 %v1469, %v1468
      %v1490 = vpack.c.bf16 %v1471, %v1470
      %v1491 = vpack.c.bf16 %v1473, %v1472
      %s1492 = scalar_lea.vmem %s1, 8
      %v1493 = vld [vmem:[%s1492] sm:$0x3]
      %v1495 = vsel %vm310, %v1474, 0
      %v1498 = vsel %vm310, %v1475, 0
      %v1501 = vsel %vm310, %v1476, 0
      %v1504 = vsel %vm310, %v1477, 0
      %v1507 = vsel %vm310, %v1478, 0
      %v1510 = vsel %vm310, %v1479, 0
      %v1513 = vsel %vm310, %v1480, 0
      %v1516 = vsel %vm310, %v1481, 0
      %v1519 = vsel %vm310, %v1482, 0
      %v1522 = vsel %vm310, %v1483, 0
      %v1525 = vsel %vm310, %v1484, 0
      %v1528 = vsel %vm310, %v1485, 0
      %v1531 = vsel %vm310, %v1486, 0
      %v1534 = vsel %vm310, %v1487, 0
      %v1537 = vsel %vm310, %v1488, 0
      %v1540 = vsel %vm310, %v1489, 0
      %v1543 = vsel %vm310, %v1490, 0
      %v1546 = vsel %vm310, %v1491, 0
      %v1549 = vsel %vm365, %v1493, 0
      %1551 = vmatprep.subr.bf16.mxu0 0
      %1552 = vmatpush1.bf16.msra.mxu0 %v1549
      %1553 = vmatprep.subr.bf16.mxu0 0
      %1554 = vmatpush1.bf16.msra.mxu0 0
      %1555 = vmatprep.subr.bf16.mxu0 0
      %1556 = vmatpush1.bf16.msra.mxu0 0
      %1557 = vmatprep.subr.bf16.mxu0 0
      %1558 = vmatpush1.bf16.msra.mxu0 0
      %1559 = vmatprep.subr.bf16.mxu0 0
      %1560 = vmatpush1.bf16.msra.mxu0 0
      %1561 = vmatprep.subr.bf16.mxu0 0
      %1562 = vmatpush1.bf16.msra.mxu0 0
      %1563 = vmatprep.subr.bf16.mxu0 0
      %1564 = vmatpush1.bf16.msra.mxu0 0
      %1565 = vmatprep.subr.bf16.mxu0 0
      %1566 = vmatpush1.bf16.msra.mxu0 0
      %1567 = vmatprep.subr.bf16.mxu0 0
      %1568 = vmatpush1.bf16.msra.mxu0 0
      %1569 = vmatprep.subr.bf16.mxu0 0
      %1570 = vmatpush1.bf16.msra.mxu0 0
      %1571 = vmatprep.subr.bf16.mxu0 0
      %1572 = vmatpush1.bf16.msra.mxu0 0
      %1573 = vmatprep.subr.bf16.mxu0 0
      %1574 = vmatpush1.bf16.msra.mxu0 0
      %1575 = vmatprep.subr.bf16.mxu0 0
      %1576 = vmatpush1.bf16.msra.mxu0 0
      %1577 = vmatprep.subr.bf16.mxu0 0
      %1578 = vmatpush1.bf16.msra.mxu0 0
      %1579 = vmatprep.subr.bf16.mxu0 0
      %1580 = vmatpush1.bf16.msra.mxu0 0
      %1581 = vmatprep.subr.bf16.mxu0 0
      %1582 = vmatpush1.bf16.msra.mxu0 0
      %1583 = vmatprep.mubr.bf16.mxu0 0
      %1584 = vmatmul.mubr.bf16.gmra.mrb[0].mxu0 %v1495
      %v1585 = vpop.f32.mrb[0].mxu0
      %v1586 = vadd.f32 0.0, %v1585
      %v1587 = vpop.f32.mrb[0].mxu0
      %v1588 = vpop.f32.mrb[0].mxu0
      %v1589 = vadd.f32 0.0, %v1588
      %v1590 = vpop.f32.mrb[0].mxu0
      %1591 = vmatprep.mubr.bf16.mxu0 0
      %1592 = vmatmul.mubr.bf16.gmra.mrb[0].mxu0 %v1498
      %v1593 = vpop.f32.mrb[0].mxu0
      %v1594 = vadd.f32 0.0, %v1593
      %v1595 = vpop.f32.mrb[0].mxu0
      %v1596 = vpop.f32.mrb[0].mxu0
      %v1597 = vadd.f32 0.0, %v1596
      %v1598 = vpop.f32.mrb[0].mxu0
      %1599 = vmatprep.mubr.bf16.mxu0 0
      %1600 = vmatmul.mubr.bf16.gmra.mrb[0].mxu0 %v1501
      %v1601 = vpop.f32.mrb[0].mxu0
      %v1602 = vadd.f32 0.0, %v1601
      %v1603 = vpop.f32.mrb[0].mxu0
      %v1604 = vpop.f32.mrb[0].mxu0
      %v1605 = vadd.f32 0.0, %v1604
      %v1606 = vpop.f32.mrb[0].mxu0
      %1607 = vmatprep.mubr.bf16.mxu0 0
      %1608 = vmatmul.mubr.bf16.gmra.mrb[0].mxu0 %v1504
      %v1609 = vpop.f32.mrb[0].mxu0
      %v1610 = vadd.f32 0.0, %v1609
      %v1611 = vpop.f32.mrb[0].mxu0
      %v1612 = vpop.f32.mrb[0].mxu0
      %v1613 = vadd.f32 0.0, %v1612
      %v1614 = vpop.f32.mrb[0].mxu0
      %1615 = vmatprep.mubr.bf16.mxu0 0
      %1616 = vmatmul.mubr.bf16.gmra.mrb[0].mxu0 %v1507
      %v1617 = vpop.f32.mrb[0].mxu0
      %v1618 = vadd.f32 0.0, %v1617
      %v1619 = vpop.f32.mrb[0].mxu0
      %v1620 = vpop.f32.mrb[0].mxu0
      %v1621 = vadd.f32 0.0, %v1620
      %v1622 = vpop.f32.mrb[0].mxu0
      %1623 = vmatprep.mubr.bf16.mxu0 0
      %1624 = vmatmul.mubr.bf16.gmra.mrb[0].mxu0 %v1510
      %v1625 = vpop.f32.mrb[0].mxu0
      %v1626 = vadd.f32 0.0, %v1625
      %v1627 = vpop.f32.mrb[0].mxu0
      %v1628 = vpop.f32.mrb[0].mxu0
      %v1629 = vadd.f32 0.0, %v1628
      %v1630 = vpop.f32.mrb[0].mxu0
      %1631 = vmatprep.mubr.bf16.mxu0 0
      %1632 = vmatmul.mubr.bf16.gmra.mrb[0].mxu0 %v1513
      %v1633 = vpop.f32.mrb[0].mxu0
      %v1634 = vadd.f32 0.0, %v1633
      %v1635 = vpop.f32.mrb[0].mxu0
      %v1636 = vpop.f32.mrb[0].mxu0
      %v1637 = vadd.f32 0.0, %v1636
      %v1638 = vpop.f32.mrb[0].mxu0
      %1639 = vmatprep.mubr.bf16.mxu0 0
      %1640 = vmatmul.mubr.bf16.gmra.mrb[0].mxu0 %v1516
      %v1641 = vpop.f32.mrb[0].mxu0
      %v1642 = vadd.f32 0.0, %v1641
      %v1643 = vpop.f32.mrb[0].mxu0
      %v1644 = vpop.f32.mrb[0].mxu0
      %v1645 = vadd.f32 0.0, %v1644
      %v1646 = vpop.f32.mrb[0].mxu0
      %1647 = vmatprep.mubr.bf16.mxu0 0
      %1648 = vmatmul.mubr.bf16.gmra.mrb[0].mxu0 %v1519
      %v1649 = vpop.f32.mrb[0].mxu0
      %v1650 = vadd.f32 0.0, %v1649
      %v1651 = vpop.f32.mrb[0].mxu0
      %v1652 = vpop.f32.mrb[0].mxu0
      %v1653 = vadd.f32 0.0, %v1652
      %v1654 = vpop.f32.mrb[0].mxu0
      %1655 = vmatprep.mubr.bf16.mxu0 0
      %1656 = vmatmul.mubr.bf16.gmra.mrb[0].mxu0 %v1522
      %v1657 = vpop.f32.mrb[0].mxu0
      %v1658 = vadd.f32 0.0, %v1657
      %v1659 = vpop.f32.mrb[0].mxu0
      %v1660 = vpop.f32.mrb[0].mxu0
      %v1661 = vadd.f32 0.0, %v1660
      %v1662 = vpop.f32.mrb[0].mxu0
      %1663 = vmatprep.mubr.bf16.mxu0 0
      %1664 = vmatmul.mubr.bf16.gmra.mrb[0].mxu0 %v1525
      %v1665 = vpop.f32.mrb[0].mxu0
      %v1666 = vadd.f32 0.0, %v1665
      %v1667 = vpop.f32.mrb[0].mxu0
      %v1668 = vpop.f32.mrb[0].mxu0
      %v1669 = vadd.f32 0.0, %v1668
      %v1670 = vpop.f32.mrb[0].mxu0
      %1671 = vmatprep.mubr.bf16.mxu0 0
      %1672 = vmatmul.mubr.bf16.gmra.mrb[0].mxu0 %v1528
      %v1673 = vpop.f32.mrb[0].mxu0
      %v1674 = vadd.f32 0.0, %v1673
      %v1675 = vpop.f32.mrb[0].mxu0
      %v1676 = vpop.f32.mrb[0].mxu0
      %v1677 = vadd.f32 0.0, %v1676
      %v1678 = vpop.f32.mrb[0].mxu0
      %1679 = vmatprep.mubr.bf16.mxu0 0
      %1680 = vmatmul.mubr.bf16.gmra.mrb[0].mxu0 %v1531
      %v1681 = vpop.f32.mrb[0].mxu0
      %v1682 = vadd.f32 0.0, %v1681
      %v1683 = vpop.f32.mrb[0].mxu0
      %v1684 = vpop.f32.mrb[0].mxu0
      %v1685 = vadd.f32 0.0, %v1684
      %v1686 = vpop.f32.mrb[0].mxu0
      %1687 = vmatprep.mubr.bf16.mxu0 0
      %1688 = vmatmul.mubr.bf16.gmra.mrb[0].mxu0 %v1534
      %v1689 = vpop.f32.mrb[0].mxu0
      %v1690 = vadd.f32 0.0, %v1689
      %v1691 = vpop.f32.mrb[0].mxu0
      %v1692 = vpop.f32.mrb[0].mxu0
      %v1693 = vadd.f32 0.0, %v1692
      %v1694 = vpop.f32.mrb[0].mxu0
      %1695 = vmatprep.mubr.bf16.mxu0 0
      %1696 = vmatmul.mubr.bf16.gmra.mrb[0].mxu0 %v1537
      %v1697 = vpop.f32.mrb[0].mxu0
      %v1698 = vadd.f32 0.0, %v1697
      %v1699 = vpop.f32.mrb[0].mxu0
      %v1700 = vpop.f32.mrb[0].mxu0
      %v1701 = vadd.f32 0.0, %v1700
      %v1702 = vpop.f32.mrb[0].mxu0
      %1703 = vmatprep.mubr.bf16.mxu0 0
      %1704 = vmatmul.mubr.bf16.gmra.mrb[0].mxu0 %v1540
      %v1705 = vpop.f32.mrb[0].mxu0
      %v1706 = vadd.f32 0.0, %v1705
      %v1707 = vpop.f32.mrb[0].mxu0
      %v1708 = vpop.f32.mrb[0].mxu0
      %v1709 = vadd.f32 0.0, %v1708
      %v1710 = vpop.f32.mrb[0].mxu0
      %1711 = vmatprep.mubr.bf16.mxu0 0
      %1712 = vmatmul.mubr.bf16.gmra.mrb[0].mxu0 %v1543
      %v1713 = vpop.f32.mrb[0].mxu0
      %v1714 = vadd.f32 0.0, %v1713
      %v1715 = vpop.f32.mrb[0].mxu0
      %v1716 = vpop.f32.mrb[0].mxu0
      %v1717 = vadd.f32 0.0, %v1716
      %v1718 = vpop.f32.mrb[0].mxu0
      %1719 = vmatprep.mubr.bf16.mxu0 0
      %1720 = vmatmul.mubr.bf16.gmra.mrb[0].mxu0 %v1546
      %v1721 = vpop.f32.mrb[0].mxu0
      %v1722 = vadd.f32 0.0, %v1721
      %v1723 = vpop.f32.mrb[0].mxu0
      %v1724 = vpop.f32.mrb[0].mxu0
      %v1725 = vadd.f32 0.0, %v1724
      %v1726 = vpop.f32.mrb[0].mxu0
      %1727 = vdwg.mxu0
      %v1728 = vadd.f32 %v1400, %v1586
      %v1729 = vadd.f32 %v1401, %v1589
      %v1730 = vadd.f32 %v1402, %v1594
      %v1731 = vadd.f32 %v1403, %v1597
      %v1732 = vadd.f32 %v1404, %v1602
      %v1733 = vadd.f32 %v1405, %v1605
      %v1734 = vadd.f32 %v1406, %v1610
      %v1735 = vadd.f32 %v1407, %v1613
      %v1736 = vadd.f32 %v1408, %v1618
      %v1737 = vadd.f32 %v1409, %v1621
      %v1738 = vadd.f32 %v1410, %v1626
      %v1739 = vadd.f32 %v1411, %v1629
      %v1740 = vadd.f32 %v1412, %v1634
      %v1741 = vadd.f32 %v1413, %v1637
      %v1742 = vadd.f32 %v1414, %v1642
      %v1743 = vadd.f32 %v1415, %v1645
      %v1744 = vadd.f32 %v1416, %v1650
      %v1745 = vadd.f32 %v1417, %v1653
      %v1746 = vadd.f32 %v1418, %v1658
      %v1747 = vadd.f32 %v1419, %v1661
      %v1748 = vadd.f32 %v1420, %v1666
      %v1749 = vadd.f32 %v1421, %v1669
      %v1750 = vadd.f32 %v1422, %v1674
      %v1751 = vadd.f32 %v1423, %v1677
      %v1752 = vadd.f32 %v1424, %v1682
      %v1753 = vadd.f32 %v1425, %v1685
      %v1754 = vadd.f32 %v1426, %v1690
      %v1755 = vadd.f32 %v1427, %v1693
      %v1756 = vadd.f32 %v1428, %v1698
      %v1757 = vadd.f32 %v1429, %v1701
      %v1758 = vadd.f32 %v1430, %v1706
      %v1759 = vadd.f32 %v1431, %v1709
      %v1760 = vadd.f32 %v1432, %v1714
      %v1761 = vadd.f32 %v1433, %v1717
      %v1762 = vadd.f32 %v1434, %v1722
      %v1763 = vadd.f32 %v1435, %v1725
      %s1764 = sadd.s32 %s195, 20
      %s1765 = scalar_lea.vmem %s183, %s1764
      %v1766 = vld [vmem:[%s1765] sm:$0xff]
      %v1767 = vld [vmem:[%s1765 + $0x8] sm:$0xff]
      %v1768 = vld [vmem:[%s1765 + $0x10] sm:$0xff]
      %v1769 = vld [vmem:[%s1765 + $0x18] sm:$0xff]
      %v1770 = vld [vmem:[%s1765 + $0x20] sm:$0xff]
      %v1771 = vld [vmem:[%s1765 + $0x28] sm:$0xff]
      %v1772 = vld [vmem:[%s1765 + $0x30] sm:$0xff]
      %v1773 = vld [vmem:[%s1765 + $0x38] sm:$0xff]
      %v1774 = vld [vmem:[%s1765 + $0x40] sm:$0xff]
      %v1775 = vld [vmem:[%s1765 + $0x48] sm:$0xff]
      %v1776 = vld [vmem:[%s1765 + $0x50] sm:$0xff]
      %v1777 = vld [vmem:[%s1765 + $0x58] sm:$0xff]
      %v1778 = vld [vmem:[%s1765 + $0x60] sm:$0xff]
      %v1779 = vld [vmem:[%s1765 + $0x68] sm:$0xff]
      %v1780 = vld [vmem:[%s1765 + $0x70] sm:$0xff]
      %v1781 = vld [vmem:[%s1765 + $0x78] sm:$0xff]
      %v1782 = vld [vmem:[%s1765 + $0x80] sm:$0xff]
      %v1783 = vld [vmem:[%s1765 + $0x88] sm:$0xff]
      %v1784 = vld [vmem:[%s1765 + $0x90] sm:$0xff]
      %v1785 = vld [vmem:[%s1765 + $0x98] sm:$0xff]
      %v1786 = vld [vmem:[%s1765 + $0xa0] sm:$0xff]
      %v1787 = vld [vmem:[%s1765 + $0xa8] sm:$0xff]
      %v1788 = vld [vmem:[%s1765 + $0xb0] sm:$0xff]
      %v1789 = vld [vmem:[%s1765 + $0xb8] sm:$0xff]
      %v1790 = vld [vmem:[%s1765 + $0xc0] sm:$0xff]
      %v1791 = vld [vmem:[%s1765 + $0xc8] sm:$0xff]
      %v1792 = vld [vmem:[%s1765 + $0xd0] sm:$0xff]
      %v1793 = vld [vmem:[%s1765 + $0xd8] sm:$0xff]
      %v1794 = vld [vmem:[%s1765 + $0xe0] sm:$0xff]
      %v1795 = vld [vmem:[%s1765 + $0xe8] sm:$0xff]
      %v1796 = vld [vmem:[%s1765 + $0xf0] sm:$0xff]
      %v1797 = vld [vmem:[%s1765 + $0xf8] sm:$0xff]
      %v1798 = vld [vmem:[%s1765 + $0x100] sm:$0xff]
      %v1799 = vld [vmem:[%s1765 + $0x108] sm:$0xff]
      %v1800 = vld [vmem:[%s1765 + $0x110] sm:$0xff]
      %v1801 = vld [vmem:[%s1765 + $0x118] sm:$0xff]
      %v1802 = vpack.c.bf16 %v1767, %v1766
      %v1803 = vpack.c.bf16 %v1769, %v1768
      %v1804 = vpack.c.bf16 %v1771, %v1770
      %v1805 = vpack.c.bf16 %v1773, %v1772
      %v1806 = vpack.c.bf16 %v1775, %v1774
      %v1807 = vpack.c.bf16 %v1777, %v1776
      %v1808 = vpack.c.bf16 %v1779, %v1778
      %v1809 = vpack.c.bf16 %v1781, %v1780
      %v1810 = vpack.c.bf16 %v1783, %v1782
      %v1811 = vpack.c.bf16 %v1785, %v1784
      %v1812 = vpack.c.bf16 %v1787, %v1786
      %v1813 = vpack.c.bf16 %v1789, %v1788
      %v1814 = vpack.c.bf16 %v1791, %v1790
      %v1815 = vpack.c.bf16 %v1793, %v1792
      %v1816 = vpack.c.bf16 %v1795, %v1794
      %v1817 = vpack.c.bf16 %v1797, %v1796
      %v1818 = vpack.c.bf16 %v1799, %v1798
      %v1819 = vpack.c.bf16 %v1801, %v1800
      %s1820 = scalar_lea.vmem %s1, 10
      %v1821 = vld [vmem:[%s1820] sm:$0x3]
      %v1823 = vsel %vm310, %v1802, 0
      %v1826 = vsel %vm310, %v1803, 0
      %v1829 = vsel %vm310, %v1804, 0
      %v1832 = vsel %vm310, %v1805, 0
      %v1835 = vsel %vm310, %v1806, 0
      %v1838 = vsel %vm310, %v1807, 0
      %v1841 = vsel %vm310, %v1808, 0
      %v1844 = vsel %vm310, %v1809, 0
      %v1847 = vsel %vm310, %v1810, 0
      %v1850 = vsel %vm310, %v1811, 0
      %v1853 = vsel %vm310, %v1812, 0
      %v1856 = vsel %vm310, %v1813, 0
      %v1859 = vsel %vm310, %v1814, 0
      %v1862 = vsel %vm310, %v1815, 0
      %v1865 = vsel %vm310, %v1816, 0
      %v1868 = vsel %vm310, %v1817, 0
      %v1871 = vsel %vm310, %v1818, 0
      %v1874 = vsel %vm310, %v1819, 0
      %v1877 = vsel %vm365, %v1821, 0
      %1879 = vmatprep.subr.bf16.mxu0 0
      %1880 = vmatpush1.bf16.msra.mxu0 %v1877
      %1881 = vmatprep.subr.bf16.mxu0 0
      %1882 = vmatpush1.bf16.msra.mxu0 0
      %1883 = vmatprep.subr.bf16.mxu0 0
      %1884 = vmatpush1.bf16.msra.mxu0 0
      %1885 = vmatprep.subr.bf16.mxu0 0
      %1886 = vmatpush1.bf16.msra.mxu0 0
      %1887 = vmatprep.subr.bf16.mxu0 0
      %1888 = vmatpush1.bf16.msra.mxu0 0
      %1889 = vmatprep.subr.bf16.mxu0 0
      %1890 = vmatpush1.bf16.msra.mxu0 0
      %1891 = vmatprep.subr.bf16.mxu0 0
      %1892 = vmatpush1.bf16.msra.mxu0 0
      %1893 = vmatprep.subr.bf16.mxu0 0
      %1894 = vmatpush1.bf16.msra.mxu0 0
      %1895 = vmatprep.subr.bf16.mxu0 0
      %1896 = vmatpush1.bf16.msra.mxu0 0
      %1897 = vmatprep.subr.bf16.mxu0 0
      %1898 = vmatpush1.bf16.msra.mxu0 0
      %1899 = vmatprep.subr.bf16.mxu0 0
      %1900 = vmatpush1.bf16.msra.mxu0 0
      %1901 = vmatprep.subr.bf16.mxu0 0
      %1902 = vmatpush1.bf16.msra.mxu0 0
      %1903 = vmatprep.subr.bf16.mxu0 0
      %1904 = vmatpush1.bf16.msra.mxu0 0
      %1905 = vmatprep.subr.bf16.mxu0 0
      %1906 = vmatpush1.bf16.msra.mxu0 0
      %1907 = vmatprep.subr.bf16.mxu0 0
      %1908 = vmatpush1.bf16.msra.mxu0 0
      %1909 = vmatprep.subr.bf16.mxu0 0
      %1910 = vmatpush1.bf16.msra.mxu0 0
      %1911 = vmatprep.mubr.bf16.mxu0 0
      %1912 = vmatmul.mubr.bf16.gmra.mrb[0].mxu0 %v1823
      %v1913 = vpop.f32.mrb[0].mxu0
      %v1914 = vadd.f32 0.0, %v1913
      %v1915 = vpop.f32.mrb[0].mxu0
      %v1916 = vpop.f32.mrb[0].mxu0
      %v1917 = vadd.f32 0.0, %v1916
      %v1918 = vpop.f32.mrb[0].mxu0
      %1919 = vmatprep.mubr.bf16.mxu0 0
      %1920 = vmatmul.mubr.bf16.gmra.mrb[0].mxu0 %v1826
      %v1921 = vpop.f32.mrb[0].mxu0
      %v1922 = vadd.f32 0.0, %v1921
      %v1923 = vpop.f32.mrb[0].mxu0
      %v1924 = vpop.f32.mrb[0].mxu0
      %v1925 = vadd.f32 0.0, %v1924
      %v1926 = vpop.f32.mrb[0].mxu0
      %1927 = vmatprep.mubr.bf16.mxu0 0
      %1928 = vmatmul.mubr.bf16.gmra.mrb[0].mxu0 %v1829
      %v1929 = vpop.f32.mrb[0].mxu0
      %v1930 = vadd.f32 0.0, %v1929
      %v1931 = vpop.f32.mrb[0].mxu0
      %v1932 = vpop.f32.mrb[0].mxu0
      %v1933 = vadd.f32 0.0, %v1932
      %v1934 = vpop.f32.mrb[0].mxu0
      %1935 = vmatprep.mubr.bf16.mxu0 0
      %1936 = vmatmul.mubr.bf16.gmra.mrb[0].mxu0 %v1832
      %v1937 = vpop.f32.mrb[0].mxu0
      %v1938 = vadd.f32 0.0, %v1937
      %v1939 = vpop.f32.mrb[0].mxu0
      %v1940 = vpop.f32.mrb[0].mxu0
      %v1941 = vadd.f32 0.0, %v1940
      %v1942 = vpop.f32.mrb[0].mxu0
      %1943 = vmatprep.mubr.bf16.mxu0 0
      %1944 = vmatmul.mubr.bf16.gmra.mrb[0].mxu0 %v1835
      %v1945 = vpop.f32.mrb[0].mxu0
      %v1946 = vadd.f32 0.0, %v1945
      %v1947 = vpop.f32.mrb[0].mxu0
      %v1948 = vpop.f32.mrb[0].mxu0
      %v1949 = vadd.f32 0.0, %v1948
      %v1950 = vpop.f32.mrb[0].mxu0
      %1951 = vmatprep.mubr.bf16.mxu0 0
      %1952 = vmatmul.mubr.bf16.gmra.mrb[0].mxu0 %v1838
      %v1953 = vpop.f32.mrb[0].mxu0
      %v1954 = vadd.f32 0.0, %v1953
      %v1955 = vpop.f32.mrb[0].mxu0
      %v1956 = vpop.f32.mrb[0].mxu0
      %v1957 = vadd.f32 0.0, %v1956
      %v1958 = vpop.f32.mrb[0].mxu0
      %1959 = vmatprep.mubr.bf16.mxu0 0
      %1960 = vmatmul.mubr.bf16.gmra.mrb[0].mxu0 %v1841
      %v1961 = vpop.f32.mrb[0].mxu0
      %v1962 = vadd.f32 0.0, %v1961
      %v1963 = vpop.f32.mrb[0].mxu0
      %v1964 = vpop.f32.mrb[0].mxu0
      %v1965 = vadd.f32 0.0, %v1964
      %v1966 = vpop.f32.mrb[0].mxu0
      %1967 = vmatprep.mubr.bf16.mxu0 0
      %1968 = vmatmul.mubr.bf16.gmra.mrb[0].mxu0 %v1844
      %v1969 = vpop.f32.mrb[0].mxu0
      %v1970 = vadd.f32 0.0, %v1969
      %v1971 = vpop.f32.mrb[0].mxu0
      %v1972 = vpop.f32.mrb[0].mxu0
      %v1973 = vadd.f32 0.0, %v1972
      %v1974 = vpop.f32.mrb[0].mxu0
      %1975 = vmatprep.mubr.bf16.mxu0 0
      %1976 = vmatmul.mubr.bf16.gmra.mrb[0].mxu0 %v1847
      %v1977 = vpop.f32.mrb[0].mxu0
      %v1978 = vadd.f32 0.0, %v1977
      %v1979 = vpop.f32.mrb[0].mxu0
      %v1980 = vpop.f32.mrb[0].mxu0
      %v1981 = vadd.f32 0.0, %v1980
      %v1982 = vpop.f32.mrb[0].mxu0
      %1983 = vmatprep.mubr.bf16.mxu0 0
      %1984 = vmatmul.mubr.bf16.gmra.mrb[0].mxu0 %v1850
      %v1985 = vpop.f32.mrb[0].mxu0
      %v1986 = vadd.f32 0.0, %v1985
      %v1987 = vpop.f32.mrb[0].mxu0
      %v1988 = vpop.f32.mrb[0].mxu0
      %v1989 = vadd.f32 0.0, %v1988
      %v1990 = vpop.f32.mrb[0].mxu0
      %1991 = vmatprep.mubr.bf16.mxu0 0
      %1992 = vmatmul.mubr.bf16.gmra.mrb[0].mxu0 %v1853
      %v1993 = vpop.f32.mrb[0].mxu0
      %v1994 = vadd.f32 0.0, %v1993
      %v1995 = vpop.f32.mrb[0].mxu0
      %v1996 = vpop.f32.mrb[0].mxu0
      %v1997 = vadd.f32 0.0, %v1996
      %v1998 = vpop.f32.mrb[0].mxu0
      %1999 = vmatprep.mubr.bf16.mxu0 0
      %2000 = vmatmul.mubr.bf16.gmra.mrb[0].mxu0 %v1856
      %v2001 = vpop.f32.mrb[0].mxu0
      %v2002 = vadd.f32 0.0, %v2001
      %v2003 = vpop.f32.mrb[0].mxu0
      %v2004 = vpop.f32.mrb[0].mxu0
      %v2005 = vadd.f32 0.0, %v2004
      %v2006 = vpop.f32.mrb[0].mxu0
      %2007 = vmatprep.mubr.bf16.mxu0 0
      %2008 = vmatmul.mubr.bf16.gmra.mrb[0].mxu0 %v1859
      %v2009 = vpop.f32.mrb[0].mxu0
      %v2010 = vadd.f32 0.0, %v2009
      %v2011 = vpop.f32.mrb[0].mxu0
      %v2012 = vpop.f32.mrb[0].mxu0
      %v2013 = vadd.f32 0.0, %v2012
      %v2014 = vpop.f32.mrb[0].mxu0
      %2015 = vmatprep.mubr.bf16.mxu0 0
      %2016 = vmatmul.mubr.bf16.gmra.mrb[0].mxu0 %v1862
      %v2017 = vpop.f32.mrb[0].mxu0
      %v2018 = vadd.f32 0.0, %v2017
      %v2019 = vpop.f32.mrb[0].mxu0
      %v2020 = vpop.f32.mrb[0].mxu0
      %v2021 = vadd.f32 0.0, %v2020
      %v2022 = vpop.f32.mrb[0].mxu0
      %2023 = vmatprep.mubr.bf16.mxu0 0
      %2024 = vmatmul.mubr.bf16.gmra.mrb[0].mxu0 %v1865
      %v2025 = vpop.f32.mrb[0].mxu0
      %v2026 = vadd.f32 0.0, %v2025
      %v2027 = vpop.f32.mrb[0].mxu0
      %v2028 = vpop.f32.mrb[0].mxu0
      %v2029 = vadd.f32 0.0, %v2028
      %v2030 = vpop.f32.mrb[0].mxu0
      %2031 = vmatprep.mubr.bf16.mxu0 0
      %2032 = vmatmul.mubr.bf16.gmra.mrb[0].mxu0 %v1868
      %v2033 = vpop.f32.mrb[0].mxu0
      %v2034 = vadd.f32 0.0, %v2033
      %v2035 = vpop.f32.mrb[0].mxu0
      %v2036 = vpop.f32.mrb[0].mxu0
      %v2037 = vadd.f32 0.0, %v2036
      %v2038 = vpop.f32.mrb[0].mxu0
      %2039 = vmatprep.mubr.bf16.mxu0 0
      %2040 = vmatmul.mubr.bf16.gmra.mrb[0].mxu0 %v1871
      %v2041 = vpop.f32.mrb[0].mxu0
      %v2042 = vadd.f32 0.0, %v2041
      %v2043 = vpop.f32.mrb[0].mxu0
      %v2044 = vpop.f32.mrb[0].mxu0
      %v2045 = vadd.f32 0.0, %v2044
      %v2046 = vpop.f32.mrb[0].mxu0
      %2047 = vmatprep.mubr.bf16.mxu0 0
      %2048 = vmatmul.mubr.bf16.gmra.mrb[0].mxu0 %v1874
      %v2049 = vpop.f32.mrb[0].mxu0
      %v2050 = vadd.f32 0.0, %v2049
      %v2051 = vpop.f32.mrb[0].mxu0
      %v2052 = vpop.f32.mrb[0].mxu0
      %v2053 = vadd.f32 0.0, %v2052
      %v2054 = vpop.f32.mrb[0].mxu0
      %2055 = vdwg.mxu0
      %v2056 = vadd.f32 %v1728, %v1914
      %v2057 = vadd.f32 %v1729, %v1917
      %v2058 = vadd.f32 %v1730, %v1922
      %v2059 = vadd.f32 %v1731, %v1925
      %v2060 = vadd.f32 %v1732, %v1930
      %v2061 = vadd.f32 %v1733, %v1933
      %v2062 = vadd.f32 %v1734, %v1938
      %v2063 = vadd.f32 %v1735, %v1941
      %v2064 = vadd.f32 %v1736, %v1946
      %v2065 = vadd.f32 %v1737, %v1949
      %v2066 = vadd.f32 %v1738, %v1954
      %v2067 = vadd.f32 %v1739, %v1957
      %v2068 = vadd.f32 %v1740, %v1962
      %v2069 = vadd.f32 %v1741, %v1965
      %v2070 = vadd.f32 %v1742, %v1970
      %v2071 = vadd.f32 %v1743, %v1973
      %v2072 = vadd.f32 %v1744, %v1978
      %v2073 = vadd.f32 %v1745, %v1981
      %v2074 = vadd.f32 %v1746, %v1986
      %v2075 = vadd.f32 %v1747, %v1989
      %v2076 = vadd.f32 %v1748, %v1994
      %v2077 = vadd.f32 %v1749, %v1997
      %v2078 = vadd.f32 %v1750, %v2002
      %v2079 = vadd.f32 %v1751, %v2005
      %v2080 = vadd.f32 %v1752, %v2010
      %v2081 = vadd.f32 %v1753, %v2013
      %v2082 = vadd.f32 %v1754, %v2018
      %v2083 = vadd.f32 %v1755, %v2021
      %v2084 = vadd.f32 %v1756, %v2026
      %v2085 = vadd.f32 %v1757, %v2029
      %v2086 = vadd.f32 %v1758, %v2034
      %v2087 = vadd.f32 %v1759, %v2037
      %v2088 = vadd.f32 %v1760, %v2042
      %v2089 = vadd.f32 %v1761, %v2045
      %v2090 = vadd.f32 %v1762, %v2050
      %v2091 = vadd.f32 %v1763, %v2053
      %s2092 = sadd.s32 %s195, 36
      %s2093 = scalar_lea.vmem %s183, %s2092
      %v2094 = vld [vmem:[%s2093] sm:$0xff]
      %v2095 = vld [vmem:[%s2093 + $0x8] sm:$0xff]
      %v2096 = vld [vmem:[%s2093 + $0x10] sm:$0xff]
      %v2097 = vld [vmem:[%s2093 + $0x18] sm:$0xff]
      %v2098 = vld [vmem:[%s2093 + $0x20] sm:$0xff]
      %v2099 = vld [vmem:[%s2093 + $0x28] sm:$0xff]
      %v2100 = vld [vmem:[%s2093 + $0x30] sm:$0xff]
      %v2101 = vld [vmem:[%s2093 + $0x38] sm:$0xff]
      %v2102 = vld [vmem:[%s2093 + $0x40] sm:$0xff]
      %v2103 = vld [vmem:[%s2093 + $0x48] sm:$0xff]
      %v2104 = vld [vmem:[%s2093 + $0x50] sm:$0xff]
      %v2105 = vld [vmem:[%s2093 + $0x58] sm:$0xff]
      %v2106 = vld [vmem:[%s2093 + $0x60] sm:$0xff]
      %v2107 = vld [vmem:[%s2093 + $0x68] sm:$0xff]
      %v2108 = vld [vmem:[%s2093 + $0x70] sm:$0xff]
      %v2109 = vld [vmem:[%s2093 + $0x78] sm:$0xff]
      %v2110 = vld [vmem:[%s2093 + $0x80] sm:$0xff]
      %v2111 = vld [vmem:[%s2093 + $0x88] sm:$0xff]
      %v2112 = vld [vmem:[%s2093 + $0x90] sm:$0xff]
      %v2113 = vld [vmem:[%s2093 + $0x98] sm:$0xff]
      %v2114 = vld [vmem:[%s2093 + $0xa0] sm:$0xff]
      %v2115 = vld [vmem:[%s2093 + $0xa8] sm:$0xff]
      %v2116 = vld [vmem:[%s2093 + $0xb0] sm:$0xff]
      %v2117 = vld [vmem:[%s2093 + $0xb8] sm:$0xff]
      %v2118 = vld [vmem:[%s2093 + $0xc0] sm:$0xff]
      %v2119 = vld [vmem:[%s2093 + $0xc8] sm:$0xff]
      %v2120 = vld [vmem:[%s2093 + $0xd0] sm:$0xff]
      %v2121 = vld [vmem:[%s2093 + $0xd8] sm:$0xff]
      %v2122 = vld [vmem:[%s2093 + $0xe0] sm:$0xff]
      %v2123 = vld [vmem:[%s2093 + $0xe8] sm:$0xff]
      %v2124 = vld [vmem:[%s2093 + $0xf0] sm:$0xff]
      %v2125 = vld [vmem:[%s2093 + $0xf8] sm:$0xff]
      %v2126 = vld [vmem:[%s2093 + $0x100] sm:$0xff]
      %v2127 = vld [vmem:[%s2093 + $0x108] sm:$0xff]
      %v2128 = vld [vmem:[%s2093 + $0x110] sm:$0xff]
      %v2129 = vld [vmem:[%s2093 + $0x118] sm:$0xff]
      %v2130 = vpack.c.bf16 %v2095, %v2094
      %v2131 = vpack.c.bf16 %v2097, %v2096
      %v2132 = vpack.c.bf16 %v2099, %v2098
      %v2133 = vpack.c.bf16 %v2101, %v2100
      %v2134 = vpack.c.bf16 %v2103, %v2102
      %v2135 = vpack.c.bf16 %v2105, %v2104
      %v2136 = vpack.c.bf16 %v2107, %v2106
      %v2137 = vpack.c.bf16 %v2109, %v2108
      %v2138 = vpack.c.bf16 %v2111, %v2110
      %v2139 = vpack.c.bf16 %v2113, %v2112
      %v2140 = vpack.c.bf16 %v2115, %v2114
      %v2141 = vpack.c.bf16 %v2117, %v2116
      %v2142 = vpack.c.bf16 %v2119, %v2118
      %v2143 = vpack.c.bf16 %v2121, %v2120
      %v2144 = vpack.c.bf16 %v2123, %v2122
      %v2145 = vpack.c.bf16 %v2125, %v2124
      %v2146 = vpack.c.bf16 %v2127, %v2126
      %v2147 = vpack.c.bf16 %v2129, %v2128
      %s2148 = scalar_lea.vmem %s1, 12
      %v2149 = vld [vmem:[%s2148] sm:$0x3]
      %v2151 = vsel %vm310, %v2130, 0
      %v2154 = vsel %vm310, %v2131, 0
      %v2157 = vsel %vm310, %v2132, 0
      %v2160 = vsel %vm310, %v2133, 0
      %v2163 = vsel %vm310, %v2134, 0
      %v2166 = vsel %vm310, %v2135, 0
      %v2169 = vsel %vm310, %v2136, 0
      %v2172 = vsel %vm310, %v2137, 0
      %v2175 = vsel %vm310, %v2138, 0
      %v2178 = vsel %vm310, %v2139, 0
      %v2181 = vsel %vm310, %v2140, 0
      %v2184 = vsel %vm310, %v2141, 0
      %v2187 = vsel %vm310, %v2142, 0
      %v2190 = vsel %vm310, %v2143, 0
      %v2193 = vsel %vm310, %v2144, 0
      %v2196 = vsel %vm310, %v2145, 0
      %v2199 = vsel %vm310, %v2146, 0
      %v2202 = vsel %vm310, %v2147, 0
      %v2205 = vsel %vm365, %v2149, 0
      %2207 = vmatprep.subr.bf16.mxu0 0
      %2208 = vmatpush1.bf16.msra.mxu0 %v2205
      %2209 = vmatprep.subr.bf16.mxu0 0
      %2210 = vmatpush1.bf16.msra.mxu0 0
      %2211 = vmatprep.subr.bf16.mxu0 0
      %2212 = vmatpush1.bf16.msra.mxu0 0
      %2213 = vmatprep.subr.bf16.mxu0 0
      %2214 = vmatpush1.bf16.msra.mxu0 0
      %2215 = vmatprep.subr.bf16.mxu0 0
      %2216 = vmatpush1.bf16.msra.mxu0 0
      %2217 = vmatprep.subr.bf16.mxu0 0
      %2218 = vmatpush1.bf16.msra.mxu0 0
      %2219 = vmatprep.subr.bf16.mxu0 0
      %2220 = vmatpush1.bf16.msra.mxu0 0
      %2221 = vmatprep.subr.bf16.mxu0 0
      %2222 = vmatpush1.bf16.msra.mxu0 0
      %2223 = vmatprep.subr.bf16.mxu0 0
      %2224 = vmatpush1.bf16.msra.mxu0 0
      %2225 = vmatprep.subr.bf16.mxu0 0
      %2226 = vmatpush1.bf16.msra.mxu0 0
      %2227 = vmatprep.subr.bf16.mxu0 0
      %2228 = vmatpush1.bf16.msra.mxu0 0
      %2229 = vmatprep.subr.bf16.mxu0 0
      %2230 = vmatpush1.bf16.msra.mxu0 0
      %2231 = vmatprep.subr.bf16.mxu0 0
      %2232 = vmatpush1.bf16.msra.mxu0 0
      %2233 = vmatprep.subr.bf16.mxu0 0
      %2234 = vmatpush1.bf16.msra.mxu0 0
      %2235 = vmatprep.subr.bf16.mxu0 0
      %2236 = vmatpush1.bf16.msra.mxu0 0
      %2237 = vmatprep.subr.bf16.mxu0 0
      %2238 = vmatpush1.bf16.msra.mxu0 0
      %2239 = vmatprep.mubr.bf16.mxu0 0
      %2240 = vmatmul.mubr.bf16.gmra.mrb[0].mxu0 %v2151
      %v2241 = vpop.f32.mrb[0].mxu0
      %v2242 = vadd.f32 0.0, %v2241
      %v2243 = vpop.f32.mrb[0].mxu0
      %v2244 = vpop.f32.mrb[0].mxu0
      %v2245 = vadd.f32 0.0, %v2244
      %v2246 = vpop.f32.mrb[0].mxu0
      %2247 = vmatprep.mubr.bf16.mxu0 0
      %2248 = vmatmul.mubr.bf16.gmra.mrb[0].mxu0 %v2154
      %v2249 = vpop.f32.mrb[0].mxu0
      %v2250 = vadd.f32 0.0, %v2249
      %v2251 = vpop.f32.mrb[0].mxu0
      %v2252 = vpop.f32.mrb[0].mxu0
      %v2253 = vadd.f32 0.0, %v2252
      %v2254 = vpop.f32.mrb[0].mxu0
      %2255 = vmatprep.mubr.bf16.mxu0 0
      %2256 = vmatmul.mubr.bf16.gmra.mrb[0].mxu0 %v2157
      %v2257 = vpop.f32.mrb[0].mxu0
      %v2258 = vadd.f32 0.0, %v2257
      %v2259 = vpop.f32.mrb[0].mxu0
      %v2260 = vpop.f32.mrb[0].mxu0
      %v2261 = vadd.f32 0.0, %v2260
      %v2262 = vpop.f32.mrb[0].mxu0
      %2263 = vmatprep.mubr.bf16.mxu0 0
      %2264 = vmatmul.mubr.bf16.gmra.mrb[0].mxu0 %v2160
      %v2265 = vpop.f32.mrb[0].mxu0
      %v2266 = vadd.f32 0.0, %v2265
      %v2267 = vpop.f32.mrb[0].mxu0
      %v2268 = vpop.f32.mrb[0].mxu0
      %v2269 = vadd.f32 0.0, %v2268
      %v2270 = vpop.f32.mrb[0].mxu0
      %2271 = vmatprep.mubr.bf16.mxu0 0
      %2272 = vmatmul.mubr.bf16.gmra.mrb[0].mxu0 %v2163
      %v2273 = vpop.f32.mrb[0].mxu0
      %v2274 = vadd.f32 0.0, %v2273
      %v2275 = vpop.f32.mrb[0].mxu0
      %v2276 = vpop.f32.mrb[0].mxu0
      %v2277 = vadd.f32 0.0, %v2276
      %v2278 = vpop.f32.mrb[0].mxu0
      %2279 = vmatprep.mubr.bf16.mxu0 0
      %2280 = vmatmul.mubr.bf16.gmra.mrb[0].mxu0 %v2166
      %v2281 = vpop.f32.mrb[0].mxu0
      %v2282 = vadd.f32 0.0, %v2281
      %v2283 = vpop.f32.mrb[0].mxu0
      %v2284 = vpop.f32.mrb[0].mxu0
      %v2285 = vadd.f32 0.0, %v2284
      %v2286 = vpop.f32.mrb[0].mxu0
      %2287 = vmatprep.mubr.bf16.mxu0 0
      %2288 = vmatmul.mubr.bf16.gmra.mrb[0].mxu0 %v2169
      %v2289 = vpop.f32.mrb[0].mxu0
      %v2290 = vadd.f32 0.0, %v2289
      %v2291 = vpop.f32.mrb[0].mxu0
      %v2292 = vpop.f32.mrb[0].mxu0
      %v2293 = vadd.f32 0.0, %v2292
      %v2294 = vpop.f32.mrb[0].mxu0
      %2295 = vmatprep.mubr.bf16.mxu0 0
      %2296 = vmatmul.mubr.bf16.gmra.mrb[0].mxu0 %v2172
      %v2297 = vpop.f32.mrb[0].mxu0
      %v2298 = vadd.f32 0.0, %v2297
      %v2299 = vpop.f32.mrb[0].mxu0
      %v2300 = vpop.f32.mrb[0].mxu0
      %v2301 = vadd.f32 0.0, %v2300
      %v2302 = vpop.f32.mrb[0].mxu0
      %2303 = vmatprep.mubr.bf16.mxu0 0
      %2304 = vmatmul.mubr.bf16.gmra.mrb[0].mxu0 %v2175
      %v2305 = vpop.f32.mrb[0].mxu0
      %v2306 = vadd.f32 0.0, %v2305
      %v2307 = vpop.f32.mrb[0].mxu0
      %v2308 = vpop.f32.mrb[0].mxu0
      %v2309 = vadd.f32 0.0, %v2308
      %v2310 = vpop.f32.mrb[0].mxu0
      %2311 = vmatprep.mubr.bf16.mxu0 0
      %2312 = vmatmul.mubr.bf16.gmra.mrb[0].mxu0 %v2178
      %v2313 = vpop.f32.mrb[0].mxu0
      %v2314 = vadd.f32 0.0, %v2313
      %v2315 = vpop.f32.mrb[0].mxu0
      %v2316 = vpop.f32.mrb[0].mxu0
      %v2317 = vadd.f32 0.0, %v2316
      %v2318 = vpop.f32.mrb[0].mxu0
      %2319 = vmatprep.mubr.bf16.mxu0 0
      %2320 = vmatmul.mubr.bf16.gmra.mrb[0].mxu0 %v2181
      %v2321 = vpop.f32.mrb[0].mxu0
      %v2322 = vadd.f32 0.0, %v2321
      %v2323 = vpop.f32.mrb[0].mxu0
      %v2324 = vpop.f32.mrb[0].mxu0
      %v2325 = vadd.f32 0.0, %v2324
      %v2326 = vpop.f32.mrb[0].mxu0
      %2327 = vmatprep.mubr.bf16.mxu0 0
      %2328 = vmatmul.mubr.bf16.gmra.mrb[0].mxu0 %v2184
      %v2329 = vpop.f32.mrb[0].mxu0
      %v2330 = vadd.f32 0.0, %v2329
      %v2331 = vpop.f32.mrb[0].mxu0
      %v2332 = vpop.f32.mrb[0].mxu0
      %v2333 = vadd.f32 0.0, %v2332
      %v2334 = vpop.f32.mrb[0].mxu0
      %2335 = vmatprep.mubr.bf16.mxu0 0
      %2336 = vmatmul.mubr.bf16.gmra.mrb[0].mxu0 %v2187
      %v2337 = vpop.f32.mrb[0].mxu0
      %v2338 = vadd.f32 0.0, %v2337
      %v2339 = vpop.f32.mrb[0].mxu0
      %v2340 = vpop.f32.mrb[0].mxu0
      %v2341 = vadd.f32 0.0, %v2340
      %v2342 = vpop.f32.mrb[0].mxu0
      %2343 = vmatprep.mubr.bf16.mxu0 0
      %2344 = vmatmul.mubr.bf16.gmra.mrb[0].mxu0 %v2190
      %v2345 = vpop.f32.mrb[0].mxu0
      %v2346 = vadd.f32 0.0, %v2345
      %v2347 = vpop.f32.mrb[0].mxu0
      %v2348 = vpop.f32.mrb[0].mxu0
      %v2349 = vadd.f32 0.0, %v2348
      %v2350 = vpop.f32.mrb[0].mxu0
      %2351 = vmatprep.mubr.bf16.mxu0 0
      %2352 = vmatmul.mubr.bf16.gmra.mrb[0].mxu0 %v2193
      %v2353 = vpop.f32.mrb[0].mxu0
      %v2354 = vadd.f32 0.0, %v2353
      %v2355 = vpop.f32.mrb[0].mxu0
      %v2356 = vpop.f32.mrb[0].mxu0
      %v2357 = vadd.f32 0.0, %v2356
      %v2358 = vpop.f32.mrb[0].mxu0
      %2359 = vmatprep.mubr.bf16.mxu0 0
      %2360 = vmatmul.mubr.bf16.gmra.mrb[0].mxu0 %v2196
      %v2361 = vpop.f32.mrb[0].mxu0
      %v2362 = vadd.f32 0.0, %v2361
      %v2363 = vpop.f32.mrb[0].mxu0
      %v2364 = vpop.f32.mrb[0].mxu0
      %v2365 = vadd.f32 0.0, %v2364
      %v2366 = vpop.f32.mrb[0].mxu0
      %2367 = vmatprep.mubr.bf16.mxu0 0
      %2368 = vmatmul.mubr.bf16.gmra.mrb[0].mxu0 %v2199
      %v2369 = vpop.f32.mrb[0].mxu0
      %v2370 = vadd.f32 0.0, %v2369
      %v2371 = vpop.f32.mrb[0].mxu0
      %v2372 = vpop.f32.mrb[0].mxu0
      %v2373 = vadd.f32 0.0, %v2372
      %v2374 = vpop.f32.mrb[0].mxu0
      %2375 = vmatprep.mubr.bf16.mxu0 0
      %2376 = vmatmul.mubr.bf16.gmra.mrb[0].mxu0 %v2202
      %v2377 = vpop.f32.mrb[0].mxu0
      %v2378 = vadd.f32 0.0, %v2377
      %v2379 = vpop.f32.mrb[0].mxu0
      %v2380 = vpop.f32.mrb[0].mxu0
      %v2381 = vadd.f32 0.0, %v2380
      %v2382 = vpop.f32.mrb[0].mxu0
      %2383 = vdwg.mxu0
      %v2384 = vadd.f32 %v2056, %v2242
      %v2385 = vadd.f32 %v2057, %v2245
      %v2386 = vadd.f32 %v2058, %v2250
      %v2387 = vadd.f32 %v2059, %v2253
      %v2388 = vadd.f32 %v2060, %v2258
      %v2389 = vadd.f32 %v2061, %v2261
      %v2390 = vadd.f32 %v2062, %v2266
      %v2391 = vadd.f32 %v2063, %v2269
      %v2392 = vadd.f32 %v2064, %v2274
      %v2393 = vadd.f32 %v2065, %v2277
      %v2394 = vadd.f32 %v2066, %v2282
      %v2395 = vadd.f32 %v2067, %v2285
      %v2396 = vadd.f32 %v2068, %v2290
      %v2397 = vadd.f32 %v2069, %v2293
      %v2398 = vadd.f32 %v2070, %v2298
      %v2399 = vadd.f32 %v2071, %v2301
      %v2400 = vadd.f32 %v2072, %v2306
      %v2401 = vadd.f32 %v2073, %v2309
      %v2402 = vadd.f32 %v2074, %v2314
      %v2403 = vadd.f32 %v2075, %v2317
      %v2404 = vadd.f32 %v2076, %v2322
      %v2405 = vadd.f32 %v2077, %v2325
      %v2406 = vadd.f32 %v2078, %v2330
      %v2407 = vadd.f32 %v2079, %v2333
      %v2408 = vadd.f32 %v2080, %v2338
      %v2409 = vadd.f32 %v2081, %v2341
      %v2410 = vadd.f32 %v2082, %v2346
      %v2411 = vadd.f32 %v2083, %v2349
      %v2412 = vadd.f32 %v2084, %v2354
      %v2413 = vadd.f32 %v2085, %v2357
      %v2414 = vadd.f32 %v2086, %v2362
      %v2415 = vadd.f32 %v2087, %v2365
      %v2416 = vadd.f32 %v2088, %v2370
      %v2417 = vadd.f32 %v2089, %v2373
      %v2418 = vadd.f32 %v2090, %v2378
      %v2419 = vadd.f32 %v2091, %v2381
      %s2420 = sadd.s32 %s195, 37
      %s2421 = scalar_lea.vmem %s183, %s2420
      %v2422 = vld [vmem:[%s2421] sm:$0xff]
      %v2423 = vld [vmem:[%s2421 + $0x8] sm:$0xff]
      %v2424 = vld [vmem:[%s2421 + $0x10] sm:$0xff]
      %v2425 = vld [vmem:[%s2421 + $0x18] sm:$0xff]
      %v2426 = vld [vmem:[%s2421 + $0x20] sm:$0xff]
      %v2427 = vld [vmem:[%s2421 + $0x28] sm:$0xff]
      %v2428 = vld [vmem:[%s2421 + $0x30] sm:$0xff]
      %v2429 = vld [vmem:[%s2421 + $0x38] sm:$0xff]
      %v2430 = vld [vmem:[%s2421 + $0x40] sm:$0xff]
      %v2431 = vld [vmem:[%s2421 + $0x48] sm:$0xff]
      %v2432 = vld [vmem:[%s2421 + $0x50] sm:$0xff]
      %v2433 = vld [vmem:[%s2421 + $0x58] sm:$0xff]
      %v2434 = vld [vmem:[%s2421 + $0x60] sm:$0xff]
      %v2435 = vld [vmem:[%s2421 + $0x68] sm:$0xff]
      %v2436 = vld [vmem:[%s2421 + $0x70] sm:$0xff]
      %v2437 = vld [vmem:[%s2421 + $0x78] sm:$0xff]
      %v2438 = vld [vmem:[%s2421 + $0x80] sm:$0xff]
      %v2439 = vld [vmem:[%s2421 + $0x88] sm:$0xff]
      %v2440 = vld [vmem:[%s2421 + $0x90] sm:$0xff]
      %v2441 = vld [vmem:[%s2421 + $0x98] sm:$0xff]
      %v2442 = vld [vmem:[%s2421 + $0xa0] sm:$0xff]
      %v2443 = vld [vmem:[%s2421 + $0xa8] sm:$0xff]
      %v2444 = vld [vmem:[%s2421 + $0xb0] sm:$0xff]
      %v2445 = vld [vmem:[%s2421 + $0xb8] sm:$0xff]
      %v2446 = vld [vmem:[%s2421 + $0xc0] sm:$0xff]
      %v2447 = vld [vmem:[%s2421 + $0xc8] sm:$0xff]
      %v2448 = vld [vmem:[%s2421 + $0xd0] sm:$0xff]
      %v2449 = vld [vmem:[%s2421 + $0xd8] sm:$0xff]
      %v2450 = vld [vmem:[%s2421 + $0xe0] sm:$0xff]
      %v2451 = vld [vmem:[%s2421 + $0xe8] sm:$0xff]
      %v2452 = vld [vmem:[%s2421 + $0xf0] sm:$0xff]
      %v2453 = vld [vmem:[%s2421 + $0xf8] sm:$0xff]
      %v2454 = vld [vmem:[%s2421 + $0x100] sm:$0xff]
      %v2455 = vld [vmem:[%s2421 + $0x108] sm:$0xff]
      %v2456 = vld [vmem:[%s2421 + $0x110] sm:$0xff]
      %v2457 = vld [vmem:[%s2421 + $0x118] sm:$0xff]
      %v2458 = vpack.c.bf16 %v2423, %v2422
      %v2459 = vpack.c.bf16 %v2425, %v2424
      %v2460 = vpack.c.bf16 %v2427, %v2426
      %v2461 = vpack.c.bf16 %v2429, %v2428
      %v2462 = vpack.c.bf16 %v2431, %v2430
      %v2463 = vpack.c.bf16 %v2433, %v2432
      %v2464 = vpack.c.bf16 %v2435, %v2434
      %v2465 = vpack.c.bf16 %v2437, %v2436
      %v2466 = vpack.c.bf16 %v2439, %v2438
      %v2467 = vpack.c.bf16 %v2441, %v2440
      %v2468 = vpack.c.bf16 %v2443, %v2442
      %v2469 = vpack.c.bf16 %v2445, %v2444
      %v2470 = vpack.c.bf16 %v2447, %v2446
      %v2471 = vpack.c.bf16 %v2449, %v2448
      %v2472 = vpack.c.bf16 %v2451, %v2450
      %v2473 = vpack.c.bf16 %v2453, %v2452
      %v2474 = vpack.c.bf16 %v2455, %v2454
      %v2475 = vpack.c.bf16 %v2457, %v2456
      %s2476 = scalar_lea.vmem %s1, 14
      %v2477 = vld [vmem:[%s2476] sm:$0x3]
      %v2479 = vsel %vm310, %v2458, 0
      %v2482 = vsel %vm310, %v2459, 0
      %v2485 = vsel %vm310, %v2460, 0
      %v2488 = vsel %vm310, %v2461, 0
      %v2491 = vsel %vm310, %v2462, 0
      %v2494 = vsel %vm310, %v2463, 0
      %v2497 = vsel %vm310, %v2464, 0
      %v2500 = vsel %vm310, %v2465, 0
      %v2503 = vsel %vm310, %v2466, 0
      %v2506 = vsel %vm310, %v2467, 0
      %v2509 = vsel %vm310, %v2468, 0
      %v2512 = vsel %vm310, %v2469, 0
      %v2515 = vsel %vm310, %v2470, 0
      %v2518 = vsel %vm310, %v2471, 0
      %v2521 = vsel %vm310, %v2472, 0
      %v2524 = vsel %vm310, %v2473, 0
      %v2527 = vsel %vm310, %v2474, 0
      %v2530 = vsel %vm310, %v2475, 0
      %v2533 = vsel %vm365, %v2477, 0
      %2535 = vmatprep.subr.bf16.mxu0 0
      %2536 = vmatpush1.bf16.msra.mxu0 %v2533
      %2537 = vmatprep.subr.bf16.mxu0 0
      %2538 = vmatpush1.bf16.msra.mxu0 0
      %2539 = vmatprep.subr.bf16.mxu0 0
      %2540 = vmatpush1.bf16.msra.mxu0 0
      %2541 = vmatprep.subr.bf16.mxu0 0
      %2542 = vmatpush1.bf16.msra.mxu0 0
      %2543 = vmatprep.subr.bf16.mxu0 0
      %2544 = vmatpush1.bf16.msra.mxu0 0
      %2545 = vmatprep.subr.bf16.mxu0 0
      %2546 = vmatpush1.bf16.msra.mxu0 0
      %2547 = vmatprep.subr.bf16.mxu0 0
      %2548 = vmatpush1.bf16.msra.mxu0 0
      %2549 = vmatprep.subr.bf16.mxu0 0
      %2550 = vmatpush1.bf16.msra.mxu0 0
      %2551 = vmatprep.subr.bf16.mxu0 0
      %2552 = vmatpush1.bf16.msra.mxu0 0
      %2553 = vmatprep.subr.bf16.mxu0 0
      %2554 = vmatpush1.bf16.msra.mxu0 0
      %2555 = vmatprep.subr.bf16.mxu0 0
      %2556 = vmatpush1.bf16.msra.mxu0 0
      %2557 = vmatprep.subr.bf16.mxu0 0
      %2558 = vmatpush1.bf16.msra.mxu0 0
      %2559 = vmatprep.subr.bf16.mxu0 0
      %2560 = vmatpush1.bf16.msra.mxu0 0
      %2561 = vmatprep.subr.bf16.mxu0 0
      %2562 = vmatpush1.bf16.msra.mxu0 0
      %2563 = vmatprep.subr.bf16.mxu0 0
      %2564 = vmatpush1.bf16.msra.mxu0 0
      %2565 = vmatprep.subr.bf16.mxu0 0
      %2566 = vmatpush1.bf16.msra.mxu0 0
      %2567 = vmatprep.mubr.bf16.mxu0 0
      %2568 = vmatmul.mubr.bf16.gmra.mrb[0].mxu0 %v2479
      %v2569 = vpop.f32.mrb[0].mxu0
      %v2570 = vadd.f32 0.0, %v2569
      %v2571 = vpop.f32.mrb[0].mxu0
      %v2572 = vpop.f32.mrb[0].mxu0
      %v2573 = vadd.f32 0.0, %v2572
      %v2574 = vpop.f32.mrb[0].mxu0
      %2575 = vmatprep.mubr.bf16.mxu0 0
      %2576 = vmatmul.mubr.bf16.gmra.mrb[0].mxu0 %v2482
      %v2577 = vpop.f32.mrb[0].mxu0
      %v2578 = vadd.f32 0.0, %v2577
      %v2579 = vpop.f32.mrb[0].mxu0
      %v2580 = vpop.f32.mrb[0].mxu0
      %v2581 = vadd.f32 0.0, %v2580
      %v2582 = vpop.f32.mrb[0].mxu0
      %2583 = vmatprep.mubr.bf16.mxu0 0
      %2584 = vmatmul.mubr.bf16.gmra.mrb[0].mxu0 %v2485
      %v2585 = vpop.f32.mrb[0].mxu0
      %v2586 = vadd.f32 0.0, %v2585
      %v2587 = vpop.f32.mrb[0].mxu0
      %v2588 = vpop.f32.mrb[0].mxu0
      %v2589 = vadd.f32 0.0, %v2588
      %v2590 = vpop.f32.mrb[0].mxu0
      %2591 = vmatprep.mubr.bf16.mxu0 0
      %2592 = vmatmul.mubr.bf16.gmra.mrb[0].mxu0 %v2488
      %v2593 = vpop.f32.mrb[0].mxu0
      %v2594 = vadd.f32 0.0, %v2593
      %v2595 = vpop.f32.mrb[0].mxu0
      %v2596 = vpop.f32.mrb[0].mxu0
      %v2597 = vadd.f32 0.0, %v2596
      %v2598 = vpop.f32.mrb[0].mxu0
      %2599 = vmatprep.mubr.bf16.mxu0 0
      %2600 = vmatmul.mubr.bf16.gmra.mrb[0].mxu0 %v2491
      %v2601 = vpop.f32.mrb[0].mxu0
      %v2602 = vadd.f32 0.0, %v2601
      %v2603 = vpop.f32.mrb[0].mxu0
      %v2604 = vpop.f32.mrb[0].mxu0
      %v2605 = vadd.f32 0.0, %v2604
      %v2606 = vpop.f32.mrb[0].mxu0
      %2607 = vmatprep.mubr.bf16.mxu0 0
      %2608 = vmatmul.mubr.bf16.gmra.mrb[0].mxu0 %v2494
      %v2609 = vpop.f32.mrb[0].mxu0
      %v2610 = vadd.f32 0.0, %v2609
      %v2611 = vpop.f32.mrb[0].mxu0
      %v2612 = vpop.f32.mrb[0].mxu0
      %v2613 = vadd.f32 0.0, %v2612
      %v2614 = vpop.f32.mrb[0].mxu0
      %2615 = vmatprep.mubr.bf16.mxu0 0
      %2616 = vmatmul.mubr.bf16.gmra.mrb[0].mxu0 %v2497
      %v2617 = vpop.f32.mrb[0].mxu0
      %v2618 = vadd.f32 0.0, %v2617
      %v2619 = vpop.f32.mrb[0].mxu0
      %v2620 = vpop.f32.mrb[0].mxu0
      %v2621 = vadd.f32 0.0, %v2620
      %v2622 = vpop.f32.mrb[0].mxu0
      %2623 = vmatprep.mubr.bf16.mxu0 0
      %2624 = vmatmul.mubr.bf16.gmra.mrb[0].mxu0 %v2500
      %v2625 = vpop.f32.mrb[0].mxu0
      %v2626 = vadd.f32 0.0, %v2625
      %v2627 = vpop.f32.mrb[0].mxu0
      %v2628 = vpop.f32.mrb[0].mxu0
      %v2629 = vadd.f32 0.0, %v2628
      %v2630 = vpop.f32.mrb[0].mxu0
      %2631 = vmatprep.mubr.bf16.mxu0 0
      %2632 = vmatmul.mubr.bf16.gmra.mrb[0].mxu0 %v2503
      %v2633 = vpop.f32.mrb[0].mxu0
      %v2634 = vadd.f32 0.0, %v2633
      %v2635 = vpop.f32.mrb[0].mxu0
      %v2636 = vpop.f32.mrb[0].mxu0
      %v2637 = vadd.f32 0.0, %v2636
      %v2638 = vpop.f32.mrb[0].mxu0
      %2639 = vmatprep.mubr.bf16.mxu0 0
      %2640 = vmatmul.mubr.bf16.gmra.mrb[0].mxu0 %v2506
      %v2641 = vpop.f32.mrb[0].mxu0
      %v2642 = vadd.f32 0.0, %v2641
      %v2643 = vpop.f32.mrb[0].mxu0
      %v2644 = vpop.f32.mrb[0].mxu0
      %v2645 = vadd.f32 0.0, %v2644
      %v2646 = vpop.f32.mrb[0].mxu0
      %2647 = vmatprep.mubr.bf16.mxu0 0
      %2648 = vmatmul.mubr.bf16.gmra.mrb[0].mxu0 %v2509
      %v2649 = vpop.f32.mrb[0].mxu0
      %v2650 = vadd.f32 0.0, %v2649
      %v2651 = vpop.f32.mrb[0].mxu0
      %v2652 = vpop.f32.mrb[0].mxu0
      %v2653 = vadd.f32 0.0, %v2652
      %v2654 = vpop.f32.mrb[0].mxu0
      %2655 = vmatprep.mubr.bf16.mxu0 0
      %2656 = vmatmul.mubr.bf16.gmra.mrb[0].mxu0 %v2512
      %v2657 = vpop.f32.mrb[0].mxu0
      %v2658 = vadd.f32 0.0, %v2657
      %v2659 = vpop.f32.mrb[0].mxu0
      %v2660 = vpop.f32.mrb[0].mxu0
      %v2661 = vadd.f32 0.0, %v2660
      %v2662 = vpop.f32.mrb[0].mxu0
      %2663 = vmatprep.mubr.bf16.mxu0 0
      %2664 = vmatmul.mubr.bf16.gmra.mrb[0].mxu0 %v2515
      %v2665 = vpop.f32.mrb[0].mxu0
      %v2666 = vadd.f32 0.0, %v2665
      %v2667 = vpop.f32.mrb[0].mxu0
      %v2668 = vpop.f32.mrb[0].mxu0
      %v2669 = vadd.f32 0.0, %v2668
      %v2670 = vpop.f32.mrb[0].mxu0
      %2671 = vmatprep.mubr.bf16.mxu0 0
      %2672 = vmatmul.mubr.bf16.gmra.mrb[0].mxu0 %v2518
      %v2673 = vpop.f32.mrb[0].mxu0
      %v2674 = vadd.f32 0.0, %v2673
      %v2675 = vpop.f32.mrb[0].mxu0
      %v2676 = vpop.f32.mrb[0].mxu0
      %v2677 = vadd.f32 0.0, %v2676
      %v2678 = vpop.f32.mrb[0].mxu0
      %2679 = vmatprep.mubr.bf16.mxu0 0
      %2680 = vmatmul.mubr.bf16.gmra.mrb[0].mxu0 %v2521
      %v2681 = vpop.f32.mrb[0].mxu0
      %v2682 = vadd.f32 0.0, %v2681
      %v2683 = vpop.f32.mrb[0].mxu0
      %v2684 = vpop.f32.mrb[0].mxu0
      %v2685 = vadd.f32 0.0, %v2684
      %v2686 = vpop.f32.mrb[0].mxu0
      %2687 = vmatprep.mubr.bf16.mxu0 0
      %2688 = vmatmul.mubr.bf16.gmra.mrb[0].mxu0 %v2524
      %v2689 = vpop.f32.mrb[0].mxu0
      %v2690 = vadd.f32 0.0, %v2689
      %v2691 = vpop.f32.mrb[0].mxu0
      %v2692 = vpop.f32.mrb[0].mxu0
      %v2693 = vadd.f32 0.0, %v2692
      %v2694 = vpop.f32.mrb[0].mxu0
      %2695 = vmatprep.mubr.bf16.mxu0 0
      %2696 = vmatmul.mubr.bf16.gmra.mrb[0].mxu0 %v2527
      %v2697 = vpop.f32.mrb[0].mxu0
      %v2698 = vadd.f32 0.0, %v2697
      %v2699 = vpop.f32.mrb[0].mxu0
      %v2700 = vpop.f32.mrb[0].mxu0
      %v2701 = vadd.f32 0.0, %v2700
      %v2702 = vpop.f32.mrb[0].mxu0
      %2703 = vmatprep.mubr.bf16.mxu0 0
      %2704 = vmatmul.mubr.bf16.gmra.mrb[0].mxu0 %v2530
      %v2705 = vpop.f32.mrb[0].mxu0
      %v2706 = vadd.f32 0.0, %v2705
      %v2707 = vpop.f32.mrb[0].mxu0
      %v2708 = vpop.f32.mrb[0].mxu0
      %v2709 = vadd.f32 0.0, %v2708
      %v2710 = vpop.f32.mrb[0].mxu0
      %2711 = vdwg.mxu0
      %v2712 = vadd.f32 %v2384, %v2570
      %v2713 = vadd.f32 %v2385, %v2573
      %v2714 = vadd.f32 %v2386, %v2578
      %v2715 = vadd.f32 %v2387, %v2581
      %v2716 = vadd.f32 %v2388, %v2586
      %v2717 = vadd.f32 %v2389, %v2589
      %v2718 = vadd.f32 %v2390, %v2594
      %v2719 = vadd.f32 %v2391, %v2597
      %v2720 = vadd.f32 %v2392, %v2602
      %v2721 = vadd.f32 %v2393, %v2605
      %v2722 = vadd.f32 %v2394, %v2610
      %v2723 = vadd.f32 %v2395, %v2613
      %v2724 = vadd.f32 %v2396, %v2618
      %v2725 = vadd.f32 %v2397, %v2621
      %v2726 = vadd.f32 %v2398, %v2626
      %v2727 = vadd.f32 %v2399, %v2629
      %v2728 = vadd.f32 %v2400, %v2634
      %v2729 = vadd.f32 %v2401, %v2637
      %v2730 = vadd.f32 %v2402, %v2642
      %v2731 = vadd.f32 %v2403, %v2645
      %v2732 = vadd.f32 %v2404, %v2650
      %v2733 = vadd.f32 %v2405, %v2653
      %v2734 = vadd.f32 %v2406, %v2658
      %v2735 = vadd.f32 %v2407, %v2661
      %v2736 = vadd.f32 %v2408, %v2666
      %v2737 = vadd.f32 %v2409, %v2669
      %v2738 = vadd.f32 %v2410, %v2674
      %v2739 = vadd.f32 %v2411, %v2677
      %v2740 = vadd.f32 %v2412, %v2682
      %v2741 = vadd.f32 %v2413, %v2685
      %v2742 = vadd.f32 %v2414, %v2690
      %v2743 = vadd.f32 %v2415, %v2693
      %v2744 = vadd.f32 %v2416, %v2698
      %v2745 = vadd.f32 %v2417, %v2701
      %v2746 = vadd.f32 %v2418, %v2706
      %v2747 = vadd.f32 %v2419, %v2709
      %s2748 = sadd.s32 %s195, 38
      %s2749 = scalar_lea.vmem %s183, %s2748
      %v2750 = vld [vmem:[%s2749] sm:$0xff]
      %v2751 = vld [vmem:[%s2749 + $0x8] sm:$0xff]
      %v2752 = vld [vmem:[%s2749 + $0x10] sm:$0xff]
      %v2753 = vld [vmem:[%s2749 + $0x18] sm:$0xff]
      %v2754 = vld [vmem:[%s2749 + $0x20] sm:$0xff]
      %v2755 = vld [vmem:[%s2749 + $0x28] sm:$0xff]
      %v2756 = vld [vmem:[%s2749 + $0x30] sm:$0xff]
      %v2757 = vld [vmem:[%s2749 + $0x38] sm:$0xff]
      %v2758 = vld [vmem:[%s2749 + $0x40] sm:$0xff]
      %v2759 = vld [vmem:[%s2749 + $0x48] sm:$0xff]
      %v2760 = vld [vmem:[%s2749 + $0x50] sm:$0xff]
      %v2761 = vld [vmem:[%s2749 + $0x58] sm:$0xff]
      %v2762 = vld [vmem:[%s2749 + $0x60] sm:$0xff]
      %v2763 = vld [vmem:[%s2749 + $0x68] sm:$0xff]
      %v2764 = vld [vmem:[%s2749 + $0x70] sm:$0xff]
      %v2765 = vld [vmem:[%s2749 + $0x78] sm:$0xff]
      %v2766 = vld [vmem:[%s2749 + $0x80] sm:$0xff]
      %v2767 = vld [vmem:[%s2749 + $0x88] sm:$0xff]
      %v2768 = vld [vmem:[%s2749 + $0x90] sm:$0xff]
      %v2769 = vld [vmem:[%s2749 + $0x98] sm:$0xff]
      %v2770 = vld [vmem:[%s2749 + $0xa0] sm:$0xff]
      %v2771 = vld [vmem:[%s2749 + $0xa8] sm:$0xff]
      %v2772 = vld [vmem:[%s2749 + $0xb0] sm:$0xff]
      %v2773 = vld [vmem:[%s2749 + $0xb8] sm:$0xff]
      %v2774 = vld [vmem:[%s2749 + $0xc0] sm:$0xff]
      %v2775 = vld [vmem:[%s2749 + $0xc8] sm:$0xff]
      %v2776 = vld [vmem:[%s2749 + $0xd0] sm:$0xff]
      %v2777 = vld [vmem:[%s2749 + $0xd8] sm:$0xff]
      %v2778 = vld [vmem:[%s2749 + $0xe0] sm:$0xff]
      %v2779 = vld [vmem:[%s2749 + $0xe8] sm:$0xff]
      %v2780 = vld [vmem:[%s2749 + $0xf0] sm:$0xff]
      %v2781 = vld [vmem:[%s2749 + $0xf8] sm:$0xff]
      %v2782 = vld [vmem:[%s2749 + $0x100] sm:$0xff]
      %v2783 = vld [vmem:[%s2749 + $0x108] sm:$0xff]
      %v2784 = vld [vmem:[%s2749 + $0x110] sm:$0xff]
      %v2785 = vld [vmem:[%s2749 + $0x118] sm:$0xff]
      %v2786 = vpack.c.bf16 %v2751, %v2750
      %v2787 = vpack.c.bf16 %v2753, %v2752
      %v2788 = vpack.c.bf16 %v2755, %v2754
      %v2789 = vpack.c.bf16 %v2757, %v2756
      %v2790 = vpack.c.bf16 %v2759, %v2758
      %v2791 = vpack.c.bf16 %v2761, %v2760
      %v2792 = vpack.c.bf16 %v2763, %v2762
      %v2793 = vpack.c.bf16 %v2765, %v2764
      %v2794 = vpack.c.bf16 %v2767, %v2766
      %v2795 = vpack.c.bf16 %v2769, %v2768
      %v2796 = vpack.c.bf16 %v2771, %v2770
      %v2797 = vpack.c.bf16 %v2773, %v2772
      %v2798 = vpack.c.bf16 %v2775, %v2774
      %v2799 = vpack.c.bf16 %v2777, %v2776
      %v2800 = vpack.c.bf16 %v2779, %v2778
      %v2801 = vpack.c.bf16 %v2781, %v2780
      %v2802 = vpack.c.bf16 %v2783, %v2782
      %v2803 = vpack.c.bf16 %v2785, %v2784
      %s2804 = scalar_lea.vmem %s1, 16
      %v2805 = vld [vmem:[%s2804] sm:$0x3]
      %v2807 = vsel %vm310, %v2786, 0
      %v2810 = vsel %vm310, %v2787, 0
      %v2813 = vsel %vm310, %v2788, 0
      %v2816 = vsel %vm310, %v2789, 0
      %v2819 = vsel %vm310, %v2790, 0
      %v2822 = vsel %vm310, %v2791, 0
      %v2825 = vsel %vm310, %v2792, 0
      %v2828 = vsel %vm310, %v2793, 0
      %v2831 = vsel %vm310, %v2794, 0
      %v2834 = vsel %vm310, %v2795, 0
      %v2837 = vsel %vm310, %v2796, 0
      %v2840 = vsel %vm310, %v2797, 0
      %v2843 = vsel %vm310, %v2798, 0
      %v2846 = vsel %vm310, %v2799, 0
      %v2849 = vsel %vm310, %v2800, 0
      %v2852 = vsel %vm310, %v2801, 0
      %v2855 = vsel %vm310, %v2802, 0
      %v2858 = vsel %vm310, %v2803, 0
      %v2861 = vsel %vm365, %v2805, 0
      %2863 = vmatprep.subr.bf16.mxu0 0
      %2864 = vmatpush1.bf16.msra.mxu0 %v2861
      %2865 = vmatprep.subr.bf16.mxu0 0
      %2866 = vmatpush1.bf16.msra.mxu0 0
      %2867 = vmatprep.subr.bf16.mxu0 0
      %2868 = vmatpush1.bf16.msra.mxu0 0
      %2869 = vmatprep.subr.bf16.mxu0 0
      %2870 = vmatpush1.bf16.msra.mxu0 0
      %2871 = vmatprep.subr.bf16.mxu0 0
      %2872 = vmatpush1.bf16.msra.mxu0 0
      %2873 = vmatprep.subr.bf16.mxu0 0
      %2874 = vmatpush1.bf16.msra.mxu0 0
      %2875 = vmatprep.subr.bf16.mxu0 0
      %2876 = vmatpush1.bf16.msra.mxu0 0
      %2877 = vmatprep.subr.bf16.mxu0 0
      %2878 = vmatpush1.bf16.msra.mxu0 0
      %2879 = vmatprep.subr.bf16.mxu0 0
      %2880 = vmatpush1.bf16.msra.mxu0 0
      %2881 = vmatprep.subr.bf16.mxu0 0
      %2882 = vmatpush1.bf16.msra.mxu0 0
      %2883 = vmatprep.subr.bf16.mxu0 0
      %2884 = vmatpush1.bf16.msra.mxu0 0
      %2885 = vmatprep.subr.bf16.mxu0 0
      %2886 = vmatpush1.bf16.msra.mxu0 0
      %2887 = vmatprep.subr.bf16.mxu0 0
      %2888 = vmatpush1.bf16.msra.mxu0 0
      %2889 = vmatprep.subr.bf16.mxu0 0
      %2890 = vmatpush1.bf16.msra.mxu0 0
      %2891 = vmatprep.subr.bf16.mxu0 0
      %2892 = vmatpush1.bf16.msra.mxu0 0
      %2893 = vmatprep.subr.bf16.mxu0 0
      %2894 = vmatpush1.bf16.msra.mxu0 0
      %2895 = vmatprep.mubr.bf16.mxu0 0
      %2896 = vmatmul.mubr.bf16.gmra.mrb[0].mxu0 %v2807
      %v2897 = vpop.f32.mrb[0].mxu0
      %v2898 = vadd.f32 0.0, %v2897
      %v2899 = vpop.f32.mrb[0].mxu0
      %v2900 = vpop.f32.mrb[0].mxu0
      %v2901 = vadd.f32 0.0, %v2900
      %v2902 = vpop.f32.mrb[0].mxu0
      %2903 = vmatprep.mubr.bf16.mxu0 0
      %2904 = vmatmul.mubr.bf16.gmra.mrb[0].mxu0 %v2810
      %v2905 = vpop.f32.mrb[0].mxu0
      %v2906 = vadd.f32 0.0, %v2905
      %v2907 = vpop.f32.mrb[0].mxu0
      %v2908 = vpop.f32.mrb[0].mxu0
      %v2909 = vadd.f32 0.0, %v2908
      %v2910 = vpop.f32.mrb[0].mxu0
      %2911 = vmatprep.mubr.bf16.mxu0 0
      %2912 = vmatmul.mubr.bf16.gmra.mrb[0].mxu0 %v2813
      %v2913 = vpop.f32.mrb[0].mxu0
      %v2914 = vadd.f32 0.0, %v2913
      %v2915 = vpop.f32.mrb[0].mxu0
      %v2916 = vpop.f32.mrb[0].mxu0
      %v2917 = vadd.f32 0.0, %v2916
      %v2918 = vpop.f32.mrb[0].mxu0
      %2919 = vmatprep.mubr.bf16.mxu0 0
      %2920 = vmatmul.mubr.bf16.gmra.mrb[0].mxu0 %v2816
      %v2921 = vpop.f32.mrb[0].mxu0
      %v2922 = vadd.f32 0.0, %v2921
      %v2923 = vpop.f32.mrb[0].mxu0
      %v2924 = vpop.f32.mrb[0].mxu0
      %v2925 = vadd.f32 0.0, %v2924
      %v2926 = vpop.f32.mrb[0].mxu0
      %2927 = vmatprep.mubr.bf16.mxu0 0
      %2928 = vmatmul.mubr.bf16.gmra.mrb[0].mxu0 %v2819
      %v2929 = vpop.f32.mrb[0].mxu0
      %v2930 = vadd.f32 0.0, %v2929
      %v2931 = vpop.f32.mrb[0].mxu0
      %v2932 = vpop.f32.mrb[0].mxu0
      %v2933 = vadd.f32 0.0, %v2932
      %v2934 = vpop.f32.mrb[0].mxu0
      %2935 = vmatprep.mubr.bf16.mxu0 0
      %2936 = vmatmul.mubr.bf16.gmra.mrb[0].mxu0 %v2822
      %v2937 = vpop.f32.mrb[0].mxu0
      %v2938 = vadd.f32 0.0, %v2937
      %v2939 = vpop.f32.mrb[0].mxu0
      %v2940 = vpop.f32.mrb[0].mxu0
      %v2941 = vadd.f32 0.0, %v2940
      %v2942 = vpop.f32.mrb[0].mxu0
      %2943 = vmatprep.mubr.bf16.mxu0 0
      %2944 = vmatmul.mubr.bf16.gmra.mrb[0].mxu0 %v2825
      %v2945 = vpop.f32.mrb[0].mxu0
      %v2946 = vadd.f32 0.0, %v2945
      %v2947 = vpop.f32.mrb[0].mxu0
      %v2948 = vpop.f32.mrb[0].mxu0
      %v2949 = vadd.f32 0.0, %v2948
      %v2950 = vpop.f32.mrb[0].mxu0
      %2951 = vmatprep.mubr.bf16.mxu0 0
      %2952 = vmatmul.mubr.bf16.gmra.mrb[0].mxu0 %v2828
      %v2953 = vpop.f32.mrb[0].mxu0
      %v2954 = vadd.f32 0.0, %v2953
      %v2955 = vpop.f32.mrb[0].mxu0
      %v2956 = vpop.f32.mrb[0].mxu0
      %v2957 = vadd.f32 0.0, %v2956
      %v2958 = vpop.f32.mrb[0].mxu0
      %2959 = vmatprep.mubr.bf16.mxu0 0
      %2960 = vmatmul.mubr.bf16.gmra.mrb[0].mxu0 %v2831
      %v2961 = vpop.f32.mrb[0].mxu0
      %v2962 = vadd.f32 0.0, %v2961
      %v2963 = vpop.f32.mrb[0].mxu0
      %v2964 = vpop.f32.mrb[0].mxu0
      %v2965 = vadd.f32 0.0, %v2964
      %v2966 = vpop.f32.mrb[0].mxu0
      %2967 = vmatprep.mubr.bf16.mxu0 0
      %2968 = vmatmul.mubr.bf16.gmra.mrb[0].mxu0 %v2834
      %v2969 = vpop.f32.mrb[0].mxu0
      %v2970 = vadd.f32 0.0, %v2969
      %v2971 = vpop.f32.mrb[0].mxu0
      %v2972 = vpop.f32.mrb[0].mxu0
      %v2973 = vadd.f32 0.0, %v2972
      %v2974 = vpop.f32.mrb[0].mxu0
      %2975 = vmatprep.mubr.bf16.mxu0 0
      %2976 = vmatmul.mubr.bf16.gmra.mrb[0].mxu0 %v2837
      %v2977 = vpop.f32.mrb[0].mxu0
      %v2978 = vadd.f32 0.0, %v2977
      %v2979 = vpop.f32.mrb[0].mxu0
      %v2980 = vpop.f32.mrb[0].mxu0
      %v2981 = vadd.f32 0.0, %v2980
      %v2982 = vpop.f32.mrb[0].mxu0
      %2983 = vmatprep.mubr.bf16.mxu0 0
      %2984 = vmatmul.mubr.bf16.gmra.mrb[0].mxu0 %v2840
      %v2985 = vpop.f32.mrb[0].mxu0
      %v2986 = vadd.f32 0.0, %v2985
      %v2987 = vpop.f32.mrb[0].mxu0
      %v2988 = vpop.f32.mrb[0].mxu0
      %v2989 = vadd.f32 0.0, %v2988
      %v2990 = vpop.f32.mrb[0].mxu0
      %2991 = vmatprep.mubr.bf16.mxu0 0
      %2992 = vmatmul.mubr.bf16.gmra.mrb[0].mxu0 %v2843
      %v2993 = vpop.f32.mrb[0].mxu0
      %v2994 = vadd.f32 0.0, %v2993
      %v2995 = vpop.f32.mrb[0].mxu0
      %v2996 = vpop.f32.mrb[0].mxu0
      %v2997 = vadd.f32 0.0, %v2996
      %v2998 = vpop.f32.mrb[0].mxu0
      %2999 = vmatprep.mubr.bf16.mxu0 0
      %3000 = vmatmul.mubr.bf16.gmra.mrb[0].mxu0 %v2846
      %v3001 = vpop.f32.mrb[0].mxu0
      %v3002 = vadd.f32 0.0, %v3001
      %v3003 = vpop.f32.mrb[0].mxu0
      %v3004 = vpop.f32.mrb[0].mxu0
      %v3005 = vadd.f32 0.0, %v3004
      %v3006 = vpop.f32.mrb[0].mxu0
      %3007 = vmatprep.mubr.bf16.mxu0 0
      %3008 = vmatmul.mubr.bf16.gmra.mrb[0].mxu0 %v2849
      %v3009 = vpop.f32.mrb[0].mxu0
      %v3010 = vadd.f32 0.0, %v3009
      %v3011 = vpop.f32.mrb[0].mxu0
      %v3012 = vpop.f32.mrb[0].mxu0
      %v3013 = vadd.f32 0.0, %v3012
      %v3014 = vpop.f32.mrb[0].mxu0
      %3015 = vmatprep.mubr.bf16.mxu0 0
      %3016 = vmatmul.mubr.bf16.gmra.mrb[0].mxu0 %v2852
      %v3017 = vpop.f32.mrb[0].mxu0
      %v3018 = vadd.f32 0.0, %v3017
      %v3019 = vpop.f32.mrb[0].mxu0
      %v3020 = vpop.f32.mrb[0].mxu0
      %v3021 = vadd.f32 0.0, %v3020
      %v3022 = vpop.f32.mrb[0].mxu0
      %3023 = vmatprep.mubr.bf16.mxu0 0
      %3024 = vmatmul.mubr.bf16.gmra.mrb[0].mxu0 %v2855
      %v3025 = vpop.f32.mrb[0].mxu0
      %v3026 = vadd.f32 0.0, %v3025
      %v3027 = vpop.f32.mrb[0].mxu0
      %v3028 = vpop.f32.mrb[0].mxu0
      %v3029 = vadd.f32 0.0, %v3028
      %v3030 = vpop.f32.mrb[0].mxu0
      %3031 = vmatprep.mubr.bf16.mxu0 0
      %3032 = vmatmul.mubr.bf16.gmra.mrb[0].mxu0 %v2858
      %v3033 = vpop.f32.mrb[0].mxu0
      %v3034 = vadd.f32 0.0, %v3033
      %v3035 = vpop.f32.mrb[0].mxu0
      %v3036 = vpop.f32.mrb[0].mxu0
      %v3037 = vadd.f32 0.0, %v3036
      %v3038 = vpop.f32.mrb[0].mxu0
      %3039 = vdwg.mxu0
      %v3040 = vadd.f32 %v2712, %v2898
      %v3041 = vadd.f32 %v2713, %v2901
      %v3042 = vadd.f32 %v2714, %v2906
      %v3043 = vadd.f32 %v2715, %v2909
      %v3044 = vadd.f32 %v2716, %v2914
      %v3045 = vadd.f32 %v2717, %v2917
      %v3046 = vadd.f32 %v2718, %v2922
      %v3047 = vadd.f32 %v2719, %v2925
      %v3048 = vadd.f32 %v2720, %v2930
      %v3049 = vadd.f32 %v2721, %v2933
      %v3050 = vadd.f32 %v2722, %v2938
      %v3051 = vadd.f32 %v2723, %v2941
      %v3052 = vadd.f32 %v2724, %v2946
      %v3053 = vadd.f32 %v2725, %v2949
      %v3054 = vadd.f32 %v2726, %v2954
      %v3055 = vadd.f32 %v2727, %v2957
      %v3056 = vadd.f32 %v2728, %v2962
      %v3057 = vadd.f32 %v2729, %v2965
      %v3058 = vadd.f32 %v2730, %v2970
      %v3059 = vadd.f32 %v2731, %v2973
      %v3060 = vadd.f32 %v2732, %v2978
      %v3061 = vadd.f32 %v2733, %v2981
      %v3062 = vadd.f32 %v2734, %v2986
      %v3063 = vadd.f32 %v2735, %v2989
      %v3064 = vadd.f32 %v2736, %v2994
      %v3065 = vadd.f32 %v2737, %v2997
      %v3066 = vadd.f32 %v2738, %v3002
      %v3067 = vadd.f32 %v2739, %v3005
      %v3068 = vadd.f32 %v2740, %v3010
      %v3069 = vadd.f32 %v2741, %v3013
      %v3070 = vadd.f32 %v2742, %v3018
      %v3071 = vadd.f32 %v2743, %v3021
      %v3072 = vadd.f32 %v2744, %v3026
      %v3073 = vadd.f32 %v2745, %v3029
      %v3074 = vadd.f32 %v2746, %v3034
      %v3075 = vadd.f32 %v2747, %v3037
      %v3076 = vld [vmem:[%s2] sm:$0x1]
      %v3078 = vlaneseq
      %v3079 = vshrl.u32 %v3078, 7
      %v3080 = vsub.s32 0, %v3079
      %v3081 = vrot.slane %v3076, %v3080
      %v3083 = vadd.f32 %v3040, %v3081
      %v3084 = vadd.f32 %v3041, %v3081
      %v3085 = vadd.f32 %v3042, %v3081
      %v3086 = vadd.f32 %v3043, %v3081
      %v3087 = vadd.f32 %v3044, %v3081
      %v3088 = vadd.f32 %v3045, %v3081
      %v3089 = vadd.f32 %v3046, %v3081
      %v3090 = vadd.f32 %v3047, %v3081
      %v3091 = vadd.f32 %v3048, %v3081
      %v3092 = vadd.f32 %v3049, %v3081
      %v3093 = vadd.f32 %v3050, %v3081
      %v3094 = vadd.f32 %v3051, %v3081
      %v3095 = vadd.f32 %v3052, %v3081
      %v3096 = vadd.f32 %v3053, %v3081
      %v3097 = vadd.f32 %v3054, %v3081
      %v3098 = vadd.f32 %v3055, %v3081
      %v3099 = vadd.f32 %v3056, %v3081
      %v3100 = vadd.f32 %v3057, %v3081
      %v3101 = vadd.f32 %v3058, %v3081
      %v3102 = vadd.f32 %v3059, %v3081
      %v3103 = vadd.f32 %v3060, %v3081
      %v3104 = vadd.f32 %v3061, %v3081
      %v3105 = vadd.f32 %v3062, %v3081
      %v3106 = vadd.f32 %v3063, %v3081
      %v3107 = vadd.f32 %v3064, %v3081
      %v3108 = vadd.f32 %v3065, %v3081
      %v3109 = vadd.f32 %v3066, %v3081
      %v3110 = vadd.f32 %v3067, %v3081
      %v3111 = vadd.f32 %v3068, %v3081
      %v3112 = vadd.f32 %v3069, %v3081
      %v3113 = vadd.f32 %v3070, %v3081
      %v3114 = vadd.f32 %v3071, %v3081
      %v3115 = vadd.f32 %v3072, %v3081
      %v3116 = vadd.f32 %v3073, %v3081
      %v3117 = vadd.f32 %v3074, %v3081
      %v3118 = vadd.f32 %v3075, %v3081
      %vm3119 = vcmask 261120
      %3120 = vst.msk [vmem:[%s192] sm:$0xff] %vm3119, %v3083
      %3121 = vst.msk [vmem:[%s192 + $0x8] sm:$0xff] %vm3119, %v3084
      %3122 = vst.msk [vmem:[%s192 + $0x10] sm:$0xff] %vm3119, %v3085
      %3123 = vst.msk [vmem:[%s192 + $0x18] sm:$0xff] %vm3119, %v3086
      %3124 = vst.msk [vmem:[%s192 + $0x20] sm:$0xff] %vm3119, %v3087
      %3125 = vst.msk [vmem:[%s192 + $0x28] sm:$0xff] %vm3119, %v3088
      %3126 = vst.msk [vmem:[%s192 + $0x30] sm:$0xff] %vm3119, %v3089
      %3127 = vst.msk [vmem:[%s192 + $0x38] sm:$0xff] %vm3119, %v3090
      %3128 = vst.msk [vmem:[%s192 + $0x40] sm:$0xff] %vm3119, %v3091
      %3129 = vst.msk [vmem:[%s192 + $0x48] sm:$0xff] %vm3119, %v3092
      %3130 = vst.msk [vmem:[%s192 + $0x50] sm:$0xff] %vm3119, %v3093
      %3131 = vst.msk [vmem:[%s192 + $0x58] sm:$0xff] %vm3119, %v3094
      %3132 = vst.msk [vmem:[%s192 + $0x60] sm:$0xff] %vm3119, %v3095
      %3133 = vst.msk [vmem:[%s192 + $0x68] sm:$0xff] %vm3119, %v3096
      %3134 = vst.msk [vmem:[%s192 + $0x70] sm:$0xff] %vm3119, %v3097
      %3135 = vst.msk [vmem:[%s192 + $0x78] sm:$0xff] %vm3119, %v3098
      %3136 = vst.msk [vmem:[%s192 + $0x80] sm:$0xff] %vm3119, %v3099
      %3137 = vst.msk [vmem:[%s192 + $0x88] sm:$0xff] %vm3119, %v3100
      %3138 = vst.msk [vmem:[%s192 + $0x90] sm:$0xff] %vm3119, %v3101
      %3139 = vst.msk [vmem:[%s192 + $0x98] sm:$0xff] %vm3119, %v3102
      %3140 = vst.msk [vmem:[%s192 + $0xa0] sm:$0xff] %vm3119, %v3103
      %3141 = vst.msk [vmem:[%s192 + $0xa8] sm:$0xff] %vm3119, %v3104
      %3142 = vst.msk [vmem:[%s192 + $0xb0] sm:$0xff] %vm3119, %v3105
      %3143 = vst.msk [vmem:[%s192 + $0xb8] sm:$0xff] %vm3119, %v3106
      %3144 = vst.msk [vmem:[%s192 + $0xc0] sm:$0xff] %vm3119, %v3107
      %3145 = vst.msk [vmem:[%s192 + $0xc8] sm:$0xff] %vm3119, %v3108
      %3146 = vst.msk [vmem:[%s192 + $0xd0] sm:$0xff] %vm3119, %v3109
      %3147 = vst.msk [vmem:[%s192 + $0xd8] sm:$0xff] %vm3119, %v3110
      %3148 = vst.msk [vmem:[%s192 + $0xe0] sm:$0xff] %vm3119, %v3111
      %3149 = vst.msk [vmem:[%s192 + $0xe8] sm:$0xff] %vm3119, %v3112
      %3150 = vst.msk [vmem:[%s192 + $0xf0] sm:$0xff] %vm3119, %v3113
      %3151 = vst.msk [vmem:[%s192 + $0xf8] sm:$0xff] %vm3119, %v3114
      %3152 = vst.msk [vmem:[%s192 + $0x100] sm:$0xff] %vm3119, %v3115
      %3153 = vst.msk [vmem:[%s192 + $0x108] sm:$0xff] %vm3119, %v3116
      %3154 = vst.msk [vmem:[%s192 + $0x110] sm:$0xff] %vm3119, %v3117
      %3155 = vst.msk [vmem:[%s192 + $0x118] sm:$0xff] %vm3119, %v3118
      %s3156 = smul.u32 36, %s19
      %p3157 = scmp.lt.s32.totalorder %s18, 1
      %s3158 = scalar_select %p3157, %s18, 1
      %p3159 = scmp.lt.s32.totalorder %s3156, 35
      %s3160 = scalar_select %p3159, %s3156, 35
      %s3161 = smul.addr %s3158, 36
      %s3162 = sadd.s32 %s3160, %s3161
      %s3163 = smul.addr %s3162, 8
      %s3164 = scalar_lea.vmem %s3, %s3163
      // Predicated region
      $region33: #{tpu_custom_call.1} parent=31 // pred_check
        %p3165 = pneg %p114
      $region34: #{tpu_custom_call.1} parent=31 // pred_check_branch
        %3167 = sbr.rel (%p3165) target = $region36
      $region35: #{tpu_custom_call.1} parent=31 // pred_region
        %s3168 = smul.u32 36, %s19
      $region36: #{tpu_custom_call.1} parent=31 // pred_fallthru
        _
    $region32: #{tpu_custom_call.1} parent=5 // pred_fallthru
      _
    %p3169 = scmp.le.s32.totalorder 2, %s9
    // Predicated region
    $region37: #{tpu_custom_call.1} parent=5 // pred_check
      %p3170 = pneg %p3169
    $region38: #{tpu_custom_call.1} parent=5 // pred_check_branch
      %3172 = sbr.rel (%p3170) target = $region40
    $region39: #{tpu_custom_call.1} parent=5 // pred_region
      %s3173 = ssub.s32 %s9, 2
      // Predicated region
      $region41: #{tpu_custom_call.1} parent=39 // pred_check
        %p3174 = pneg %p120
      $region42: #{tpu_custom_call.1} parent=39 // pred_check_branch
        %3176 = sbr.rel (%p3174) target = $region44
      $region43: #{tpu_custom_call.1} parent=39 // pred_region
        %s3177 = smul.u32 36, %s21
        %p3178 = scmp.lt.s32.totalorder %s20, 1
        %s3179 = scalar_select %p3178, %s20, 1
        %p3180 = scmp.lt.s32.totalorder %s3177, 35
        %s3181 = scalar_select %p3180, %s3177, 35
        %s3182 = smul.addr %s3179, 36
        %s3183 = sadd.s32 %s3181, %s3182
        %s3184 = smul.addr %s3183, 8
        %s3185 = scalar_lea.vmem %s3, %s3184
      $region44: #{tpu_custom_call.1} parent=39 // pred_fallthru
        _
    $region40: #{tpu_custom_call.1} parent=5 // pred_fallthru
      _
  $region6: #{tpu_custom_call.1} parent=0 // loop_footer
    %s13 = sadd.s32 1, %s9
  $region7: #{tpu_custom_call.1} parent=0 // loop_footer_branch
    %8 = sbr.rel target = $region3
  $region8: #{tpu_custom_call.1} parent=0 // loop_exit
    _

</llo_original>
